<compile_context>
chip_gen: v6e
topology: v6e:2x2x1
jax: 0.10.0
libtpu: 0.0.40
codegen_flags: <defaults>
</compile_context>

<pallas_src>
import jax
import jax.numpy as jnp
from jax.experimental import pallas as pl
from jax.experimental.pallas import tpu as pltpu


def _i3d_head_kernel(x_ref, w1t_ref, b1_ref, w2s_ref, b2_ref, o_ref):
    """One batch tile.

    x_ref   : (B_TILE, Cin, S)  activations, S = T*H*W on the lane axis
    w1t_ref : (CH, Cin)         pointwise-conv weight (transposed)
    b1_ref  : (CH, 1)           pointwise-conv bias (column)
    w2s_ref : (CH, K_PAD)       classifier weight, pre-scaled by 1/S, zero-padded
    b2_ref  : (1, K_PAD)        classifier bias, zero-padded
    o_ref   : (B_TILE, K_PAD)   logits for this batch tile (padded classes)
    """
    b_tile, c_in, _ = x_ref.shape
    w1t = w1t_ref[...]                                # (CH, Cin)
    b1 = b1_ref[...]                                  # (CH, 1)

    cols = []
    for b in range(b_tile):                           # static unroll over tile
        x_b = x_ref[b]                                # (Cin, S), S on lanes
        # Pointwise (1x1x1) conv as Cin broadcast FMAs on the VPU; an MXU
        # matmul here would be a degenerate contraction of 3.
        acc = w1t[:, 0:1] * x_b[0:1, :]               # (CH, S)
        for c in range(1, c_in):
            acc = acc + w1t[:, c:c + 1] * x_b[c:c + 1, :]
        r = jnp.maximum(acc + b1, 0.0)                # ReLU (bias lane-bcast)
        # Global spatial pool as a lane-reduce (XLU); the 1/S of the mean is
        # folded into w2s, so a plain sum suffices.
        cols.append(jnp.sum(r, axis=-1, keepdims=True))        # (CH, 1)

    pooled = cols[0] if b_tile == 1 else jnp.concatenate(cols, axis=1)  # (CH, B_TILE)

    # Classifier on the MXU, contracting CH (dim 0 of both operands) so the
    # result comes out row-major: (B_TILE, K_PAD).
    logits = jax.lax.dot_general(
        pooled, w2s_ref[...], (((0,), (0,)), ((), ())),
        preferred_element_type=jnp.float32)
    o_ref[...] = logits + b2_ref[...]                 # dense (B_TILE, 128) store


def fold_params(raw, spatial_size, k_pad_min=128):
    """One-time constant prep: transpose w1, fold 1/S into w2, pad classes to 128."""
    w1 = jnp.asarray(raw["w1"], jnp.float32)          # (Cin, CH)
    b1 = jnp.asarray(raw["b1"], jnp.float32)          # (CH,)
    w2 = jnp.asarray(raw["w2"], jnp.float32)          # (CH, K)
    b2 = jnp.asarray(raw["b2"], jnp.float32)          # (K,)
    ch, k = w2.shape
    k_pad = max(k_pad_min, pl.cdiv(k, 128) * 128)
    w2s = jnp.zeros((ch, k_pad), jnp.float32).at[:, :k].set(w2 / float(spatial_size))
    b2p = jnp.zeros((1, k_pad), jnp.float32).at[:, :k].set(b2[None, :])
    return {
        "w1t": w1.T,                                  # (CH, Cin)
        "b1c": b1[:, None],                           # (CH, 1)
        "w2s": w2s,                                   # (CH, K_PAD), 1/S folded
        "b2p": b2p,                                   # (1, K_PAD)
        "num_classes": k,
    }


def _pick_batch_tile(n):
    # Largest tile in {8, 4, 2} that divides N while leaving >= 2 grid steps
    # (so both v7x TensorCores get work); otherwise one element per step.
    for cand in (8, 4, 2):
        if n % cand == 0 and n // cand >= 2:
            return cand
    return 1


def i3d_forward(x_ncthw, params, *, batch_tile=None):
    """Fused synthetic-I3D head.

    x_ncthw: (N, C, T, H, W) float32 — the channels-first layout the I3D
    backbone consumes.  The module's `input.transpose(1, 2)` is handled as a
    storage convention (the clip is kept channels-first), so no HBM transpose
    pass is needed and the reshape to (N, C, T*H*W) below is free.
    Returns {'pred_cls': (N, num_classes)} matching pytorchI3D.forward.
    """
    n, c_in, t, h, w = x_ncthw.shape
    s = t * h * w
    x = x_ncthw.reshape(n, c_in, s)                   # free reshape

    w1t, b1c = params["w1t"], params["b1c"]
    w2s, b2p = params["w2s"], params["b2p"]
    k = params["num_classes"]
    ch = w1t.shape[0]
    k_pad = w2s.shape[1]

    if batch_tile is None:
        batch_tile = _pick_batch_tile(n)
    assert n % batch_tile == 0, "batch must be divisible by the batch tile"
    grid = (n // batch_tile,)

    def const(shape):
        # Whole-array block whose block index never changes.
        return pl.BlockSpec(shape, lambda i: (0,) * len(shape))

    grid_spec = pltpu.PrefetchScalarGridSpec(
        num_scalar_prefetch=0,
        grid=grid,
        in_specs=[
            pl.BlockSpec((batch_tile, c_in, s), lambda i: (i, 0, 0)),
            const((ch, c_in)),
            const((ch, 1)),
            const((ch, k_pad)),
            const((1, k_pad)),
        ],
        out_specs=pl.BlockSpec((batch_tile, k_pad), lambda i: (i, 0)),
    )

    logits_pad = pl.pallas_call(
        _i3d_head_kernel,
        out_shape=jax.ShapeDtypeStruct((n, k_pad), jnp.float32),
        grid_spec=grid_spec,
        compiler_params=pltpu.CompilerParams(
            dimension_semantics=("parallel",),
        ),
    )(x, w1t, b1c, w2s, b2p)

    return {"pred_cls": logits_pad[:, :k]}


def _reference(x_ncthw, raw):
    # Pure-JAX reference of the same synthetic forward, for verification.
    n, c = x_ncthw.shape[:2]
    xs = x_ncthw.reshape(n, c, -1)                    # (N, C, S)
    h = jnp.einsum("ncs,cj->njs", xs, raw["w1"]) + raw["b1"][None, :, None]
    h = jnp.maximum(h, 0.0)
    pooled = jnp.mean(h, axis=-1)                     # (N, CH)
    return pooled @ raw["w2"] + raw["b2"][None, :]


if __name__ == "__main__":
    # Small shapes consistent with I3D video input: 16 clips of 3 x 8 x 8 x 8.
    N, C_IN, T, H, W = 16, 3, 8, 8, 8
    CH, NUM_CLASSES = 64, 4                           # module default num_classes=4
    S = T * H * W

    key = jax.random.PRNGKey(0)
    kx, kp = jax.random.split(key)
    ks = jax.random.split(kp, 4)

    # Stored channels-first (the post-`transpose(1, 2)` layout), so no HBM
    # transpose pass is needed before the kernel.
    x = jax.random.normal(kx, (N, C_IN, T, H, W), jnp.float32)
    raw = {
        "w1": 0.1 * jax.random.normal(ks[0], (C_IN, CH), jnp.float32),
        "b1": 0.1 * jax.random.normal(ks[1], (CH,), jnp.float32),
        "w2": 0.1 * jax.random.normal(ks[2], (CH, NUM_CLASSES), jnp.float32),
        "b2": 0.1 * jax.random.normal(ks[3], (NUM_CLASSES,), jnp.float32),
    }
    params = fold_params(raw, spatial_size=S)

    out = i3d_forward(x, params)
    y = jax.block_until_ready(out["pred_cls"])

    y_ref = _reference(x, raw)
    assert y.shape == (N, NUM_CLASSES)
    assert jnp.allclose(y, y_ref, atol=1e-4, rtol=1e-4), "mismatch vs reference"

    print("KERNEL_OK")
</pallas_src>

<mosaic_0001>
module attributes {stable_mosaic.version = 11 : i64} {
  func.func @_i3d_head_kernel(%arg0: i32, %arg1: memref<8x3x512xf32, #tpu.memory_space<vmem>>, %arg2: memref<64x3xf32, #tpu.memory_space<vmem>>, %arg3: memref<64x1xf32, #tpu.memory_space<vmem>>, %arg4: memref<64x128xf32, #tpu.memory_space<vmem>>, %arg5: memref<1x128xf32, #tpu.memory_space<vmem>>, %arg6: memref<8x128xf32, #tpu.memory_space<vmem>>) attributes {dimension_semantics = [#tpu.dimension_semantics<parallel>], iteration_bounds = array<i64: 2>, scalar_prefetch = 0 : i64, scratch_operands = 0 : i64, tpu.core_type = #tpu.core_type<tc>, window_params = [{transform_indices = @transform_0, window_bounds = array<i64: 8, 3, 512>}, {pipeline_mode = #tpu.pipeline_mode<synchronous>, transform_indices = @transform_1, window_bounds = array<i64: 64, 3>}, {pipeline_mode = #tpu.pipeline_mode<synchronous>, transform_indices = @transform_2, window_bounds = array<i64: 64, 1>}, {pipeline_mode = #tpu.pipeline_mode<synchronous>, transform_indices = @transform_3, window_bounds = array<i64: 64, 128>}, {pipeline_mode = #tpu.pipeline_mode<synchronous>, transform_indices = @transform_4, window_bounds = array<i64: 1, 128>}, {transform_indices = @transform_5, window_bounds = array<i64: 8, 128>}]} {
    %c0 = arith.constant 0 : index
    %c0_0 = arith.constant 0 : index
    %0 = vector.load %arg2[%c0, %c0_0] : memref<64x3xf32, #tpu.memory_space<vmem>>, vector<64x3xf32>
    %c0_1 = arith.constant 0 : index
    %c0_2 = arith.constant 0 : index
    %1 = vector.load %arg3[%c0_1, %c0_2] : memref<64x1xf32, #tpu.memory_space<vmem>>, vector<64x1xf32>
    %c0_3 = arith.constant 0 : index
    %c0_4 = arith.constant 0 : index
    %c0_5 = arith.constant 0 : index
    %2 = vector.load %arg1[%c0_3, %c0_4, %c0_5] : memref<8x3x512xf32, #tpu.memory_space<vmem>>, vector<1x3x512xf32>
    %3 = vector.shape_cast %2 : vector<1x3x512xf32> to vector<3x512xf32>
    %4 = vector.extract_strided_slice %0 {offsets = [0, 0], sizes = [64, 1], strides = [1, 1]} : vector<64x3xf32> to vector<64x1xf32>
    %5 = vector.extract_strided_slice %3 {offsets = [0, 0], sizes = [1, 512], strides = [1, 1]} : vector<3x512xf32> to vector<1x512xf32>
    %6 = vector.broadcast %4 : vector<64x1xf32> to vector<64x512xf32>
    %7 = vector.broadcast %5 : vector<1x512xf32> to vector<64x512xf32>
    %8 = arith.mulf %6, %7 : vector<64x512xf32>
    %9 = vector.extract_strided_slice %0 {offsets = [0, 1], sizes = [64, 1], strides = [1, 1]} : vector<64x3xf32> to vector<64x1xf32>
    %10 = vector.extract_strided_slice %3 {offsets = [1, 0], sizes = [1, 512], strides = [1, 1]} : vector<3x512xf32> to vector<1x512xf32>
    %11 = vector.broadcast %9 : vector<64x1xf32> to vector<64x512xf32>
    %12 = vector.broadcast %10 : vector<1x512xf32> to vector<64x512xf32>
    %13 = arith.mulf %11, %12 : vector<64x512xf32>
    %14 = arith.addf %8, %13 : vector<64x512xf32>
    %15 = vector.extract_strided_slice %0 {offsets = [0, 2], sizes = [64, 1], strides = [1, 1]} : vector<64x3xf32> to vector<64x1xf32>
    %16 = vector.extract_strided_slice %3 {offsets = [2, 0], sizes = [1, 512], strides = [1, 1]} : vector<3x512xf32> to vector<1x512xf32>
    %17 = vector.broadcast %15 : vector<64x1xf32> to vector<64x512xf32>
    %18 = vector.broadcast %16 : vector<1x512xf32> to vector<64x512xf32>
    %19 = arith.mulf %17, %18 : vector<64x512xf32>
    %20 = arith.addf %14, %19 : vector<64x512xf32>
    %21 = vector.broadcast %1 : vector<64x1xf32> to vector<64x512xf32>
    %22 = arith.addf %20, %21 : vector<64x512xf32>
    %cst = arith.constant 0.000000e+00 : f32
    %23 = vector.broadcast %cst : f32 to vector<64x512xf32>
    %24 = arith.maximumf %22, %23 : vector<64x512xf32>
    %cst_6 = arith.constant dense<0.000000e+00> : vector<64xf32>
    %25 = vector.multi_reduction <add>, %24, %cst_6 [1] : vector<64x512xf32> to vector<64xf32>
    %26 = vector.shape_cast %25 : vector<64xf32> to vector<64x1xf32>
    %c1 = arith.constant 1 : index
    %c0_7 = arith.constant 0 : index
    %c0_8 = arith.constant 0 : index
    %27 = vector.load %arg1[%c1, %c0_7, %c0_8] : memref<8x3x512xf32, #tpu.memory_space<vmem>>, vector<1x3x512xf32>
    %28 = vector.shape_cast %27 : vector<1x3x512xf32> to vector<3x512xf32>
    %29 = vector.extract_strided_slice %0 {offsets = [0, 0], sizes = [64, 1], strides = [1, 1]} : vector<64x3xf32> to vector<64x1xf32>
    %30 = vector.extract_strided_slice %28 {offsets = [0, 0], sizes = [1, 512], strides = [1, 1]} : vector<3x512xf32> to vector<1x512xf32>
    %31 = vector.broadcast %29 : vector<64x1xf32> to vector<64x512xf32>
    %32 = vector.broadcast %30 : vector<1x512xf32> to vector<64x512xf32>
    %33 = arith.mulf %31, %32 : vector<64x512xf32>
    %34 = vector.extract_strided_slice %0 {offsets = [0, 1], sizes = [64, 1], strides = [1, 1]} : vector<64x3xf32> to vector<64x1xf32>
    %35 = vector.extract_strided_slice %28 {offsets = [1, 0], sizes = [1, 512], strides = [1, 1]} : vector<3x512xf32> to vector<1x512xf32>
    %36 = vector.broadcast %34 : vector<64x1xf32> to vector<64x512xf32>
    %37 = vector.broadcast %35 : vector<1x512xf32> to vector<64x512xf32>
    %38 = arith.mulf %36, %37 : vector<64x512xf32>
    %39 = arith.addf %33, %38 : vector<64x512xf32>
    %40 = vector.extract_strided_slice %0 {offsets = [0, 2], sizes = [64, 1], strides = [1, 1]} : vector<64x3xf32> to vector<64x1xf32>
    %41 = vector.extract_strided_slice %28 {offsets = [2, 0], sizes = [1, 512], strides = [1, 1]} : vector<3x512xf32> to vector<1x512xf32>
    %42 = vector.broadcast %40 : vector<64x1xf32> to vector<64x512xf32>
    %43 = vector.broadcast %41 : vector<1x512xf32> to vector<64x512xf32>
    %44 = arith.mulf %42, %43 : vector<64x512xf32>
    %45 = arith.addf %39, %44 : vector<64x512xf32>
    %46 = vector.broadcast %1 : vector<64x1xf32> to vector<64x512xf32>
    %47 = arith.addf %45, %46 : vector<64x512xf32>
    %cst_9 = arith.constant 0.000000e+00 : f32
    %48 = vector.broadcast %cst_9 : f32 to vector<64x512xf32>
    %49 = arith.maximumf %47, %48 : vector<64x512xf32>
    %cst_10 = arith.constant dense<0.000000e+00> : vector<64xf32>
    %50 = vector.multi_reduction <add>, %49, %cst_10 [1] : vector<64x512xf32> to vector<64xf32>
    %51 = vector.shape_cast %50 : vector<64xf32> to vector<64x1xf32>
    %c2 = arith.constant 2 : index
    %c0_11 = arith.constant 0 : index
    %c0_12 = arith.constant 0 : index
    %52 = vector.load %arg1[%c2, %c0_11, %c0_12] : memref<8x3x512xf32, #tpu.memory_space<vmem>>, vector<1x3x512xf32>
    %53 = vector.shape_cast %52 : vector<1x3x512xf32> to vector<3x512xf32>
    %54 = vector.extract_strided_slice %0 {offsets = [0, 0], sizes = [64, 1], strides = [1, 1]} : vector<64x3xf32> to vector<64x1xf32>
    %55 = vector.extract_strided_slice %53 {offsets = [0, 0], sizes = [1, 512], strides = [1, 1]} : vector<3x512xf32> to vector<1x512xf32>
    %56 = vector.broadcast %54 : vector<64x1xf32> to vector<64x512xf32>
    %57 = vector.broadcast %55 : vector<1x512xf32> to vector<64x512xf32>
    %58 = arith.mulf %56, %57 : vector<64x512xf32>
    %59 = vector.extract_strided_slice %0 {offsets = [0, 1], sizes = [64, 1], strides = [1, 1]} : vector<64x3xf32> to vector<64x1xf32>
    %60 = vector.extract_strided_slice %53 {offsets = [1, 0], sizes = [1, 512], strides = [1, 1]} : vector<3x512xf32> to vector<1x512xf32>
    %61 = vector.broadcast %59 : vector<64x1xf32> to vector<64x512xf32>
    %62 = vector.broadcast %60 : vector<1x512xf32> to vector<64x512xf32>
    %63 = arith.mulf %61, %62 : vector<64x512xf32>
    %64 = arith.addf %58, %63 : vector<64x512xf32>
    %65 = vector.extract_strided_slice %0 {offsets = [0, 2], sizes = [64, 1], strides = [1, 1]} : vector<64x3xf32> to vector<64x1xf32>
    %66 = vector.extract_strided_slice %53 {offsets = [2, 0], sizes = [1, 512], strides = [1, 1]} : vector<3x512xf32> to vector<1x512xf32>
    %67 = vector.broadcast %65 : vector<64x1xf32> to vector<64x512xf32>
    %68 = vector.broadcast %66 : vector<1x512xf32> to vector<64x512xf32>
    %69 = arith.mulf %67, %68 : vector<64x512xf32>
    %70 = arith.addf %64, %69 : vector<64x512xf32>
    %71 = vector.broadcast %1 : vector<64x1xf32> to vector<64x512xf32>
    %72 = arith.addf %70, %71 : vector<64x512xf32>
    %cst_13 = arith.constant 0.000000e+00 : f32
    %73 = vector.broadcast %cst_13 : f32 to vector<64x512xf32>
    %74 = arith.maximumf %72, %73 : vector<64x512xf32>
    %cst_14 = arith.constant dense<0.000000e+00> : vector<64xf32>
    %75 = vector.multi_reduction <add>, %74, %cst_14 [1] : vector<64x512xf32> to vector<64xf32>
    %76 = vector.shape_cast %75 : vector<64xf32> to vector<64x1xf32>
    %c3 = arith.constant 3 : index
    %c0_15 = arith.constant 0 : index
    %c0_16 = arith.constant 0 : index
    %77 = vector.load %arg1[%c3, %c0_15, %c0_16] : memref<8x3x512xf32, #tpu.memory_space<vmem>>, vector<1x3x512xf32>
    %78 = vector.shape_cast %77 : vector<1x3x512xf32> to vector<3x512xf32>
    %79 = vector.extract_strided_slice %0 {offsets = [0, 0], sizes = [64, 1], strides = [1, 1]} : vector<64x3xf32> to vector<64x1xf32>
    %80 = vector.extract_strided_slice %78 {offsets = [0, 0], sizes = [1, 512], strides = [1, 1]} : vector<3x512xf32> to vector<1x512xf32>
    %81 = vector.broadcast %79 : vector<64x1xf32> to vector<64x512xf32>
    %82 = vector.broadcast %80 : vector<1x512xf32> to vector<64x512xf32>
    %83 = arith.mulf %81, %82 : vector<64x512xf32>
    %84 = vector.extract_strided_slice %0 {offsets = [0, 1], sizes = [64, 1], strides = [1, 1]} : vector<64x3xf32> to vector<64x1xf32>
    %85 = vector.extract_strided_slice %78 {offsets = [1, 0], sizes = [1, 512], strides = [1, 1]} : vector<3x512xf32> to vector<1x512xf32>
    %86 = vector.broadcast %84 : vector<64x1xf32> to vector<64x512xf32>
    %87 = vector.broadcast %85 : vector<1x512xf32> to vector<64x512xf32>
    %88 = arith.mulf %86, %87 : vector<64x512xf32>
    %89 = arith.addf %83, %88 : vector<64x512xf32>
    %90 = vector.extract_strided_slice %0 {offsets = [0, 2], sizes = [64, 1], strides = [1, 1]} : vector<64x3xf32> to vector<64x1xf32>
    %91 = vector.extract_strided_slice %78 {offsets = [2, 0], sizes = [1, 512], strides = [1, 1]} : vector<3x512xf32> to vector<1x512xf32>
    %92 = vector.broadcast %90 : vector<64x1xf32> to vector<64x512xf32>
    %93 = vector.broadcast %91 : vector<1x512xf32> to vector<64x512xf32>
    %94 = arith.mulf %92, %93 : vector<64x512xf32>
    %95 = arith.addf %89, %94 : vector<64x512xf32>
    %96 = vector.broadcast %1 : vector<64x1xf32> to vector<64x512xf32>
    %97 = arith.addf %95, %96 : vector<64x512xf32>
    %cst_17 = arith.constant 0.000000e+00 : f32
    %98 = vector.broadcast %cst_17 : f32 to vector<64x512xf32>
    %99 = arith.maximumf %97, %98 : vector<64x512xf32>
    %cst_18 = arith.constant dense<0.000000e+00> : vector<64xf32>
    %100 = vector.multi_reduction <add>, %99, %cst_18 [1] : vector<64x512xf32> to vector<64xf32>
    %101 = vector.shape_cast %100 : vector<64xf32> to vector<64x1xf32>
    %c4 = arith.constant 4 : index
    %c0_19 = arith.constant 0 : index
    %c0_20 = arith.constant 0 : index
    %102 = vector.load %arg1[%c4, %c0_19, %c0_20] : memref<8x3x512xf32, #tpu.memory_space<vmem>>, vector<1x3x512xf32>
    %103 = vector.shape_cast %102 : vector<1x3x512xf32> to vector<3x512xf32>
    %104 = vector.extract_strided_slice %0 {offsets = [0, 0], sizes = [64, 1], strides = [1, 1]} : vector<64x3xf32> to vector<64x1xf32>
    %105 = vector.extract_strided_slice %103 {offsets = [0, 0], sizes = [1, 512], strides = [1, 1]} : vector<3x512xf32> to vector<1x512xf32>
    %106 = vector.broadcast %104 : vector<64x1xf32> to vector<64x512xf32>
    %107 = vector.broadcast %105 : vector<1x512xf32> to vector<64x512xf32>
    %108 = arith.mulf %106, %107 : vector<64x512xf32>
    %109 = vector.extract_strided_slice %0 {offsets = [0, 1], sizes = [64, 1], strides = [1, 1]} : vector<64x3xf32> to vector<64x1xf32>
    %110 = vector.extract_strided_slice %103 {offsets = [1, 0], sizes = [1, 512], strides = [1, 1]} : vector<3x512xf32> to vector<1x512xf32>
    %111 = vector.broadcast %109 : vector<64x1xf32> to vector<64x512xf32>
    %112 = vector.broadcast %110 : vector<1x512xf32> to vector<64x512xf32>
    %113 = arith.mulf %111, %112 : vector<64x512xf32>
    %114 = arith.addf %108, %113 : vector<64x512xf32>
    %115 = vector.extract_strided_slice %0 {offsets = [0, 2], sizes = [64, 1], strides = [1, 1]} : vector<64x3xf32> to vector<64x1xf32>
    %116 = vector.extract_strided_slice %103 {offsets = [2, 0], sizes = [1, 512], strides = [1, 1]} : vector<3x512xf32> to vector<1x512xf32>
    %117 = vector.broadcast %115 : vector<64x1xf32> to vector<64x512xf32>
    %118 = vector.broadcast %116 : vector<1x512xf32> to vector<64x512xf32>
    %119 = arith.mulf %117, %118 : vector<64x512xf32>
    %120 = arith.addf %114, %119 : vector<64x512xf32>
    %121 = vector.broadcast %1 : vector<64x1xf32> to vector<64x512xf32>
    %122 = arith.addf %120, %121 : vector<64x512xf32>
    %cst_21 = arith.constant 0.000000e+00 : f32
    %123 = vector.broadcast %cst_21 : f32 to vector<64x512xf32>
    %124 = arith.maximumf %122, %123 : vector<64x512xf32>
    %cst_22 = arith.constant dense<0.000000e+00> : vector<64xf32>
    %125 = vector.multi_reduction <add>, %124, %cst_22 [1] : vector<64x512xf32> to vector<64xf32>
    %126 = vector.shape_cast %125 : vector<64xf32> to vector<64x1xf32>
    %c5 = arith.constant 5 : index
    %c0_23 = arith.constant 0 : index
    %c0_24 = arith.constant 0 : index
    %127 = vector.load %arg1[%c5, %c0_23, %c0_24] : memref<8x3x512xf32, #tpu.memory_space<vmem>>, vector<1x3x512xf32>
    %128 = vector.shape_cast %127 : vector<1x3x512xf32> to vector<3x512xf32>
    %129 = vector.extract_strided_slice %0 {offsets = [0, 0], sizes = [64, 1], strides = [1, 1]} : vector<64x3xf32> to vector<64x1xf32>
    %130 = vector.extract_strided_slice %128 {offsets = [0, 0], sizes = [1, 512], strides = [1, 1]} : vector<3x512xf32> to vector<1x512xf32>
    %131 = vector.broadcast %129 : vector<64x1xf32> to vector<64x512xf32>
    %132 = vector.broadcast %130 : vector<1x512xf32> to vector<64x512xf32>
    %133 = arith.mulf %131, %132 : vector<64x512xf32>
    %134 = vector.extract_strided_slice %0 {offsets = [0, 1], sizes = [64, 1], strides = [1, 1]} : vector<64x3xf32> to vector<64x1xf32>
    %135 = vector.extract_strided_slice %128 {offsets = [1, 0], sizes = [1, 512], strides = [1, 1]} : vector<3x512xf32> to vector<1x512xf32>
    %136 = vector.broadcast %134 : vector<64x1xf32> to vector<64x512xf32>
    %137 = vector.broadcast %135 : vector<1x512xf32> to vector<64x512xf32>
    %138 = arith.mulf %136, %137 : vector<64x512xf32>
    %139 = arith.addf %133, %138 : vector<64x512xf32>
    %140 = vector.extract_strided_slice %0 {offsets = [0, 2], sizes = [64, 1], strides = [1, 1]} : vector<64x3xf32> to vector<64x1xf32>
    %141 = vector.extract_strided_slice %128 {offsets = [2, 0], sizes = [1, 512], strides = [1, 1]} : vector<3x512xf32> to vector<1x512xf32>
    %142 = vector.broadcast %140 : vector<64x1xf32> to vector<64x512xf32>
    %143 = vector.broadcast %141 : vector<1x512xf32> to vector<64x512xf32>
    %144 = arith.mulf %142, %143 : vector<64x512xf32>
    %145 = arith.addf %139, %144 : vector<64x512xf32>
    %146 = vector.broadcast %1 : vector<64x1xf32> to vector<64x512xf32>
    %147 = arith.addf %145, %146 : vector<64x512xf32>
    %cst_25 = arith.constant 0.000000e+00 : f32
    %148 = vector.broadcast %cst_25 : f32 to vector<64x512xf32>
    %149 = arith.maximumf %147, %148 : vector<64x512xf32>
    %cst_26 = arith.constant dense<0.000000e+00> : vector<64xf32>
    %150 = vector.multi_reduction <add>, %149, %cst_26 [1] : vector<64x512xf32> to vector<64xf32>
    %151 = vector.shape_cast %150 : vector<64xf32> to vector<64x1xf32>
    %c6 = arith.constant 6 : index
    %c0_27 = arith.constant 0 : index
    %c0_28 = arith.constant 0 : index
    %152 = vector.load %arg1[%c6, %c0_27, %c0_28] : memref<8x3x512xf32, #tpu.memory_space<vmem>>, vector<1x3x512xf32>
    %153 = vector.shape_cast %152 : vector<1x3x512xf32> to vector<3x512xf32>
    %154 = vector.extract_strided_slice %0 {offsets = [0, 0], sizes = [64, 1], strides = [1, 1]} : vector<64x3xf32> to vector<64x1xf32>
    %155 = vector.extract_strided_slice %153 {offsets = [0, 0], sizes = [1, 512], strides = [1, 1]} : vector<3x512xf32> to vector<1x512xf32>
    %156 = vector.broadcast %154 : vector<64x1xf32> to vector<64x512xf32>
    %157 = vector.broadcast %155 : vector<1x512xf32> to vector<64x512xf32>
    %158 = arith.mulf %156, %157 : vector<64x512xf32>
    %159 = vector.extract_strided_slice %0 {offsets = [0, 1], sizes = [64, 1], strides = [1, 1]} : vector<64x3xf32> to vector<64x1xf32>
    %160 = vector.extract_strided_slice %153 {offsets = [1, 0], sizes = [1, 512], strides = [1, 1]} : vector<3x512xf32> to vector<1x512xf32>
    %161 = vector.broadcast %159 : vector<64x1xf32> to vector<64x512xf32>
    %162 = vector.broadcast %160 : vector<1x512xf32> to vector<64x512xf32>
    %163 = arith.mulf %161, %162 : vector<64x512xf32>
    %164 = arith.addf %158, %163 : vector<64x512xf32>
    %165 = vector.extract_strided_slice %0 {offsets = [0, 2], sizes = [64, 1], strides = [1, 1]} : vector<64x3xf32> to vector<64x1xf32>
    %166 = vector.extract_strided_slice %153 {offsets = [2, 0], sizes = [1, 512], strides = [1, 1]} : vector<3x512xf32> to vector<1x512xf32>
    %167 = vector.broadcast %165 : vector<64x1xf32> to vector<64x512xf32>
    %168 = vector.broadcast %166 : vector<1x512xf32> to vector<64x512xf32>
    %169 = arith.mulf %167, %168 : vector<64x512xf32>
    %170 = arith.addf %164, %169 : vector<64x512xf32>
    %171 = vector.broadcast %1 : vector<64x1xf32> to vector<64x512xf32>
    %172 = arith.addf %170, %171 : vector<64x512xf32>
    %cst_29 = arith.constant 0.000000e+00 : f32
    %173 = vector.broadcast %cst_29 : f32 to vector<64x512xf32>
    %174 = arith.maximumf %172, %173 : vector<64x512xf32>
    %cst_30 = arith.constant dense<0.000000e+00> : vector<64xf32>
    %175 = vector.multi_reduction <add>, %174, %cst_30 [1] : vector<64x512xf32> to vector<64xf32>
    %176 = vector.shape_cast %175 : vector<64xf32> to vector<64x1xf32>
    %c7 = arith.constant 7 : index
    %c0_31 = arith.constant 0 : index
    %c0_32 = arith.constant 0 : index
    %177 = vector.load %arg1[%c7, %c0_31, %c0_32] : memref<8x3x512xf32, #tpu.memory_space<vmem>>, vector<1x3x512xf32>
    %178 = vector.shape_cast %177 : vector<1x3x512xf32> to vector<3x512xf32>
    %179 = vector.extract_strided_slice %0 {offsets = [0, 0], sizes = [64, 1], strides = [1, 1]} : vector<64x3xf32> to vector<64x1xf32>
    %180 = vector.extract_strided_slice %178 {offsets = [0, 0], sizes = [1, 512], strides = [1, 1]} : vector<3x512xf32> to vector<1x512xf32>
    %181 = vector.broadcast %179 : vector<64x1xf32> to vector<64x512xf32>
    %182 = vector.broadcast %180 : vector<1x512xf32> to vector<64x512xf32>
    %183 = arith.mulf %181, %182 : vector<64x512xf32>
    %184 = vector.extract_strided_slice %0 {offsets = [0, 1], sizes = [64, 1], strides = [1, 1]} : vector<64x3xf32> to vector<64x1xf32>
    %185 = vector.extract_strided_slice %178 {offsets = [1, 0], sizes = [1, 512], strides = [1, 1]} : vector<3x512xf32> to vector<1x512xf32>
    %186 = vector.broadcast %184 : vector<64x1xf32> to vector<64x512xf32>
    %187 = vector.broadcast %185 : vector<1x512xf32> to vector<64x512xf32>
    %188 = arith.mulf %186, %187 : vector<64x512xf32>
    %189 = arith.addf %183, %188 : vector<64x512xf32>
    %190 = vector.extract_strided_slice %0 {offsets = [0, 2], sizes = [64, 1], strides = [1, 1]} : vector<64x3xf32> to vector<64x1xf32>
    %191 = vector.extract_strided_slice %178 {offsets = [2, 0], sizes = [1, 512], strides = [1, 1]} : vector<3x512xf32> to vector<1x512xf32>
    %192 = vector.broadcast %190 : vector<64x1xf32> to vector<64x512xf32>
    %193 = vector.broadcast %191 : vector<1x512xf32> to vector<64x512xf32>
    %194 = arith.mulf %192, %193 : vector<64x512xf32>
    %195 = arith.addf %189, %194 : vector<64x512xf32>
    %196 = vector.broadcast %1 : vector<64x1xf32> to vector<64x512xf32>
    %197 = arith.addf %195, %196 : vector<64x512xf32>
    %cst_33 = arith.constant 0.000000e+00 : f32
    %198 = vector.broadcast %cst_33 : f32 to vector<64x512xf32>
    %199 = arith.maximumf %197, %198 : vector<64x512xf32>
    %cst_34 = arith.constant dense<0.000000e+00> : vector<64xf32>
    %200 = vector.multi_reduction <add>, %199, %cst_34 [1] : vector<64x512xf32> to vector<64xf32>
    %201 = vector.shape_cast %200 : vector<64xf32> to vector<64x1xf32>
    %202 = tpu.concatenate %26, %51, %76, %101, %126, %151, %176, %201 in 1 : vector<64x1xf32>, vector<64x1xf32>, vector<64x1xf32>, vector<64x1xf32>, vector<64x1xf32>, vector<64x1xf32>, vector<64x1xf32>, vector<64x1xf32> -> vector<64x8xf32>
    %c0_35 = arith.constant 0 : index
    %c0_36 = arith.constant 0 : index
    %203 = vector.load %arg4[%c0_35, %c0_36] : memref<64x128xf32, #tpu.memory_space<vmem>>, vector<64x128xf32>
    %cst_37 = arith.constant dense<0.000000e+00> : vector<8x128xf32>
    %204 = tpu.matmul %202, %203, %cst_37 {dimension_numbers = #tpu.dot_dimension_numbers<[0], [0], [1], [1], [0, 1, 1, 1], [], []>} : vector<64x8xf32>, vector<64x128xf32>, vector<8x128xf32> -> vector<8x128xf32>
    %c0_38 = arith.constant 0 : index
    %c0_39 = arith.constant 0 : index
    %205 = vector.load %arg5[%c0_38, %c0_39] : memref<1x128xf32, #tpu.memory_space<vmem>>, vector<1x128xf32>
    %206 = vector.broadcast %205 : vector<1x128xf32> to vector<8x128xf32>
    %207 = arith.addf %204, %206 : vector<8x128xf32>
    %c0_40 = arith.constant 0 : index
    %c0_41 = arith.constant 0 : index
    %208 = vector.load %arg6[%c0_40, %c0_41] : memref<8x128xf32, #tpu.memory_space<vmem>>, vector<8x128xf32>
    tpu.vector_store %arg6[%c0_40, %c0_41], %207 {strides = array<i32>} : memref<8x128xf32, #tpu.memory_space<vmem>>, vector<8x128xf32>,
    return
  }
  func.func @transform_0(%arg0: i32) -> (i32, i32, i32) {
    %c0_i32 = arith.constant 0 : i32
    %c0_i32_0 = arith.constant 0 : i32
    %c0_i32_1 = arith.constant 0 : i32
    return %arg0, %c0_i32, %c0_i32_0 : i32, i32, i32
  }
  func.func @transform_1(%arg0: i32) -> (i32, i32) {
    %c0_i32 = arith.constant 0 : i32
    %c0_i32_0 = arith.constant 0 : i32
    %c0_i32_1 = arith.constant 0 : i32
    return %c0_i32, %c0_i32_0 : i32, i32
  }
  func.func @transform_2(%arg0: i32) -> (i32, i32) {
    %c0_i32 = arith.constant 0 : i32
    %c0_i32_0 = arith.constant 0 : i32
    %c0_i32_1 = arith.constant 0 : i32
    return %c0_i32, %c0_i32_0 : i32, i32
  }
  func.func @transform_3(%arg0: i32) -> (i32, i32) {
    %c0_i32 = arith.constant 0 : i32
    %c0_i32_0 = arith.constant 0 : i32
    %c0_i32_1 = arith.constant 0 : i32
    return %c0_i32, %c0_i32_0 : i32, i32
  }
  func.func @transform_4(%arg0: i32) -> (i32, i32) {
    %c0_i32 = arith.constant 0 : i32
    %c0_i32_0 = arith.constant 0 : i32
    %c0_i32_1 = arith.constant 0 : i32
    return %c0_i32, %c0_i32_0 : i32, i32
  }
  func.func @transform_5(%arg0: i32) -> (i32, i32) {
    %c0_i32 = arith.constant 0 : i32
    %c0_i32_0 = arith.constant 0 : i32
    return %arg0, %c0_i32 : i32, i32
  }
}

</mosaic_0001>

<llo_original>
// kernel: tpu_custom_call.1
$region0: #{tpu_custom_call.1}
  #allocation0 [shape = 'u32[]', space=smem, size = 0x4, offset = 0x4, fixed_abs, tag = 'smem constant byte address 0x4 - core index']
  #allocation1 [shape = 'u32[144,128]{1,0:T(1,128)}', space=vmem, size = 0x12000, scoped, tag = 'internal scratch']
  %s0 = inlined_call_operand.vmem [shape: f32[16,3,512], index: 0, kind: input, shape index: {}]
  %s1 = inlined_call_operand.vmem [shape: f32[64,3], index: 1, kind: input, shape index: {}]
  %s2 = inlined_call_operand.vmem [shape: f32[64,1], index: 2, kind: input, shape index: {}]
  %s3 = inlined_call_operand.vmem [shape: f32[64,128], index: 3, kind: input, shape index: {}]
  %s4 = inlined_call_operand.vmem [shape: f32[1,128], index: 4, kind: input, shape index: {}]
  %s5 = inlined_call_operand.hbm [shape: f32[16,128], index: 5, kind: output, shape index: {}]
  %s6 = sld [smem:[#allocation0]]
  $region53: #{tpu_custom_call.1} parent=0
    _
  %s8 = ssub.s32 1, %s6
  %s9 = scalar_select 0, %s8, %s6
  $region1: #{tpu_custom_call.1} parent=0
    #allocation2 [shape = 'u8[8192]{0}', space=vmem, size = 0x2000, scoped, tag = 'output window, operand 0']
    #allocation3 [shape = 's32[2]{0}', space=sflag, size = 0x8, scoped, tag = 'scoped memory for tpu_custom_call.1']
    %10 = vsyncpa [#allocation3], 0
    %s11 = scalar_lea.sflag [#allocation3], 1
    %12 = vsyncpa %s11, 0
    loop: start=0, step=1, limit=4
    $region2: #{tpu_custom_call.1} parent=1 // loop_pre_header
      _
    $region3: #{tpu_custom_call.1} parent=1 // loop_header
      %s14 = sphi 0, %s18
      %p15 = scmp.ge.s32.totalorder %s14, 4
      %s24 = sphi 0, %s26
      %s27 = sphi 0, %s24
      %s28 = sphi 0, %s27
      %s44 = sphi 0, %s28
      %s48 = sphi 0, %s48
      %s50 = sphi 0, %s48
      %s51 = sphi 0, %s50
      %s65 = sphi 0, %s51
      %s69 = sphi 0, %s69
      %s71 = sphi 0, %s69
      %s72 = sphi 0, %s71
      %s86 = sphi 0, %s72
      %s90 = sphi 0, %s90
      %s92 = sphi 0, %s90
      %s93 = sphi 0, %s92
      %s107 = sphi 0, %s93
      %s111 = sphi 0, %s111
      %s113 = sphi 0, %s111
      %s114 = sphi 0, %s113
      %s128 = sphi 0, %s114
      %s134 = sphi 0, %s136
      %s137 = sphi 0, %s134
      %s138 = sphi 0, %s137
      %s154 = sphi 0, %s138
    $region4: #{tpu_custom_call.1} parent=1 // loop_header_branch
      %17 = sbr.rel (%p15) target = $region8
    $region5: #{tpu_custom_call.1} parent=1 // loop_body
      %s19 = ssub.s32 %s14, 1
      %s20 = ssub.s32 %s14, 2
      %s21 = sadd.s32 %s14, 1
      %s22 = ssub.s32 %s14, %s21
      %p23 = scmp.eq.s32.totalorder %s22, 0
      %s25 = sadd.s32 %s24, 1
      %s26 = scalar_select %p23, %s24, %s25
      %p29 = pneg %p23
      %p30 = scmp.eq.s32.totalorder %s14, 1
      %p31 = por %p29, %p30
      %p32 = scmp.ne.s32.totalorder %s24, %s27
      %p33 = scmp.eq.s32.totalorder %s14, 0
      %p34 = por %p32, %p33
      %p35 = scmp.ne.s32.totalorder %s24, %s27
      %p36 = scmp.eq.s32.totalorder %s19, 1
      %p37 = por %p35, %p36
      %p38 = scmp.ne.s32.totalorder %s27, %s28
      %p39 = scmp.eq.s32.totalorder %s19, 0
      %p40 = por %p38, %p39
      %p41 = scmp.ne.s32.totalorder %s27, %s28
      %p42 = scmp.eq.s32.totalorder %s20, 1
      %p43 = por %p41, %p42
      %p45 = scmp.ne.s32.totalorder %s28, %s44
      %p46 = scmp.eq.s32.totalorder %s20, 0
      %p47 = por %p45, %p46
      %s49 = sadd.s32 %s48, 1
      %p52 = scmp.eq.s32.totalorder %s14, 1
      %p53 = scmp.ne.s32.totalorder %s48, %s50
      %p54 = scmp.eq.s32.totalorder %s14, 0
      %p55 = por %p53, %p54
      %p56 = scmp.ne.s32.totalorder %s48, %s50
      %p57 = scmp.eq.s32.totalorder %s19, 1
      %p58 = por %p56, %p57
      %p59 = scmp.ne.s32.totalorder %s50, %s51
      %p60 = scmp.eq.s32.totalorder %s19, 0
      %p61 = por %p59, %p60
      %p62 = scmp.ne.s32.totalorder %s50, %s51
      %p63 = scmp.eq.s32.totalorder %s20, 1
      %p64 = por %p62, %p63
      %p66 = scmp.ne.s32.totalorder %s51, %s65
      %p67 = scmp.eq.s32.totalorder %s20, 0
      %p68 = por %p66, %p67
      %s70 = sadd.s32 %s69, 1
      %p73 = scmp.eq.s32.totalorder %s14, 1
      %p74 = scmp.ne.s32.totalorder %s69, %s71
      %p75 = scmp.eq.s32.totalorder %s14, 0
      %p76 = por %p74, %p75
      %p77 = scmp.ne.s32.totalorder %s69, %s71
      %p78 = scmp.eq.s32.totalorder %s19, 1
      %p79 = por %p77, %p78
      %p80 = scmp.ne.s32.totalorder %s71, %s72
      %p81 = scmp.eq.s32.totalorder %s19, 0
      %p82 = por %p80, %p81
      %p83 = scmp.ne.s32.totalorder %s71, %s72
      %p84 = scmp.eq.s32.totalorder %s20, 1
      %p85 = por %p83, %p84
      %p87 = scmp.ne.s32.totalorder %s72, %s86
      %p88 = scmp.eq.s32.totalorder %s20, 0
      %p89 = por %p87, %p88
      %s91 = sadd.s32 %s90, 1
      %p94 = scmp.eq.s32.totalorder %s14, 1
      %p95 = scmp.ne.s32.totalorder %s90, %s92
      %p96 = scmp.eq.s32.totalorder %s14, 0
      %p97 = por %p95, %p96
      %p98 = scmp.ne.s32.totalorder %s90, %s92
      %p99 = scmp.eq.s32.totalorder %s19, 1
      %p100 = por %p98, %p99
      %p101 = scmp.ne.s32.totalorder %s92, %s93
      %p102 = scmp.eq.s32.totalorder %s19, 0
      %p103 = por %p101, %p102
      %p104 = scmp.ne.s32.totalorder %s92, %s93
      %p105 = scmp.eq.s32.totalorder %s20, 1
      %p106 = por %p104, %p105
      %p108 = scmp.ne.s32.totalorder %s93, %s107
      %p109 = scmp.eq.s32.totalorder %s20, 0
      %p110 = por %p108, %p109
      %s112 = sadd.s32 %s111, 1
      %p115 = scmp.eq.s32.totalorder %s14, 1
      %p116 = scmp.ne.s32.totalorder %s111, %s113
      %p117 = scmp.eq.s32.totalorder %s14, 0
      %p118 = por %p116, %p117
      %p119 = scmp.ne.s32.totalorder %s111, %s113
      %p120 = scmp.eq.s32.totalorder %s19, 1
      %p121 = por %p119, %p120
      %p122 = scmp.ne.s32.totalorder %s113, %s114
      %p123 = scmp.eq.s32.totalorder %s19, 0
      %p124 = por %p122, %p123
      %p125 = scmp.ne.s32.totalorder %s113, %s114
      %p126 = scmp.eq.s32.totalorder %s20, 1
      %p127 = por %p125, %p126
      %p129 = scmp.ne.s32.totalorder %s114, %s128
      %p130 = scmp.eq.s32.totalorder %s20, 0
      %p131 = por %p129, %p130
      %s132 = ssub.s32 %s14, %s21
      %p133 = scmp.eq.s32.totalorder %s132, 0
      %s135 = sadd.s32 %s134, 1
      %s136 = scalar_select %p133, %s134, %s135
      %p139 = pneg %p133
      %p140 = scmp.eq.s32.totalorder %s14, 1
      %p141 = por %p139, %p140
      %p142 = scmp.ne.s32.totalorder %s134, %s137
      %p143 = scmp.eq.s32.totalorder %s14, 0
      %p144 = por %p142, %p143
      %p145 = scmp.ne.s32.totalorder %s134, %s137
      %p146 = scmp.eq.s32.totalorder %s19, 1
      %p147 = por %p145, %p146
      %p148 = scmp.ne.s32.totalorder %s137, %s138
      %p149 = scmp.eq.s32.totalorder %s19, 0
      %p150 = por %p148, %p149
      %p151 = scmp.ne.s32.totalorder %s137, %s138
      %p152 = scmp.eq.s32.totalorder %s20, 1
      %p153 = por %p151, %p152
      %p155 = scmp.ne.s32.totalorder %s138, %s154
      %p156 = scmp.eq.s32.totalorder %s20, 0
      %p157 = por %p155, %p156
      %p158 = scmp.le.s32.totalorder 1, %s14
      %p159 = scmp.lt.s32.totalorder %s14, 3
      %p160 = pnand %p158, %p159
      %p161 = pneg %p160
      // Predicated region
      $region9: #{tpu_custom_call.1} parent=5 // pred_check
        _
      $region10: #{tpu_custom_call.1} parent=5 // pred_check_branch
        %163 = sbr.rel (%p160) target = $region12
      $region11: #{tpu_custom_call.1} parent=5 // pred_region
        %s164 = ssub.s32 %s14, 1
        // Predicated region
        $region13: #{tpu_custom_call.1} parent=11 // pred_check
          %p165 = pneg %p61
        $region14: #{tpu_custom_call.1} parent=11 // pred_check_branch
          %167 = sbr.rel (%p165) target = $region16
        $region15: #{tpu_custom_call.1} parent=11 // pred_region
          _
        $region16: #{tpu_custom_call.1} parent=11 // pred_fallthru
          _
        // Predicated region
        $region17: #{tpu_custom_call.1} parent=11 // pred_check
          %p168 = pneg %p82
        $region18: #{tpu_custom_call.1} parent=11 // pred_check_branch
          %170 = sbr.rel (%p168) target = $region20
        $region19: #{tpu_custom_call.1} parent=11 // pred_region
          _
        $region20: #{tpu_custom_call.1} parent=11 // pred_fallthru
          _
        // Predicated region
        $region21: #{tpu_custom_call.1} parent=11 // pred_check
          %p171 = pneg %p103
        $region22: #{tpu_custom_call.1} parent=11 // pred_check_branch
          %173 = sbr.rel (%p171) target = $region24
        $region23: #{tpu_custom_call.1} parent=11 // pred_region
          _
        $region24: #{tpu_custom_call.1} parent=11 // pred_fallthru
          _
        // Predicated region
        $region25: #{tpu_custom_call.1} parent=11 // pred_check
          %p174 = pneg %p124
        $region26: #{tpu_custom_call.1} parent=11 // pred_check_branch
          %176 = sbr.rel (%p174) target = $region28
        $region27: #{tpu_custom_call.1} parent=11 // pred_region
          _
        $region28: #{tpu_custom_call.1} parent=11 // pred_fallthru
          _
      $region12: #{tpu_custom_call.1} parent=5 // pred_fallthru
        _
      %p177 = scmp.lt.s32.totalorder %s14, 2
      // Predicated region
      $region29: #{tpu_custom_call.1} parent=5 // pred_check
        %p178 = pneg %p177
      $region30: #{tpu_custom_call.1} parent=5 // pred_check_branch
        %180 = sbr.rel (%p178) target = $region32
      $region31: #{tpu_custom_call.1} parent=5 // pred_region
        // Predicated region
        $region33: #{tpu_custom_call.1} parent=31 // pred_check
          %p181 = pneg %p34
        $region34: #{tpu_custom_call.1} parent=31 // pred_check_branch
          %183 = sbr.rel (%p181) target = $region36
        $region35: #{tpu_custom_call.1} parent=31 // pred_region
          %s184 = smul.u32 8, %s14
          %p185 = scmp.lt.s32.totalorder %s184, 15
          %s186 = scalar_select %p185, %s184, 15
          %s187 = smul.addr %s186, 4
          %s188 = smul.addr %s187, 4
          %s189 = scalar_lea.vmem %s0, %s188
          %s190 = smul.u32 8, %s14
        $region36: #{tpu_custom_call.1} parent=31 // pred_fallthru
          _
      $region32: #{tpu_custom_call.1} parent=5 // pred_fallthru
        _
      %p191 = scmp.le.s32.totalorder 1, %s14
      %p192 = scmp.lt.s32.totalorder %s14, 3
      %p193 = pnand %p191, %p192
      %p194 = pneg %p193
      // Predicated region
      $region37: #{tpu_custom_call.1} parent=5 // pred_check
        _
      $region38: #{tpu_custom_call.1} parent=5 // pred_check_branch
        %196 = sbr.rel (%p193) target = $region40
      $region39: #{tpu_custom_call.1} parent=5 // pred_region
        %s197 = ssub.s32 %s14, 1
        %s198 = smul.u32 8, %s19
        %p199 = scmp.lt.s32.totalorder %s198, 15
        %s200 = scalar_select %p199, %s198, 15
        %s201 = smul.addr %s200, 4
        %s202 = smul.addr %s201, 4
        %s203 = scalar_lea.vmem %s0, %s202
        %p204 = pneg %p40
        %p205 = pneg %p37
        %p206 = pneg %p61
        %p207 = pneg %p58
        %p208 = pneg %p82
        %p209 = pneg %p79
        %p210 = pneg %p103
        %p211 = pneg %p100
        %p212 = pneg %p124
        %p213 = pneg %p121
        %p214 = pneg %p150
        %p215 = pneg %p147
        %s216 = sand.u32 %s137, 1
        %s217 = scalar_lea.sflag [#allocation3], %s216
        %s218 = sand.u32 %s137, 1
        %s219 = smul.addr %s218, 8
        %s220 = scalar_lea.vmem [#allocation2], %s219
        %s221 = smul.u32 8, %s19
        %p222 = scmp.lt.s32.totalorder %s221, 15
        %s223 = scalar_select %p222, %s221, 15
        %s224 = smul.addr %s223, 4
        %s225 = smul.addr %s224, 4
        %s226 = scalar_lea.vmem %s0, %s225
        %s227 = smul.u32 8, %s19
        %v228 = vld [vmem:[%s1] sm:$0xff]
        %v229 = vld [vmem:[%s1 + $0x8] sm:$0xff]
        %v230 = vld [vmem:[%s1 + $0x10] sm:$0xff]
        %v231 = vld [vmem:[%s1 + $0x18] sm:$0xff]
        %v232 = vld [vmem:[%s1 + $0x20] sm:$0xff]
        %v233 = vld [vmem:[%s1 + $0x28] sm:$0xff]
        %v234 = vld [vmem:[%s1 + $0x30] sm:$0xff]
        %v235 = vld [vmem:[%s1 + $0x38] sm:$0xff]
        %v236 = vld [vmem:[%s2] sm:$0xff]
        %v237 = vld [vmem:[%s2 + $0x8] sm:$0xff]
        %v238 = vld [vmem:[%s2 + $0x10] sm:$0xff]
        %v239 = vld [vmem:[%s2 + $0x18] sm:$0xff]
        %v240 = vld [vmem:[%s2 + $0x20] sm:$0xff]
        %v241 = vld [vmem:[%s2 + $0x28] sm:$0xff]
        %v242 = vld [vmem:[%s2 + $0x30] sm:$0xff]
        %v243 = vld [vmem:[%s2 + $0x38] sm:$0xff]
        %v244 = vld [vmem:[%s226] sm:$0x77]
        %v245 = vld [vmem:[%s226 + $0x8] sm:$0x77]
        %247 = vset.pattern.permute.xlu0 0
        %248 = vperm.xlu0 %247, %v228
        %v249 = vpop.permute.xlu0 %248
        %252 = vset.pattern.permute.xlu0 0
        %253 = vperm.xlu0 %252, %v229
        %v254 = vpop.permute.xlu0 %253
        %257 = vset.pattern.permute.xlu0 0
        %258 = vperm.xlu0 %257, %v230
        %v259 = vpop.permute.xlu0 %258
        %262 = vset.pattern.permute.xlu0 0
        %263 = vperm.xlu0 %262, %v231
        %v264 = vpop.permute.xlu0 %263
        %267 = vset.pattern.permute.xlu0 0
        %268 = vperm.xlu0 %267, %v232
        %v269 = vpop.permute.xlu0 %268
        %272 = vset.pattern.permute.xlu0 0
        %273 = vperm.xlu0 %272, %v233
        %v274 = vpop.permute.xlu0 %273
        %277 = vset.pattern.permute.xlu0 0
        %278 = vperm.xlu0 %277, %v234
        %v279 = vpop.permute.xlu0 %278
        %282 = vset.pattern.permute.xlu0 0
        %283 = vperm.xlu0 %282, %v235
        %v284 = vpop.permute.xlu0 %283
        %v288 = vlaneseq
        %v289 = vshrl.u32 %v288, 7
        %v290 = vsub.s32 0, %v289
        %v291 = vrot.slane %v244, %v290
        %v292 = vlaneseq
        %v293 = vshrl.u32 %v292, 7
        %v294 = vsub.s32 4, %v293
        %v295 = vrot.slane %v244, %v294
        %v296 = vlaneseq
        %v297 = vshrl.u32 %v296, 7
        %v298 = vsub.s32 0, %v297
        %v299 = vrot.slane %v245, %v298
        %v300 = vlaneseq
        %v301 = vshrl.u32 %v300, 7
        %v302 = vsub.s32 4, %v301
        %v303 = vrot.slane %v245, %v302
        %v308 = vlaneseq
        %v309 = vshrl.u32 %v308, 7
        %v310 = vsub.s32 0, %v309
        %v311 = vrot.slane %v291, %v310
        %v312 = vlaneseq
        %v313 = vshrl.u32 %v312, 7
        %v314 = vsub.s32 0, %v313
        %v315 = vrot.slane %v295, %v314
        %v316 = vlaneseq
        %v317 = vshrl.u32 %v316, 7
        %v318 = vsub.s32 0, %v317
        %v319 = vrot.slane %v299, %v318
        %v320 = vlaneseq
        %v321 = vshrl.u32 %v320, 7
        %v322 = vsub.s32 0, %v321
        %v323 = vrot.slane %v303, %v322
        %v324 = vmul.f32 %v249, %v311
        %v325 = vmul.f32 %v249, %v315
        %v326 = vmul.f32 %v249, %v319
        %v327 = vmul.f32 %v249, %v323
        %v328 = vmul.f32 %v254, %v311
        %v329 = vmul.f32 %v254, %v315
        %v330 = vmul.f32 %v254, %v319
        %v331 = vmul.f32 %v254, %v323
        %v332 = vmul.f32 %v259, %v311
        %v333 = vmul.f32 %v259, %v315
        %v334 = vmul.f32 %v259, %v319
        %v335 = vmul.f32 %v259, %v323
        %v336 = vmul.f32 %v264, %v311
        %v337 = vmul.f32 %v264, %v315
        %v338 = vmul.f32 %v264, %v319
        %v339 = vmul.f32 %v264, %v323
        %v340 = vmul.f32 %v269, %v311
        %v341 = vmul.f32 %v269, %v315
        %v342 = vmul.f32 %v269, %v319
        %v343 = vmul.f32 %v269, %v323
        %v344 = vmul.f32 %v274, %v311
        %v345 = vmul.f32 %v274, %v315
        %v346 = vmul.f32 %v274, %v319
        %v347 = vmul.f32 %v274, %v323
        %v348 = vmul.f32 %v279, %v311
        %v349 = vmul.f32 %v279, %v315
        %v350 = vmul.f32 %v279, %v319
        %v351 = vmul.f32 %v279, %v323
        %v352 = vmul.f32 %v284, %v311
        %v353 = vmul.f32 %v284, %v315
        %v354 = vmul.f32 %v284, %v319
        %v355 = vmul.f32 %v284, %v323
        %356 = vset.pattern.permute.xlu0 1
        %357 = vperm.xlu0 %356, %v228
        %v358 = vpop.permute.xlu0 %357
        %360 = vset.pattern.permute.xlu0 1
        %361 = vperm.xlu0 %360, %v229
        %v362 = vpop.permute.xlu0 %361
        %364 = vset.pattern.permute.xlu0 1
        %365 = vperm.xlu0 %364, %v230
        %v366 = vpop.permute.xlu0 %365
        %368 = vset.pattern.permute.xlu0 1
        %369 = vperm.xlu0 %368, %v231
        %v370 = vpop.permute.xlu0 %369
        %372 = vset.pattern.permute.xlu0 1
        %373 = vperm.xlu0 %372, %v232
        %v374 = vpop.permute.xlu0 %373
        %376 = vset.pattern.permute.xlu0 1
        %377 = vperm.xlu0 %376, %v233
        %v378 = vpop.permute.xlu0 %377
        %380 = vset.pattern.permute.xlu0 1
        %381 = vperm.xlu0 %380, %v234
        %v382 = vpop.permute.xlu0 %381
        %384 = vset.pattern.permute.xlu0 1
        %385 = vperm.xlu0 %384, %v235
        %v386 = vpop.permute.xlu0 %385
        %v388 = vlaneseq
        %v389 = vshrl.u32 %v388, 7
        %v390 = vsub.s32 1, %v389
        %v391 = vrot.slane %v244, %v390
        %v392 = vlaneseq
        %v393 = vshrl.u32 %v392, 7
        %v394 = vsub.s32 5, %v393
        %v395 = vrot.slane %v244, %v394
        %v396 = vlaneseq
        %v397 = vshrl.u32 %v396, 7
        %v398 = vsub.s32 1, %v397
        %v399 = vrot.slane %v245, %v398
        %v400 = vlaneseq
        %v401 = vshrl.u32 %v400, 7
        %v402 = vsub.s32 5, %v401
        %v403 = vrot.slane %v245, %v402
        %v408 = vlaneseq
        %v409 = vshrl.u32 %v408, 7
        %v410 = vsub.s32 1, %v409
        %v411 = vrot.slane %v391, %v410
        %v412 = vlaneseq
        %v413 = vshrl.u32 %v412, 7
        %v414 = vsub.s32 1, %v413
        %v415 = vrot.slane %v395, %v414
        %v416 = vlaneseq
        %v417 = vshrl.u32 %v416, 7
        %v418 = vsub.s32 1, %v417
        %v419 = vrot.slane %v399, %v418
        %v420 = vlaneseq
        %v421 = vshrl.u32 %v420, 7
        %v422 = vsub.s32 1, %v421
        %v423 = vrot.slane %v403, %v422
        %v424 = vmul.f32 %v358, %v411
        %v425 = vmul.f32 %v358, %v415
        %v426 = vmul.f32 %v358, %v419
        %v427 = vmul.f32 %v358, %v423
        %v428 = vmul.f32 %v362, %v411
        %v429 = vmul.f32 %v362, %v415
        %v430 = vmul.f32 %v362, %v419
        %v431 = vmul.f32 %v362, %v423
        %v432 = vmul.f32 %v366, %v411
        %v433 = vmul.f32 %v366, %v415
        %v434 = vmul.f32 %v366, %v419
        %v435 = vmul.f32 %v366, %v423
        %v436 = vmul.f32 %v370, %v411
        %v437 = vmul.f32 %v370, %v415
        %v438 = vmul.f32 %v370, %v419
        %v439 = vmul.f32 %v370, %v423
        %v440 = vmul.f32 %v374, %v411
        %v441 = vmul.f32 %v374, %v415
        %v442 = vmul.f32 %v374, %v419
        %v443 = vmul.f32 %v374, %v423
        %v444 = vmul.f32 %v378, %v411
        %v445 = vmul.f32 %v378, %v415
        %v446 = vmul.f32 %v378, %v419
        %v447 = vmul.f32 %v378, %v423
        %v448 = vmul.f32 %v382, %v411
        %v449 = vmul.f32 %v382, %v415
        %v450 = vmul.f32 %v382, %v419
        %v451 = vmul.f32 %v382, %v423
        %v452 = vmul.f32 %v386, %v411
        %v453 = vmul.f32 %v386, %v415
        %v454 = vmul.f32 %v386, %v419
        %v455 = vmul.f32 %v386, %v423
        %v456 = vadd.f32 %v324, %v424
        %v457 = vadd.f32 %v325, %v425
        %v458 = vadd.f32 %v326, %v426
        %v459 = vadd.f32 %v327, %v427
        %v460 = vadd.f32 %v328, %v428
        %v461 = vadd.f32 %v329, %v429
        %v462 = vadd.f32 %v330, %v430
        %v463 = vadd.f32 %v331, %v431
        %v464 = vadd.f32 %v332, %v432
        %v465 = vadd.f32 %v333, %v433
        %v466 = vadd.f32 %v334, %v434
        %v467 = vadd.f32 %v335, %v435
        %v468 = vadd.f32 %v336, %v436
        %v469 = vadd.f32 %v337, %v437
        %v470 = vadd.f32 %v338, %v438
        %v471 = vadd.f32 %v339, %v439
        %v472 = vadd.f32 %v340, %v440
        %v473 = vadd.f32 %v341, %v441
        %v474 = vadd.f32 %v342, %v442
        %v475 = vadd.f32 %v343, %v443
        %v476 = vadd.f32 %v344, %v444
        %v477 = vadd.f32 %v345, %v445
        %v478 = vadd.f32 %v346, %v446
        %v479 = vadd.f32 %v347, %v447
        %v480 = vadd.f32 %v348, %v448
        %v481 = vadd.f32 %v349, %v449
        %v482 = vadd.f32 %v350, %v450
        %v483 = vadd.f32 %v351, %v451
        %v484 = vadd.f32 %v352, %v452
        %v485 = vadd.f32 %v353, %v453
        %v486 = vadd.f32 %v354, %v454
        %v487 = vadd.f32 %v355, %v455
        %488 = vset.pattern.permute.xlu0 2
        %489 = vperm.xlu0 %488, %v228
        %v490 = vpop.permute.xlu0 %489
        %492 = vset.pattern.permute.xlu0 2
        %493 = vperm.xlu0 %492, %v229
        %v494 = vpop.permute.xlu0 %493
        %496 = vset.pattern.permute.xlu0 2
        %497 = vperm.xlu0 %496, %v230
        %v498 = vpop.permute.xlu0 %497
        %500 = vset.pattern.permute.xlu0 2
        %501 = vperm.xlu0 %500, %v231
        %v502 = vpop.permute.xlu0 %501
        %504 = vset.pattern.permute.xlu0 2
        %505 = vperm.xlu0 %504, %v232
        %v506 = vpop.permute.xlu0 %505
        %508 = vset.pattern.permute.xlu0 2
        %509 = vperm.xlu0 %508, %v233
        %v510 = vpop.permute.xlu0 %509
        %512 = vset.pattern.permute.xlu0 2
        %513 = vperm.xlu0 %512, %v234
        %v514 = vpop.permute.xlu0 %513
        %516 = vset.pattern.permute.xlu0 2
        %517 = vperm.xlu0 %516, %v235
        %v518 = vpop.permute.xlu0 %517
        %v520 = vlaneseq
        %v521 = vshrl.u32 %v520, 7
        %v522 = vsub.s32 2, %v521
        %v523 = vrot.slane %v244, %v522
        %v524 = vlaneseq
        %v525 = vshrl.u32 %v524, 7
        %v526 = vsub.s32 6, %v525
        %v527 = vrot.slane %v244, %v526
        %v528 = vlaneseq
        %v529 = vshrl.u32 %v528, 7
        %v530 = vsub.s32 2, %v529
        %v531 = vrot.slane %v245, %v530
        %v532 = vlaneseq
        %v533 = vshrl.u32 %v532, 7
        %v534 = vsub.s32 6, %v533
        %v535 = vrot.slane %v245, %v534
        %v540 = vlaneseq
        %v541 = vshrl.u32 %v540, 7
        %v542 = vsub.s32 2, %v541
        %v543 = vrot.slane %v523, %v542
        %v544 = vlaneseq
        %v545 = vshrl.u32 %v544, 7
        %v546 = vsub.s32 2, %v545
        %v547 = vrot.slane %v527, %v546
        %v548 = vlaneseq
        %v549 = vshrl.u32 %v548, 7
        %v550 = vsub.s32 2, %v549
        %v551 = vrot.slane %v531, %v550
        %v552 = vlaneseq
        %v553 = vshrl.u32 %v552, 7
        %v554 = vsub.s32 2, %v553
        %v555 = vrot.slane %v535, %v554
        %v556 = vmul.f32 %v490, %v543
        %v557 = vmul.f32 %v490, %v547
        %v558 = vmul.f32 %v490, %v551
        %v559 = vmul.f32 %v490, %v555
        %v560 = vmul.f32 %v494, %v543
        %v561 = vmul.f32 %v494, %v547
        %v562 = vmul.f32 %v494, %v551
        %v563 = vmul.f32 %v494, %v555
        %v564 = vmul.f32 %v498, %v543
        %v565 = vmul.f32 %v498, %v547
        %v566 = vmul.f32 %v498, %v551
        %v567 = vmul.f32 %v498, %v555
        %v568 = vmul.f32 %v502, %v543
        %v569 = vmul.f32 %v502, %v547
        %v570 = vmul.f32 %v502, %v551
        %v571 = vmul.f32 %v502, %v555
        %v572 = vmul.f32 %v506, %v543
        %v573 = vmul.f32 %v506, %v547
        %v574 = vmul.f32 %v506, %v551
        %v575 = vmul.f32 %v506, %v555
        %v576 = vmul.f32 %v510, %v543
        %v577 = vmul.f32 %v510, %v547
        %v578 = vmul.f32 %v510, %v551
        %v579 = vmul.f32 %v510, %v555
        %v580 = vmul.f32 %v514, %v543
        %v581 = vmul.f32 %v514, %v547
        %v582 = vmul.f32 %v514, %v551
        %v583 = vmul.f32 %v514, %v555
        %v584 = vmul.f32 %v518, %v543
        %v585 = vmul.f32 %v518, %v547
        %v586 = vmul.f32 %v518, %v551
        %v587 = vmul.f32 %v518, %v555
        %v588 = vadd.f32 %v456, %v556
        %v589 = vadd.f32 %v457, %v557
        %v590 = vadd.f32 %v458, %v558
        %v591 = vadd.f32 %v459, %v559
        %v592 = vadd.f32 %v460, %v560
        %v593 = vadd.f32 %v461, %v561
        %v594 = vadd.f32 %v462, %v562
        %v595 = vadd.f32 %v463, %v563
        %v596 = vadd.f32 %v464, %v564
        %v597 = vadd.f32 %v465, %v565
        %v598 = vadd.f32 %v466, %v566
        %v599 = vadd.f32 %v467, %v567
        %v600 = vadd.f32 %v468, %v568
        %v601 = vadd.f32 %v469, %v569
        %v602 = vadd.f32 %v470, %v570
        %v603 = vadd.f32 %v471, %v571
        %v604 = vadd.f32 %v472, %v572
        %v605 = vadd.f32 %v473, %v573
        %v606 = vadd.f32 %v474, %v574
        %v607 = vadd.f32 %v475, %v575
        %v608 = vadd.f32 %v476, %v576
        %v609 = vadd.f32 %v477, %v577
        %v610 = vadd.f32 %v478, %v578
        %v611 = vadd.f32 %v479, %v579
        %v612 = vadd.f32 %v480, %v580
        %v613 = vadd.f32 %v481, %v581
        %v614 = vadd.f32 %v482, %v582
        %v615 = vadd.f32 %v483, %v583
        %v616 = vadd.f32 %v484, %v584
        %v617 = vadd.f32 %v485, %v585
        %v618 = vadd.f32 %v486, %v586
        %v619 = vadd.f32 %v487, %v587
        %621 = vset.pattern.permute.xlu0 0
        %622 = vperm.xlu0 %621, %v236
        %v623 = vpop.permute.xlu0 %622
        %626 = vset.pattern.permute.xlu0 0
        %627 = vperm.xlu0 %626, %v237
        %v628 = vpop.permute.xlu0 %627
        %631 = vset.pattern.permute.xlu0 0
        %632 = vperm.xlu0 %631, %v238
        %v633 = vpop.permute.xlu0 %632
        %636 = vset.pattern.permute.xlu0 0
        %637 = vperm.xlu0 %636, %v239
        %v638 = vpop.permute.xlu0 %637
        %641 = vset.pattern.permute.xlu0 0
        %642 = vperm.xlu0 %641, %v240
        %v643 = vpop.permute.xlu0 %642
        %646 = vset.pattern.permute.xlu0 0
        %647 = vperm.xlu0 %646, %v241
        %v648 = vpop.permute.xlu0 %647
        %651 = vset.pattern.permute.xlu0 0
        %652 = vperm.xlu0 %651, %v242
        %v653 = vpop.permute.xlu0 %652
        %656 = vset.pattern.permute.xlu0 0
        %657 = vperm.xlu0 %656, %v243
        %v658 = vpop.permute.xlu0 %657
        %v660 = vadd.f32 %v588, %v623
        %v661 = vadd.f32 %v589, %v623
        %v662 = vadd.f32 %v590, %v623
        %v663 = vadd.f32 %v591, %v623
        %v664 = vadd.f32 %v592, %v628
        %v665 = vadd.f32 %v593, %v628
        %v666 = vadd.f32 %v594, %v628
        %v667 = vadd.f32 %v595, %v628
        %v668 = vadd.f32 %v596, %v633
        %v669 = vadd.f32 %v597, %v633
        %v670 = vadd.f32 %v598, %v633
        %v671 = vadd.f32 %v599, %v633
        %v672 = vadd.f32 %v600, %v638
        %v673 = vadd.f32 %v601, %v638
        %v674 = vadd.f32 %v602, %v638
        %v675 = vadd.f32 %v603, %v638
        %v676 = vadd.f32 %v604, %v643
        %v677 = vadd.f32 %v605, %v643
        %v678 = vadd.f32 %v606, %v643
        %v679 = vadd.f32 %v607, %v643
        %v680 = vadd.f32 %v608, %v648
        %v681 = vadd.f32 %v609, %v648
        %v682 = vadd.f32 %v610, %v648
        %v683 = vadd.f32 %v611, %v648
        %v684 = vadd.f32 %v612, %v653
        %v685 = vadd.f32 %v613, %v653
        %v686 = vadd.f32 %v614, %v653
        %v687 = vadd.f32 %v615, %v653
        %v688 = vadd.f32 %v616, %v658
        %v689 = vadd.f32 %v617, %v658
        %v690 = vadd.f32 %v618, %v658
        %v691 = vadd.f32 %v619, %v658
        %v692 = vmax.f32 %v660, 0.0
        %v693 = vmax.f32 %v661, 0.0
        %v694 = vmax.f32 %v662, 0.0
        %v695 = vmax.f32 %v663, 0.0
        %v696 = vmax.f32 %v664, 0.0
        %v697 = vmax.f32 %v665, 0.0
        %v698 = vmax.f32 %v666, 0.0
        %v699 = vmax.f32 %v667, 0.0
        %v700 = vmax.f32 %v668, 0.0
        %v701 = vmax.f32 %v669, 0.0
        %v702 = vmax.f32 %v670, 0.0
        %v703 = vmax.f32 %v671, 0.0
        %v704 = vmax.f32 %v672, 0.0
        %v705 = vmax.f32 %v673, 0.0
        %v706 = vmax.f32 %v674, 0.0
        %v707 = vmax.f32 %v675, 0.0
        %v708 = vmax.f32 %v676, 0.0
        %v709 = vmax.f32 %v677, 0.0
        %v710 = vmax.f32 %v678, 0.0
        %v711 = vmax.f32 %v679, 0.0
        %v712 = vmax.f32 %v680, 0.0
        %v713 = vmax.f32 %v681, 0.0
        %v714 = vmax.f32 %v682, 0.0
        %v715 = vmax.f32 %v683, 0.0
        %v716 = vmax.f32 %v684, 0.0
        %v717 = vmax.f32 %v685, 0.0
        %v718 = vmax.f32 %v686, 0.0
        %v719 = vmax.f32 %v687, 0.0
        %v720 = vmax.f32 %v688, 0.0
        %v721 = vmax.f32 %v689, 0.0
        %v722 = vmax.f32 %v690, 0.0
        %v723 = vmax.f32 %v691, 0.0
        %v724 = vadd.f32 %v692, %v693
        %v725 = vadd.f32 %v724, %v694
        %v726 = vadd.f32 %v725, %v695
        %727 = vadd.xlane.f32.xlu0 %v726
        %v728 = vpop.xlane.xlu0 %727
        %v729 = vadd.f32 %v696, %v697
        %v730 = vadd.f32 %v729, %v698
        %v731 = vadd.f32 %v730, %v699
        %732 = vadd.xlane.f32.xlu0 %v731
        %v733 = vpop.xlane.xlu0 %732
        %v734 = vadd.f32 %v700, %v701
        %v735 = vadd.f32 %v734, %v702
        %v736 = vadd.f32 %v735, %v703
        %737 = vadd.xlane.f32.xlu0 %v736
        %v738 = vpop.xlane.xlu0 %737
        %v739 = vadd.f32 %v704, %v705
        %v740 = vadd.f32 %v739, %v706
        %v741 = vadd.f32 %v740, %v707
        %742 = vadd.xlane.f32.xlu0 %v741
        %v743 = vpop.xlane.xlu0 %742
        %v744 = vadd.f32 %v708, %v709
        %v745 = vadd.f32 %v744, %v710
        %v746 = vadd.f32 %v745, %v711
        %747 = vadd.xlane.f32.xlu0 %v746
        %v748 = vpop.xlane.xlu0 %747
        %v749 = vadd.f32 %v712, %v713
        %v750 = vadd.f32 %v749, %v714
        %v751 = vadd.f32 %v750, %v715
        %752 = vadd.xlane.f32.xlu0 %v751
        %v753 = vpop.xlane.xlu0 %752
        %v754 = vadd.f32 %v716, %v717
        %v755 = vadd.f32 %v754, %v718
        %v756 = vadd.f32 %v755, %v719
        %757 = vadd.xlane.f32.xlu0 %v756
        %v758 = vpop.xlane.xlu0 %757
        %v759 = vadd.f32 %v720, %v721
        %v760 = vadd.f32 %v759, %v722
        %v761 = vadd.f32 %v760, %v723
        %762 = vadd.xlane.f32.xlu0 %v761
        %v763 = vpop.xlane.xlu0 %762
        %s764 = scalar_lea.vmem %s226, 16
        %v765 = vld [vmem:[%s764] sm:$0x77]
        %v766 = vld [vmem:[%s764 + $0x8] sm:$0x77]
        %v769 = vlaneseq
        %v770 = vshrl.u32 %v769, 7
        %v771 = vsub.s32 0, %v770
        %v772 = vrot.slane %v765, %v771
        %v773 = vlaneseq
        %v774 = vshrl.u32 %v773, 7
        %v775 = vsub.s32 4, %v774
        %v776 = vrot.slane %v765, %v775
        %v777 = vlaneseq
        %v778 = vshrl.u32 %v777, 7
        %v779 = vsub.s32 0, %v778
        %v780 = vrot.slane %v766, %v779
        %v781 = vlaneseq
        %v782 = vshrl.u32 %v781, 7
        %v783 = vsub.s32 4, %v782
        %v784 = vrot.slane %v766, %v783
        %v789 = vlaneseq
        %v790 = vshrl.u32 %v789, 7
        %v791 = vsub.s32 0, %v790
        %v792 = vrot.slane %v772, %v791
        %v793 = vlaneseq
        %v794 = vshrl.u32 %v793, 7
        %v795 = vsub.s32 0, %v794
        %v796 = vrot.slane %v776, %v795
        %v797 = vlaneseq
        %v798 = vshrl.u32 %v797, 7
        %v799 = vsub.s32 0, %v798
        %v800 = vrot.slane %v780, %v799
        %v801 = vlaneseq
        %v802 = vshrl.u32 %v801, 7
        %v803 = vsub.s32 0, %v802
        %v804 = vrot.slane %v784, %v803
        %v805 = vmul.f32 %v249, %v792
        %v806 = vmul.f32 %v249, %v796
        %v807 = vmul.f32 %v249, %v800
        %v808 = vmul.f32 %v249, %v804
        %v809 = vmul.f32 %v254, %v792
        %v810 = vmul.f32 %v254, %v796
        %v811 = vmul.f32 %v254, %v800
        %v812 = vmul.f32 %v254, %v804
        %v813 = vmul.f32 %v259, %v792
        %v814 = vmul.f32 %v259, %v796
        %v815 = vmul.f32 %v259, %v800
        %v816 = vmul.f32 %v259, %v804
        %v817 = vmul.f32 %v264, %v792
        %v818 = vmul.f32 %v264, %v796
        %v819 = vmul.f32 %v264, %v800
        %v820 = vmul.f32 %v264, %v804
        %v821 = vmul.f32 %v269, %v792
        %v822 = vmul.f32 %v269, %v796
        %v823 = vmul.f32 %v269, %v800
        %v824 = vmul.f32 %v269, %v804
        %v825 = vmul.f32 %v274, %v792
        %v826 = vmul.f32 %v274, %v796
        %v827 = vmul.f32 %v274, %v800
        %v828 = vmul.f32 %v274, %v804
        %v829 = vmul.f32 %v279, %v792
        %v830 = vmul.f32 %v279, %v796
        %v831 = vmul.f32 %v279, %v800
        %v832 = vmul.f32 %v279, %v804
        %v833 = vmul.f32 %v284, %v792
        %v834 = vmul.f32 %v284, %v796
        %v835 = vmul.f32 %v284, %v800
        %v836 = vmul.f32 %v284, %v804
        %v837 = vlaneseq
        %v838 = vshrl.u32 %v837, 7
        %v839 = vsub.s32 1, %v838
        %v840 = vrot.slane %v765, %v839
        %v841 = vlaneseq
        %v842 = vshrl.u32 %v841, 7
        %v843 = vsub.s32 5, %v842
        %v844 = vrot.slane %v765, %v843
        %v845 = vlaneseq
        %v846 = vshrl.u32 %v845, 7
        %v847 = vsub.s32 1, %v846
        %v848 = vrot.slane %v766, %v847
        %v849 = vlaneseq
        %v850 = vshrl.u32 %v849, 7
        %v851 = vsub.s32 5, %v850
        %v852 = vrot.slane %v766, %v851
        %v857 = vlaneseq
        %v858 = vshrl.u32 %v857, 7
        %v859 = vsub.s32 1, %v858
        %v860 = vrot.slane %v840, %v859
        %v861 = vlaneseq
        %v862 = vshrl.u32 %v861, 7
        %v863 = vsub.s32 1, %v862
        %v864 = vrot.slane %v844, %v863
        %v865 = vlaneseq
        %v866 = vshrl.u32 %v865, 7
        %v867 = vsub.s32 1, %v866
        %v868 = vrot.slane %v848, %v867
        %v869 = vlaneseq
        %v870 = vshrl.u32 %v869, 7
        %v871 = vsub.s32 1, %v870
        %v872 = vrot.slane %v852, %v871
        %v873 = vmul.f32 %v358, %v860
        %v874 = vmul.f32 %v358, %v864
        %v875 = vmul.f32 %v358, %v868
        %v876 = vmul.f32 %v358, %v872
        %v877 = vmul.f32 %v362, %v860
        %v878 = vmul.f32 %v362, %v864
        %v879 = vmul.f32 %v362, %v868
        %v880 = vmul.f32 %v362, %v872
        %v881 = vmul.f32 %v366, %v860
        %v882 = vmul.f32 %v366, %v864
        %v883 = vmul.f32 %v366, %v868
        %v884 = vmul.f32 %v366, %v872
        %v885 = vmul.f32 %v370, %v860
        %v886 = vmul.f32 %v370, %v864
        %v887 = vmul.f32 %v370, %v868
        %v888 = vmul.f32 %v370, %v872
        %v889 = vmul.f32 %v374, %v860
        %v890 = vmul.f32 %v374, %v864
        %v891 = vmul.f32 %v374, %v868
        %v892 = vmul.f32 %v374, %v872
        %v893 = vmul.f32 %v378, %v860
        %v894 = vmul.f32 %v378, %v864
        %v895 = vmul.f32 %v378, %v868
        %v896 = vmul.f32 %v378, %v872
        %v897 = vmul.f32 %v382, %v860
        %v898 = vmul.f32 %v382, %v864
        %v899 = vmul.f32 %v382, %v868
        %v900 = vmul.f32 %v382, %v872
        %v901 = vmul.f32 %v386, %v860
        %v902 = vmul.f32 %v386, %v864
        %v903 = vmul.f32 %v386, %v868
        %v904 = vmul.f32 %v386, %v872
        %v905 = vadd.f32 %v805, %v873
        %v906 = vadd.f32 %v806, %v874
        %v907 = vadd.f32 %v807, %v875
        %v908 = vadd.f32 %v808, %v876
        %v909 = vadd.f32 %v809, %v877
        %v910 = vadd.f32 %v810, %v878
        %v911 = vadd.f32 %v811, %v879
        %v912 = vadd.f32 %v812, %v880
        %v913 = vadd.f32 %v813, %v881
        %v914 = vadd.f32 %v814, %v882
        %v915 = vadd.f32 %v815, %v883
        %v916 = vadd.f32 %v816, %v884
        %v917 = vadd.f32 %v817, %v885
        %v918 = vadd.f32 %v818, %v886
        %v919 = vadd.f32 %v819, %v887
        %v920 = vadd.f32 %v820, %v888
        %v921 = vadd.f32 %v821, %v889
        %v922 = vadd.f32 %v822, %v890
        %v923 = vadd.f32 %v823, %v891
        %v924 = vadd.f32 %v824, %v892
        %v925 = vadd.f32 %v825, %v893
        %v926 = vadd.f32 %v826, %v894
        %v927 = vadd.f32 %v827, %v895
        %v928 = vadd.f32 %v828, %v896
        %v929 = vadd.f32 %v829, %v897
        %v930 = vadd.f32 %v830, %v898
        %v931 = vadd.f32 %v831, %v899
        %v932 = vadd.f32 %v832, %v900
        %v933 = vadd.f32 %v833, %v901
        %v934 = vadd.f32 %v834, %v902
        %v935 = vadd.f32 %v835, %v903
        %v936 = vadd.f32 %v836, %v904
        %v937 = vlaneseq
        %v938 = vshrl.u32 %v937, 7
        %v939 = vsub.s32 2, %v938
        %v940 = vrot.slane %v765, %v939
        %v941 = vlaneseq
        %v942 = vshrl.u32 %v941, 7
        %v943 = vsub.s32 6, %v942
        %v944 = vrot.slane %v765, %v943
        %v945 = vlaneseq
        %v946 = vshrl.u32 %v945, 7
        %v947 = vsub.s32 2, %v946
        %v948 = vrot.slane %v766, %v947
        %v949 = vlaneseq
        %v950 = vshrl.u32 %v949, 7
        %v951 = vsub.s32 6, %v950
        %v952 = vrot.slane %v766, %v951
        %v957 = vlaneseq
        %v958 = vshrl.u32 %v957, 7
        %v959 = vsub.s32 2, %v958
        %v960 = vrot.slane %v940, %v959
        %v961 = vlaneseq
        %v962 = vshrl.u32 %v961, 7
        %v963 = vsub.s32 2, %v962
        %v964 = vrot.slane %v944, %v963
        %v965 = vlaneseq
        %v966 = vshrl.u32 %v965, 7
        %v967 = vsub.s32 2, %v966
        %v968 = vrot.slane %v948, %v967
        %v969 = vlaneseq
        %v970 = vshrl.u32 %v969, 7
        %v971 = vsub.s32 2, %v970
        %v972 = vrot.slane %v952, %v971
        %v973 = vmul.f32 %v490, %v960
        %v974 = vmul.f32 %v490, %v964
        %v975 = vmul.f32 %v490, %v968
        %v976 = vmul.f32 %v490, %v972
        %v977 = vmul.f32 %v494, %v960
        %v978 = vmul.f32 %v494, %v964
        %v979 = vmul.f32 %v494, %v968
        %v980 = vmul.f32 %v494, %v972
        %v981 = vmul.f32 %v498, %v960
        %v982 = vmul.f32 %v498, %v964
        %v983 = vmul.f32 %v498, %v968
        %v984 = vmul.f32 %v498, %v972
        %v985 = vmul.f32 %v502, %v960
        %v986 = vmul.f32 %v502, %v964
        %v987 = vmul.f32 %v502, %v968
        %v988 = vmul.f32 %v502, %v972
        %v989 = vmul.f32 %v506, %v960
        %v990 = vmul.f32 %v506, %v964
        %v991 = vmul.f32 %v506, %v968
        %v992 = vmul.f32 %v506, %v972
        %v993 = vmul.f32 %v510, %v960
        %v994 = vmul.f32 %v510, %v964
        %v995 = vmul.f32 %v510, %v968
        %v996 = vmul.f32 %v510, %v972
        %v997 = vmul.f32 %v514, %v960
        %v998 = vmul.f32 %v514, %v964
        %v999 = vmul.f32 %v514, %v968
        %v1000 = vmul.f32 %v514, %v972
        %v1001 = vmul.f32 %v518, %v960
        %v1002 = vmul.f32 %v518, %v964
        %v1003 = vmul.f32 %v518, %v968
        %v1004 = vmul.f32 %v518, %v972
        %v1005 = vadd.f32 %v905, %v973
        %v1006 = vadd.f32 %v906, %v974
        %v1007 = vadd.f32 %v907, %v975
        %v1008 = vadd.f32 %v908, %v976
        %v1009 = vadd.f32 %v909, %v977
        %v1010 = vadd.f32 %v910, %v978
        %v1011 = vadd.f32 %v911, %v979
        %v1012 = vadd.f32 %v912, %v980
        %v1013 = vadd.f32 %v913, %v981
        %v1014 = vadd.f32 %v914, %v982
        %v1015 = vadd.f32 %v915, %v983
        %v1016 = vadd.f32 %v916, %v984
        %v1017 = vadd.f32 %v917, %v985
        %v1018 = vadd.f32 %v918, %v986
        %v1019 = vadd.f32 %v919, %v987
        %v1020 = vadd.f32 %v920, %v988
        %v1021 = vadd.f32 %v921, %v989
        %v1022 = vadd.f32 %v922, %v990
        %v1023 = vadd.f32 %v923, %v991
        %v1024 = vadd.f32 %v924, %v992
        %v1025 = vadd.f32 %v925, %v993
        %v1026 = vadd.f32 %v926, %v994
        %v1027 = vadd.f32 %v927, %v995
        %v1028 = vadd.f32 %v928, %v996
        %v1029 = vadd.f32 %v929, %v997
        %v1030 = vadd.f32 %v930, %v998
        %v1031 = vadd.f32 %v931, %v999
        %v1032 = vadd.f32 %v932, %v1000
        %v1033 = vadd.f32 %v933, %v1001
        %v1034 = vadd.f32 %v934, %v1002
        %v1035 = vadd.f32 %v935, %v1003
        %v1036 = vadd.f32 %v936, %v1004
        %v1037 = vadd.f32 %v1005, %v623
        %v1038 = vadd.f32 %v1006, %v623
        %v1039 = vadd.f32 %v1007, %v623
        %v1040 = vadd.f32 %v1008, %v623
        %v1041 = vadd.f32 %v1009, %v628
        %v1042 = vadd.f32 %v1010, %v628
        %v1043 = vadd.f32 %v1011, %v628
        %v1044 = vadd.f32 %v1012, %v628
        %v1045 = vadd.f32 %v1013, %v633
        %v1046 = vadd.f32 %v1014, %v633
        %v1047 = vadd.f32 %v1015, %v633
        %v1048 = vadd.f32 %v1016, %v633
        %v1049 = vadd.f32 %v1017, %v638
        %v1050 = vadd.f32 %v1018, %v638
        %v1051 = vadd.f32 %v1019, %v638
        %v1052 = vadd.f32 %v1020, %v638
        %v1053 = vadd.f32 %v1021, %v643
        %v1054 = vadd.f32 %v1022, %v643
        %v1055 = vadd.f32 %v1023, %v643
        %v1056 = vadd.f32 %v1024, %v643
        %v1057 = vadd.f32 %v1025, %v648
        %v1058 = vadd.f32 %v1026, %v648
        %v1059 = vadd.f32 %v1027, %v648
        %v1060 = vadd.f32 %v1028, %v648
        %v1061 = vadd.f32 %v1029, %v653
        %v1062 = vadd.f32 %v1030, %v653
        %v1063 = vadd.f32 %v1031, %v653
        %v1064 = vadd.f32 %v1032, %v653
        %v1065 = vadd.f32 %v1033, %v658
        %v1066 = vadd.f32 %v1034, %v658
        %v1067 = vadd.f32 %v1035, %v658
        %v1068 = vadd.f32 %v1036, %v658
        %v1069 = vmax.f32 %v1037, 0.0
        %v1070 = vmax.f32 %v1038, 0.0
        %v1071 = vmax.f32 %v1039, 0.0
        %v1072 = vmax.f32 %v1040, 0.0
        %v1073 = vmax.f32 %v1041, 0.0
        %v1074 = vmax.f32 %v1042, 0.0
        %v1075 = vmax.f32 %v1043, 0.0
        %v1076 = vmax.f32 %v1044, 0.0
        %v1077 = vmax.f32 %v1045, 0.0
        %v1078 = vmax.f32 %v1046, 0.0
        %v1079 = vmax.f32 %v1047, 0.0
        %v1080 = vmax.f32 %v1048, 0.0
        %v1081 = vmax.f32 %v1049, 0.0
        %v1082 = vmax.f32 %v1050, 0.0
        %v1083 = vmax.f32 %v1051, 0.0
        %v1084 = vmax.f32 %v1052, 0.0
        %v1085 = vmax.f32 %v1053, 0.0
        %v1086 = vmax.f32 %v1054, 0.0
        %v1087 = vmax.f32 %v1055, 0.0
        %v1088 = vmax.f32 %v1056, 0.0
        %v1089 = vmax.f32 %v1057, 0.0
        %v1090 = vmax.f32 %v1058, 0.0
        %v1091 = vmax.f32 %v1059, 0.0
        %v1092 = vmax.f32 %v1060, 0.0
        %v1093 = vmax.f32 %v1061, 0.0
        %v1094 = vmax.f32 %v1062, 0.0
        %v1095 = vmax.f32 %v1063, 0.0
        %v1096 = vmax.f32 %v1064, 0.0
        %v1097 = vmax.f32 %v1065, 0.0
        %v1098 = vmax.f32 %v1066, 0.0
        %v1099 = vmax.f32 %v1067, 0.0
        %v1100 = vmax.f32 %v1068, 0.0
        %v1101 = vadd.f32 %v1069, %v1070
        %v1102 = vadd.f32 %v1101, %v1071
        %v1103 = vadd.f32 %v1102, %v1072
        %1104 = vadd.xlane.f32.xlu0 %v1103
        %v1105 = vpop.xlane.xlu0 %1104
        %v1106 = vadd.f32 %v1073, %v1074
        %v1107 = vadd.f32 %v1106, %v1075
        %v1108 = vadd.f32 %v1107, %v1076
        %1109 = vadd.xlane.f32.xlu0 %v1108
        %v1110 = vpop.xlane.xlu0 %1109
        %v1111 = vadd.f32 %v1077, %v1078
        %v1112 = vadd.f32 %v1111, %v1079
        %v1113 = vadd.f32 %v1112, %v1080
        %1114 = vadd.xlane.f32.xlu0 %v1113
        %v1115 = vpop.xlane.xlu0 %1114
        %v1116 = vadd.f32 %v1081, %v1082
        %v1117 = vadd.f32 %v1116, %v1083
        %v1118 = vadd.f32 %v1117, %v1084
        %1119 = vadd.xlane.f32.xlu0 %v1118
        %v1120 = vpop.xlane.xlu0 %1119
        %v1121 = vadd.f32 %v1085, %v1086
        %v1122 = vadd.f32 %v1121, %v1087
        %v1123 = vadd.f32 %v1122, %v1088
        %1124 = vadd.xlane.f32.xlu0 %v1123
        %v1125 = vpop.xlane.xlu0 %1124
        %v1126 = vadd.f32 %v1089, %v1090
        %v1127 = vadd.f32 %v1126, %v1091
        %v1128 = vadd.f32 %v1127, %v1092
        %1129 = vadd.xlane.f32.xlu0 %v1128
        %v1130 = vpop.xlane.xlu0 %1129
        %v1131 = vadd.f32 %v1093, %v1094
        %v1132 = vadd.f32 %v1131, %v1095
        %v1133 = vadd.f32 %v1132, %v1096
        %1134 = vadd.xlane.f32.xlu0 %v1133
        %v1135 = vpop.xlane.xlu0 %1134
        %v1136 = vadd.f32 %v1097, %v1098
        %v1137 = vadd.f32 %v1136, %v1099
        %v1138 = vadd.f32 %v1137, %v1100
        %1139 = vadd.xlane.f32.xlu0 %v1138
        %v1140 = vpop.xlane.xlu0 %1139
        %s1141 = scalar_lea.vmem %s226, 32
        %v1142 = vld [vmem:[%s1141] sm:$0x77]
        %v1143 = vld [vmem:[%s1141 + $0x8] sm:$0x77]
        %v1146 = vlaneseq
        %v1147 = vshrl.u32 %v1146, 7
        %v1148 = vsub.s32 0, %v1147
        %v1149 = vrot.slane %v1142, %v1148
        %v1150 = vlaneseq
        %v1151 = vshrl.u32 %v1150, 7
        %v1152 = vsub.s32 4, %v1151
        %v1153 = vrot.slane %v1142, %v1152
        %v1154 = vlaneseq
        %v1155 = vshrl.u32 %v1154, 7
        %v1156 = vsub.s32 0, %v1155
        %v1157 = vrot.slane %v1143, %v1156
        %v1158 = vlaneseq
        %v1159 = vshrl.u32 %v1158, 7
        %v1160 = vsub.s32 4, %v1159
        %v1161 = vrot.slane %v1143, %v1160
        %v1166 = vlaneseq
        %v1167 = vshrl.u32 %v1166, 7
        %v1168 = vsub.s32 0, %v1167
        %v1169 = vrot.slane %v1149, %v1168
        %v1170 = vlaneseq
        %v1171 = vshrl.u32 %v1170, 7
        %v1172 = vsub.s32 0, %v1171
        %v1173 = vrot.slane %v1153, %v1172
        %v1174 = vlaneseq
        %v1175 = vshrl.u32 %v1174, 7
        %v1176 = vsub.s32 0, %v1175
        %v1177 = vrot.slane %v1157, %v1176
        %v1178 = vlaneseq
        %v1179 = vshrl.u32 %v1178, 7
        %v1180 = vsub.s32 0, %v1179
        %v1181 = vrot.slane %v1161, %v1180
        %v1182 = vmul.f32 %v249, %v1169
        %v1183 = vmul.f32 %v249, %v1173
        %v1184 = vmul.f32 %v249, %v1177
        %v1185 = vmul.f32 %v249, %v1181
        %v1186 = vmul.f32 %v254, %v1169
        %v1187 = vmul.f32 %v254, %v1173
        %v1188 = vmul.f32 %v254, %v1177
        %v1189 = vmul.f32 %v254, %v1181
        %v1190 = vmul.f32 %v259, %v1169
        %v1191 = vmul.f32 %v259, %v1173
        %v1192 = vmul.f32 %v259, %v1177
        %v1193 = vmul.f32 %v259, %v1181
        %v1194 = vmul.f32 %v264, %v1169
        %v1195 = vmul.f32 %v264, %v1173
        %v1196 = vmul.f32 %v264, %v1177
        %v1197 = vmul.f32 %v264, %v1181
        %v1198 = vmul.f32 %v269, %v1169
        %v1199 = vmul.f32 %v269, %v1173
        %v1200 = vmul.f32 %v269, %v1177
        %v1201 = vmul.f32 %v269, %v1181
        %v1202 = vmul.f32 %v274, %v1169
        %v1203 = vmul.f32 %v274, %v1173
        %v1204 = vmul.f32 %v274, %v1177
        %v1205 = vmul.f32 %v274, %v1181
        %v1206 = vmul.f32 %v279, %v1169
        %v1207 = vmul.f32 %v279, %v1173
        %v1208 = vmul.f32 %v279, %v1177
        %v1209 = vmul.f32 %v279, %v1181
        %v1210 = vmul.f32 %v284, %v1169
        %v1211 = vmul.f32 %v284, %v1173
        %v1212 = vmul.f32 %v284, %v1177
        %v1213 = vmul.f32 %v284, %v1181
        %v1214 = vlaneseq
        %v1215 = vshrl.u32 %v1214, 7
        %v1216 = vsub.s32 1, %v1215
        %v1217 = vrot.slane %v1142, %v1216
        %v1218 = vlaneseq
        %v1219 = vshrl.u32 %v1218, 7
        %v1220 = vsub.s32 5, %v1219
        %v1221 = vrot.slane %v1142, %v1220
        %v1222 = vlaneseq
        %v1223 = vshrl.u32 %v1222, 7
        %v1224 = vsub.s32 1, %v1223
        %v1225 = vrot.slane %v1143, %v1224
        %v1226 = vlaneseq
        %v1227 = vshrl.u32 %v1226, 7
        %v1228 = vsub.s32 5, %v1227
        %v1229 = vrot.slane %v1143, %v1228
        %v1234 = vlaneseq
        %v1235 = vshrl.u32 %v1234, 7
        %v1236 = vsub.s32 1, %v1235
        %v1237 = vrot.slane %v1217, %v1236
        %v1238 = vlaneseq
        %v1239 = vshrl.u32 %v1238, 7
        %v1240 = vsub.s32 1, %v1239
        %v1241 = vrot.slane %v1221, %v1240
        %v1242 = vlaneseq
        %v1243 = vshrl.u32 %v1242, 7
        %v1244 = vsub.s32 1, %v1243
        %v1245 = vrot.slane %v1225, %v1244
        %v1246 = vlaneseq
        %v1247 = vshrl.u32 %v1246, 7
        %v1248 = vsub.s32 1, %v1247
        %v1249 = vrot.slane %v1229, %v1248
        %v1250 = vmul.f32 %v358, %v1237
        %v1251 = vmul.f32 %v358, %v1241
        %v1252 = vmul.f32 %v358, %v1245
        %v1253 = vmul.f32 %v358, %v1249
        %v1254 = vmul.f32 %v362, %v1237
        %v1255 = vmul.f32 %v362, %v1241
        %v1256 = vmul.f32 %v362, %v1245
        %v1257 = vmul.f32 %v362, %v1249
        %v1258 = vmul.f32 %v366, %v1237
        %v1259 = vmul.f32 %v366, %v1241
        %v1260 = vmul.f32 %v366, %v1245
        %v1261 = vmul.f32 %v366, %v1249
        %v1262 = vmul.f32 %v370, %v1237
        %v1263 = vmul.f32 %v370, %v1241
        %v1264 = vmul.f32 %v370, %v1245
        %v1265 = vmul.f32 %v370, %v1249
        %v1266 = vmul.f32 %v374, %v1237
        %v1267 = vmul.f32 %v374, %v1241
        %v1268 = vmul.f32 %v374, %v1245
        %v1269 = vmul.f32 %v374, %v1249
        %v1270 = vmul.f32 %v378, %v1237
        %v1271 = vmul.f32 %v378, %v1241
        %v1272 = vmul.f32 %v378, %v1245
        %v1273 = vmul.f32 %v378, %v1249
        %v1274 = vmul.f32 %v382, %v1237
        %v1275 = vmul.f32 %v382, %v1241
        %v1276 = vmul.f32 %v382, %v1245
        %v1277 = vmul.f32 %v382, %v1249
        %v1278 = vmul.f32 %v386, %v1237
        %v1279 = vmul.f32 %v386, %v1241
        %v1280 = vmul.f32 %v386, %v1245
        %v1281 = vmul.f32 %v386, %v1249
        %v1282 = vadd.f32 %v1182, %v1250
        %v1283 = vadd.f32 %v1183, %v1251
        %v1284 = vadd.f32 %v1184, %v1252
        %v1285 = vadd.f32 %v1185, %v1253
        %v1286 = vadd.f32 %v1186, %v1254
        %v1287 = vadd.f32 %v1187, %v1255
        %v1288 = vadd.f32 %v1188, %v1256
        %v1289 = vadd.f32 %v1189, %v1257
        %v1290 = vadd.f32 %v1190, %v1258
        %v1291 = vadd.f32 %v1191, %v1259
        %v1292 = vadd.f32 %v1192, %v1260
        %v1293 = vadd.f32 %v1193, %v1261
        %v1294 = vadd.f32 %v1194, %v1262
        %v1295 = vadd.f32 %v1195, %v1263
        %v1296 = vadd.f32 %v1196, %v1264
        %v1297 = vadd.f32 %v1197, %v1265
        %v1298 = vadd.f32 %v1198, %v1266
        %v1299 = vadd.f32 %v1199, %v1267
        %v1300 = vadd.f32 %v1200, %v1268
        %v1301 = vadd.f32 %v1201, %v1269
        %v1302 = vadd.f32 %v1202, %v1270
        %v1303 = vadd.f32 %v1203, %v1271
        %v1304 = vadd.f32 %v1204, %v1272
        %v1305 = vadd.f32 %v1205, %v1273
        %v1306 = vadd.f32 %v1206, %v1274
        %v1307 = vadd.f32 %v1207, %v1275
        %v1308 = vadd.f32 %v1208, %v1276
        %v1309 = vadd.f32 %v1209, %v1277
        %v1310 = vadd.f32 %v1210, %v1278
        %v1311 = vadd.f32 %v1211, %v1279
        %v1312 = vadd.f32 %v1212, %v1280
        %v1313 = vadd.f32 %v1213, %v1281
        %v1314 = vlaneseq
        %v1315 = vshrl.u32 %v1314, 7
        %v1316 = vsub.s32 2, %v1315
        %v1317 = vrot.slane %v1142, %v1316
        %v1318 = vlaneseq
        %v1319 = vshrl.u32 %v1318, 7
        %v1320 = vsub.s32 6, %v1319
        %v1321 = vrot.slane %v1142, %v1320
        %v1322 = vlaneseq
        %v1323 = vshrl.u32 %v1322, 7
        %v1324 = vsub.s32 2, %v1323
        %v1325 = vrot.slane %v1143, %v1324
        %v1326 = vlaneseq
        %v1327 = vshrl.u32 %v1326, 7
        %v1328 = vsub.s32 6, %v1327
        %v1329 = vrot.slane %v1143, %v1328
        %v1334 = vlaneseq
        %v1335 = vshrl.u32 %v1334, 7
        %v1336 = vsub.s32 2, %v1335
        %v1337 = vrot.slane %v1317, %v1336
        %v1338 = vlaneseq
        %v1339 = vshrl.u32 %v1338, 7
        %v1340 = vsub.s32 2, %v1339
        %v1341 = vrot.slane %v1321, %v1340
        %v1342 = vlaneseq
        %v1343 = vshrl.u32 %v1342, 7
        %v1344 = vsub.s32 2, %v1343
        %v1345 = vrot.slane %v1325, %v1344
        %v1346 = vlaneseq
        %v1347 = vshrl.u32 %v1346, 7
        %v1348 = vsub.s32 2, %v1347
        %v1349 = vrot.slane %v1329, %v1348
        %v1350 = vmul.f32 %v490, %v1337
        %v1351 = vmul.f32 %v490, %v1341
        %v1352 = vmul.f32 %v490, %v1345
        %v1353 = vmul.f32 %v490, %v1349
        %v1354 = vmul.f32 %v494, %v1337
        %v1355 = vmul.f32 %v494, %v1341
        %v1356 = vmul.f32 %v494, %v1345
        %v1357 = vmul.f32 %v494, %v1349
        %v1358 = vmul.f32 %v498, %v1337
        %v1359 = vmul.f32 %v498, %v1341
        %v1360 = vmul.f32 %v498, %v1345
        %v1361 = vmul.f32 %v498, %v1349
        %v1362 = vmul.f32 %v502, %v1337
        %v1363 = vmul.f32 %v502, %v1341
        %v1364 = vmul.f32 %v502, %v1345
        %v1365 = vmul.f32 %v502, %v1349
        %v1366 = vmul.f32 %v506, %v1337
        %v1367 = vmul.f32 %v506, %v1341
        %v1368 = vmul.f32 %v506, %v1345
        %v1369 = vmul.f32 %v506, %v1349
        %v1370 = vmul.f32 %v510, %v1337
        %v1371 = vmul.f32 %v510, %v1341
        %v1372 = vmul.f32 %v510, %v1345
        %v1373 = vmul.f32 %v510, %v1349
        %v1374 = vmul.f32 %v514, %v1337
        %v1375 = vmul.f32 %v514, %v1341
        %v1376 = vmul.f32 %v514, %v1345
        %v1377 = vmul.f32 %v514, %v1349
        %v1378 = vmul.f32 %v518, %v1337
        %v1379 = vmul.f32 %v518, %v1341
        %v1380 = vmul.f32 %v518, %v1345
        %v1381 = vmul.f32 %v518, %v1349
        %v1382 = vadd.f32 %v1282, %v1350
        %v1383 = vadd.f32 %v1283, %v1351
        %v1384 = vadd.f32 %v1284, %v1352
        %v1385 = vadd.f32 %v1285, %v1353
        %v1386 = vadd.f32 %v1286, %v1354
        %v1387 = vadd.f32 %v1287, %v1355
        %v1388 = vadd.f32 %v1288, %v1356
        %v1389 = vadd.f32 %v1289, %v1357
        %v1390 = vadd.f32 %v1290, %v1358
        %v1391 = vadd.f32 %v1291, %v1359
        %v1392 = vadd.f32 %v1292, %v1360
        %v1393 = vadd.f32 %v1293, %v1361
        %v1394 = vadd.f32 %v1294, %v1362
        %v1395 = vadd.f32 %v1295, %v1363
        %v1396 = vadd.f32 %v1296, %v1364
        %v1397 = vadd.f32 %v1297, %v1365
        %v1398 = vadd.f32 %v1298, %v1366
        %v1399 = vadd.f32 %v1299, %v1367
        %v1400 = vadd.f32 %v1300, %v1368
        %v1401 = vadd.f32 %v1301, %v1369
        %v1402 = vadd.f32 %v1302, %v1370
        %v1403 = vadd.f32 %v1303, %v1371
        %v1404 = vadd.f32 %v1304, %v1372
        %v1405 = vadd.f32 %v1305, %v1373
        %v1406 = vadd.f32 %v1306, %v1374
        %v1407 = vadd.f32 %v1307, %v1375
        %v1408 = vadd.f32 %v1308, %v1376
        %v1409 = vadd.f32 %v1309, %v1377
        %v1410 = vadd.f32 %v1310, %v1378
        %v1411 = vadd.f32 %v1311, %v1379
        %v1412 = vadd.f32 %v1312, %v1380
        %v1413 = vadd.f32 %v1313, %v1381
        %v1414 = vadd.f32 %v1382, %v623
        %v1415 = vadd.f32 %v1383, %v623
        %v1416 = vadd.f32 %v1384, %v623
        %v1417 = vadd.f32 %v1385, %v623
        %v1418 = vadd.f32 %v1386, %v628
        %v1419 = vadd.f32 %v1387, %v628
        %v1420 = vadd.f32 %v1388, %v628
        %v1421 = vadd.f32 %v1389, %v628
        %v1422 = vadd.f32 %v1390, %v633
        %v1423 = vadd.f32 %v1391, %v633
        %v1424 = vadd.f32 %v1392, %v633
        %v1425 = vadd.f32 %v1393, %v633
        %v1426 = vadd.f32 %v1394, %v638
        %v1427 = vadd.f32 %v1395, %v638
        %v1428 = vadd.f32 %v1396, %v638
        %v1429 = vadd.f32 %v1397, %v638
        %v1430 = vadd.f32 %v1398, %v643
        %v1431 = vadd.f32 %v1399, %v643
        %v1432 = vadd.f32 %v1400, %v643
        %v1433 = vadd.f32 %v1401, %v643
        %v1434 = vadd.f32 %v1402, %v648
        %v1435 = vadd.f32 %v1403, %v648
        %v1436 = vadd.f32 %v1404, %v648
        %v1437 = vadd.f32 %v1405, %v648
        %v1438 = vadd.f32 %v1406, %v653
        %v1439 = vadd.f32 %v1407, %v653
        %v1440 = vadd.f32 %v1408, %v653
        %v1441 = vadd.f32 %v1409, %v653
        %v1442 = vadd.f32 %v1410, %v658
        %v1443 = vadd.f32 %v1411, %v658
        %v1444 = vadd.f32 %v1412, %v658
        %v1445 = vadd.f32 %v1413, %v658
        %v1446 = vmax.f32 %v1414, 0.0
        %v1447 = vmax.f32 %v1415, 0.0
        %v1448 = vmax.f32 %v1416, 0.0
        %v1449 = vmax.f32 %v1417, 0.0
        %v1450 = vmax.f32 %v1418, 0.0
        %v1451 = vmax.f32 %v1419, 0.0
        %v1452 = vmax.f32 %v1420, 0.0
        %v1453 = vmax.f32 %v1421, 0.0
        %v1454 = vmax.f32 %v1422, 0.0
        %v1455 = vmax.f32 %v1423, 0.0
        %v1456 = vmax.f32 %v1424, 0.0
        %v1457 = vmax.f32 %v1425, 0.0
        %v1458 = vmax.f32 %v1426, 0.0
        %v1459 = vmax.f32 %v1427, 0.0
        %v1460 = vmax.f32 %v1428, 0.0
        %v1461 = vmax.f32 %v1429, 0.0
        %v1462 = vmax.f32 %v1430, 0.0
        %v1463 = vmax.f32 %v1431, 0.0
        %v1464 = vmax.f32 %v1432, 0.0
        %v1465 = vmax.f32 %v1433, 0.0
        %v1466 = vmax.f32 %v1434, 0.0
        %v1467 = vmax.f32 %v1435, 0.0
        %v1468 = vmax.f32 %v1436, 0.0
        %v1469 = vmax.f32 %v1437, 0.0
        %v1470 = vmax.f32 %v1438, 0.0
        %v1471 = vmax.f32 %v1439, 0.0
        %v1472 = vmax.f32 %v1440, 0.0
        %v1473 = vmax.f32 %v1441, 0.0
        %v1474 = vmax.f32 %v1442, 0.0
        %v1475 = vmax.f32 %v1443, 0.0
        %v1476 = vmax.f32 %v1444, 0.0
        %v1477 = vmax.f32 %v1445, 0.0
        %v1478 = vadd.f32 %v1446, %v1447
        %v1479 = vadd.f32 %v1478, %v1448
        %v1480 = vadd.f32 %v1479, %v1449
        %1481 = vadd.xlane.f32.xlu0 %v1480
        %v1482 = vpop.xlane.xlu0 %1481
        %v1483 = vadd.f32 %v1450, %v1451
        %v1484 = vadd.f32 %v1483, %v1452
        %v1485 = vadd.f32 %v1484, %v1453
        %1486 = vadd.xlane.f32.xlu0 %v1485
        %v1487 = vpop.xlane.xlu0 %1486
        %v1488 = vadd.f32 %v1454, %v1455
        %v1489 = vadd.f32 %v1488, %v1456
        %v1490 = vadd.f32 %v1489, %v1457
        %1491 = vadd.xlane.f32.xlu0 %v1490
        %v1492 = vpop.xlane.xlu0 %1491
        %v1493 = vadd.f32 %v1458, %v1459
        %v1494 = vadd.f32 %v1493, %v1460
        %v1495 = vadd.f32 %v1494, %v1461
        %1496 = vadd.xlane.f32.xlu0 %v1495
        %v1497 = vpop.xlane.xlu0 %1496
        %v1498 = vadd.f32 %v1462, %v1463
        %v1499 = vadd.f32 %v1498, %v1464
        %v1500 = vadd.f32 %v1499, %v1465
        %1501 = vadd.xlane.f32.xlu0 %v1500
        %v1502 = vpop.xlane.xlu0 %1501
        %v1503 = vadd.f32 %v1466, %v1467
        %v1504 = vadd.f32 %v1503, %v1468
        %v1505 = vadd.f32 %v1504, %v1469
        %1506 = vadd.xlane.f32.xlu0 %v1505
        %v1507 = vpop.xlane.xlu0 %1506
        %v1508 = vadd.f32 %v1470, %v1471
        %v1509 = vadd.f32 %v1508, %v1472
        %v1510 = vadd.f32 %v1509, %v1473
        %1511 = vadd.xlane.f32.xlu0 %v1510
        %v1512 = vpop.xlane.xlu0 %1511
        %v1513 = vadd.f32 %v1474, %v1475
        %v1514 = vadd.f32 %v1513, %v1476
        %v1515 = vadd.f32 %v1514, %v1477
        %1516 = vadd.xlane.f32.xlu0 %v1515
        %v1517 = vpop.xlane.xlu0 %1516
        %s1518 = scalar_lea.vmem %s226, 48
        %v1519 = vld [vmem:[%s1518] sm:$0x77]
        %v1520 = vld [vmem:[%s1518 + $0x8] sm:$0x77]
        %v1523 = vlaneseq
        %v1524 = vshrl.u32 %v1523, 7
        %v1525 = vsub.s32 0, %v1524
        %v1526 = vrot.slane %v1519, %v1525
        %v1527 = vlaneseq
        %v1528 = vshrl.u32 %v1527, 7
        %v1529 = vsub.s32 4, %v1528
        %v1530 = vrot.slane %v1519, %v1529
        %v1531 = vlaneseq
        %v1532 = vshrl.u32 %v1531, 7
        %v1533 = vsub.s32 0, %v1532
        %v1534 = vrot.slane %v1520, %v1533
        %v1535 = vlaneseq
        %v1536 = vshrl.u32 %v1535, 7
        %v1537 = vsub.s32 4, %v1536
        %v1538 = vrot.slane %v1520, %v1537
        %v1543 = vlaneseq
        %v1544 = vshrl.u32 %v1543, 7
        %v1545 = vsub.s32 0, %v1544
        %v1546 = vrot.slane %v1526, %v1545
        %v1547 = vlaneseq
        %v1548 = vshrl.u32 %v1547, 7
        %v1549 = vsub.s32 0, %v1548
        %v1550 = vrot.slane %v1530, %v1549
        %v1551 = vlaneseq
        %v1552 = vshrl.u32 %v1551, 7
        %v1553 = vsub.s32 0, %v1552
        %v1554 = vrot.slane %v1534, %v1553
        %v1555 = vlaneseq
        %v1556 = vshrl.u32 %v1555, 7
        %v1557 = vsub.s32 0, %v1556
        %v1558 = vrot.slane %v1538, %v1557
        %v1559 = vmul.f32 %v249, %v1546
        %v1560 = vmul.f32 %v249, %v1550
        %v1561 = vmul.f32 %v249, %v1554
        %v1562 = vmul.f32 %v249, %v1558
        %v1563 = vmul.f32 %v254, %v1546
        %v1564 = vmul.f32 %v254, %v1550
        %v1565 = vmul.f32 %v254, %v1554
        %v1566 = vmul.f32 %v254, %v1558
        %v1567 = vmul.f32 %v259, %v1546
        %v1568 = vmul.f32 %v259, %v1550
        %v1569 = vmul.f32 %v259, %v1554
        %v1570 = vmul.f32 %v259, %v1558
        %v1571 = vmul.f32 %v264, %v1546
        %v1572 = vmul.f32 %v264, %v1550
        %v1573 = vmul.f32 %v264, %v1554
        %v1574 = vmul.f32 %v264, %v1558
        %v1575 = vmul.f32 %v269, %v1546
        %v1576 = vmul.f32 %v269, %v1550
        %v1577 = vmul.f32 %v269, %v1554
        %v1578 = vmul.f32 %v269, %v1558
        %v1579 = vmul.f32 %v274, %v1546
        %v1580 = vmul.f32 %v274, %v1550
        %v1581 = vmul.f32 %v274, %v1554
        %v1582 = vmul.f32 %v274, %v1558
        %v1583 = vmul.f32 %v279, %v1546
        %v1584 = vmul.f32 %v279, %v1550
        %v1585 = vmul.f32 %v279, %v1554
        %v1586 = vmul.f32 %v279, %v1558
        %v1587 = vmul.f32 %v284, %v1546
        %v1588 = vmul.f32 %v284, %v1550
        %v1589 = vmul.f32 %v284, %v1554
        %v1590 = vmul.f32 %v284, %v1558
        %v1591 = vlaneseq
        %v1592 = vshrl.u32 %v1591, 7
        %v1593 = vsub.s32 1, %v1592
        %v1594 = vrot.slane %v1519, %v1593
        %v1595 = vlaneseq
        %v1596 = vshrl.u32 %v1595, 7
        %v1597 = vsub.s32 5, %v1596
        %v1598 = vrot.slane %v1519, %v1597
        %v1599 = vlaneseq
        %v1600 = vshrl.u32 %v1599, 7
        %v1601 = vsub.s32 1, %v1600
        %v1602 = vrot.slane %v1520, %v1601
        %v1603 = vlaneseq
        %v1604 = vshrl.u32 %v1603, 7
        %v1605 = vsub.s32 5, %v1604
        %v1606 = vrot.slane %v1520, %v1605
        %v1611 = vlaneseq
        %v1612 = vshrl.u32 %v1611, 7
        %v1613 = vsub.s32 1, %v1612
        %v1614 = vrot.slane %v1594, %v1613
        %v1615 = vlaneseq
        %v1616 = vshrl.u32 %v1615, 7
        %v1617 = vsub.s32 1, %v1616
        %v1618 = vrot.slane %v1598, %v1617
        %v1619 = vlaneseq
        %v1620 = vshrl.u32 %v1619, 7
        %v1621 = vsub.s32 1, %v1620
        %v1622 = vrot.slane %v1602, %v1621
        %v1623 = vlaneseq
        %v1624 = vshrl.u32 %v1623, 7
        %v1625 = vsub.s32 1, %v1624
        %v1626 = vrot.slane %v1606, %v1625
        %v1627 = vmul.f32 %v358, %v1614
        %v1628 = vmul.f32 %v358, %v1618
        %v1629 = vmul.f32 %v358, %v1622
        %v1630 = vmul.f32 %v358, %v1626
        %v1631 = vmul.f32 %v362, %v1614
        %v1632 = vmul.f32 %v362, %v1618
        %v1633 = vmul.f32 %v362, %v1622
        %v1634 = vmul.f32 %v362, %v1626
        %v1635 = vmul.f32 %v366, %v1614
        %v1636 = vmul.f32 %v366, %v1618
        %v1637 = vmul.f32 %v366, %v1622
        %v1638 = vmul.f32 %v366, %v1626
        %v1639 = vmul.f32 %v370, %v1614
        %v1640 = vmul.f32 %v370, %v1618
        %v1641 = vmul.f32 %v370, %v1622
        %v1642 = vmul.f32 %v370, %v1626
        %v1643 = vmul.f32 %v374, %v1614
        %v1644 = vmul.f32 %v374, %v1618
        %v1645 = vmul.f32 %v374, %v1622
        %v1646 = vmul.f32 %v374, %v1626
        %v1647 = vmul.f32 %v378, %v1614
        %v1648 = vmul.f32 %v378, %v1618
        %v1649 = vmul.f32 %v378, %v1622
        %v1650 = vmul.f32 %v378, %v1626
        %v1651 = vmul.f32 %v382, %v1614
        %v1652 = vmul.f32 %v382, %v1618
        %v1653 = vmul.f32 %v382, %v1622
        %v1654 = vmul.f32 %v382, %v1626
        %v1655 = vmul.f32 %v386, %v1614
        %v1656 = vmul.f32 %v386, %v1618
        %v1657 = vmul.f32 %v386, %v1622
        %v1658 = vmul.f32 %v386, %v1626
        %v1659 = vadd.f32 %v1559, %v1627
        %v1660 = vadd.f32 %v1560, %v1628
        %v1661 = vadd.f32 %v1561, %v1629
        %v1662 = vadd.f32 %v1562, %v1630
        %v1663 = vadd.f32 %v1563, %v1631
        %v1664 = vadd.f32 %v1564, %v1632
        %v1665 = vadd.f32 %v1565, %v1633
        %v1666 = vadd.f32 %v1566, %v1634
        %v1667 = vadd.f32 %v1567, %v1635
        %v1668 = vadd.f32 %v1568, %v1636
        %v1669 = vadd.f32 %v1569, %v1637
        %v1670 = vadd.f32 %v1570, %v1638
        %v1671 = vadd.f32 %v1571, %v1639
        %v1672 = vadd.f32 %v1572, %v1640
        %v1673 = vadd.f32 %v1573, %v1641
        %v1674 = vadd.f32 %v1574, %v1642
        %v1675 = vadd.f32 %v1575, %v1643
        %v1676 = vadd.f32 %v1576, %v1644
        %v1677 = vadd.f32 %v1577, %v1645
        %v1678 = vadd.f32 %v1578, %v1646
        %v1679 = vadd.f32 %v1579, %v1647
        %v1680 = vadd.f32 %v1580, %v1648
        %v1681 = vadd.f32 %v1581, %v1649
        %v1682 = vadd.f32 %v1582, %v1650
        %v1683 = vadd.f32 %v1583, %v1651
        %v1684 = vadd.f32 %v1584, %v1652
        %v1685 = vadd.f32 %v1585, %v1653
        %v1686 = vadd.f32 %v1586, %v1654
        %v1687 = vadd.f32 %v1587, %v1655
        %v1688 = vadd.f32 %v1588, %v1656
        %v1689 = vadd.f32 %v1589, %v1657
        %v1690 = vadd.f32 %v1590, %v1658
        %v1691 = vlaneseq
        %v1692 = vshrl.u32 %v1691, 7
        %v1693 = vsub.s32 2, %v1692
        %v1694 = vrot.slane %v1519, %v1693
        %v1695 = vlaneseq
        %v1696 = vshrl.u32 %v1695, 7
        %v1697 = vsub.s32 6, %v1696
        %v1698 = vrot.slane %v1519, %v1697
        %v1699 = vlaneseq
        %v1700 = vshrl.u32 %v1699, 7
        %v1701 = vsub.s32 2, %v1700
        %v1702 = vrot.slane %v1520, %v1701
        %v1703 = vlaneseq
        %v1704 = vshrl.u32 %v1703, 7
        %v1705 = vsub.s32 6, %v1704
        %v1706 = vrot.slane %v1520, %v1705
        %v1711 = vlaneseq
        %v1712 = vshrl.u32 %v1711, 7
        %v1713 = vsub.s32 2, %v1712
        %v1714 = vrot.slane %v1694, %v1713
        %v1715 = vlaneseq
        %v1716 = vshrl.u32 %v1715, 7
        %v1717 = vsub.s32 2, %v1716
        %v1718 = vrot.slane %v1698, %v1717
        %v1719 = vlaneseq
        %v1720 = vshrl.u32 %v1719, 7
        %v1721 = vsub.s32 2, %v1720
        %v1722 = vrot.slane %v1702, %v1721
        %v1723 = vlaneseq
        %v1724 = vshrl.u32 %v1723, 7
        %v1725 = vsub.s32 2, %v1724
        %v1726 = vrot.slane %v1706, %v1725
        %v1727 = vmul.f32 %v490, %v1714
        %v1728 = vmul.f32 %v490, %v1718
        %v1729 = vmul.f32 %v490, %v1722
        %v1730 = vmul.f32 %v490, %v1726
        %v1731 = vmul.f32 %v494, %v1714
        %v1732 = vmul.f32 %v494, %v1718
        %v1733 = vmul.f32 %v494, %v1722
        %v1734 = vmul.f32 %v494, %v1726
        %v1735 = vmul.f32 %v498, %v1714
        %v1736 = vmul.f32 %v498, %v1718
        %v1737 = vmul.f32 %v498, %v1722
        %v1738 = vmul.f32 %v498, %v1726
        %v1739 = vmul.f32 %v502, %v1714
        %v1740 = vmul.f32 %v502, %v1718
        %v1741 = vmul.f32 %v502, %v1722
        %v1742 = vmul.f32 %v502, %v1726
        %v1743 = vmul.f32 %v506, %v1714
        %v1744 = vmul.f32 %v506, %v1718
        %v1745 = vmul.f32 %v506, %v1722
        %v1746 = vmul.f32 %v506, %v1726
        %v1747 = vmul.f32 %v510, %v1714
        %v1748 = vmul.f32 %v510, %v1718
        %v1749 = vmul.f32 %v510, %v1722
        %v1750 = vmul.f32 %v510, %v1726
        %v1751 = vmul.f32 %v514, %v1714
        %v1752 = vmul.f32 %v514, %v1718
        %v1753 = vmul.f32 %v514, %v1722
        %v1754 = vmul.f32 %v514, %v1726
        %v1755 = vmul.f32 %v518, %v1714
        %v1756 = vmul.f32 %v518, %v1718
        %v1757 = vmul.f32 %v518, %v1722
        %v1758 = vmul.f32 %v518, %v1726
        %v1759 = vadd.f32 %v1659, %v1727
        %v1760 = vadd.f32 %v1660, %v1728
        %v1761 = vadd.f32 %v1661, %v1729
        %v1762 = vadd.f32 %v1662, %v1730
        %v1763 = vadd.f32 %v1663, %v1731
        %v1764 = vadd.f32 %v1664, %v1732
        %v1765 = vadd.f32 %v1665, %v1733
        %v1766 = vadd.f32 %v1666, %v1734
        %v1767 = vadd.f32 %v1667, %v1735
        %v1768 = vadd.f32 %v1668, %v1736
        %v1769 = vadd.f32 %v1669, %v1737
        %v1770 = vadd.f32 %v1670, %v1738
        %v1771 = vadd.f32 %v1671, %v1739
        %v1772 = vadd.f32 %v1672, %v1740
        %v1773 = vadd.f32 %v1673, %v1741
        %v1774 = vadd.f32 %v1674, %v1742
        %v1775 = vadd.f32 %v1675, %v1743
        %v1776 = vadd.f32 %v1676, %v1744
        %v1777 = vadd.f32 %v1677, %v1745
        %v1778 = vadd.f32 %v1678, %v1746
        %v1779 = vadd.f32 %v1679, %v1747
        %v1780 = vadd.f32 %v1680, %v1748
        %v1781 = vadd.f32 %v1681, %v1749
        %v1782 = vadd.f32 %v1682, %v1750
        %v1783 = vadd.f32 %v1683, %v1751
        %v1784 = vadd.f32 %v1684, %v1752
        %v1785 = vadd.f32 %v1685, %v1753
        %v1786 = vadd.f32 %v1686, %v1754
        %v1787 = vadd.f32 %v1687, %v1755
        %v1788 = vadd.f32 %v1688, %v1756
        %v1789 = vadd.f32 %v1689, %v1757
        %v1790 = vadd.f32 %v1690, %v1758
        %v1791 = vadd.f32 %v1759, %v623
        %v1792 = vadd.f32 %v1760, %v623
        %v1793 = vadd.f32 %v1761, %v623
        %v1794 = vadd.f32 %v1762, %v623
        %v1795 = vadd.f32 %v1763, %v628
        %v1796 = vadd.f32 %v1764, %v628
        %v1797 = vadd.f32 %v1765, %v628
        %v1798 = vadd.f32 %v1766, %v628
        %v1799 = vadd.f32 %v1767, %v633
        %v1800 = vadd.f32 %v1768, %v633
        %v1801 = vadd.f32 %v1769, %v633
        %v1802 = vadd.f32 %v1770, %v633
        %v1803 = vadd.f32 %v1771, %v638
        %v1804 = vadd.f32 %v1772, %v638
        %v1805 = vadd.f32 %v1773, %v638
        %v1806 = vadd.f32 %v1774, %v638
        %v1807 = vadd.f32 %v1775, %v643
        %v1808 = vadd.f32 %v1776, %v643
        %v1809 = vadd.f32 %v1777, %v643
        %v1810 = vadd.f32 %v1778, %v643
        %v1811 = vadd.f32 %v1779, %v648
        %v1812 = vadd.f32 %v1780, %v648
        %v1813 = vadd.f32 %v1781, %v648
        %v1814 = vadd.f32 %v1782, %v648
        %v1815 = vadd.f32 %v1783, %v653
        %v1816 = vadd.f32 %v1784, %v653
        %v1817 = vadd.f32 %v1785, %v653
        %v1818 = vadd.f32 %v1786, %v653
        %v1819 = vadd.f32 %v1787, %v658
        %v1820 = vadd.f32 %v1788, %v658
        %v1821 = vadd.f32 %v1789, %v658
        %v1822 = vadd.f32 %v1790, %v658
        %v1823 = vmax.f32 %v1791, 0.0
        %v1824 = vmax.f32 %v1792, 0.0
        %v1825 = vmax.f32 %v1793, 0.0
        %v1826 = vmax.f32 %v1794, 0.0
        %v1827 = vmax.f32 %v1795, 0.0
        %v1828 = vmax.f32 %v1796, 0.0
        %v1829 = vmax.f32 %v1797, 0.0
        %v1830 = vmax.f32 %v1798, 0.0
        %v1831 = vmax.f32 %v1799, 0.0
        %v1832 = vmax.f32 %v1800, 0.0
        %v1833 = vmax.f32 %v1801, 0.0
        %v1834 = vmax.f32 %v1802, 0.0
        %v1835 = vmax.f32 %v1803, 0.0
        %v1836 = vmax.f32 %v1804, 0.0
        %v1837 = vmax.f32 %v1805, 0.0
        %v1838 = vmax.f32 %v1806, 0.0
        %v1839 = vmax.f32 %v1807, 0.0
        %v1840 = vmax.f32 %v1808, 0.0
        %v1841 = vmax.f32 %v1809, 0.0
        %v1842 = vmax.f32 %v1810, 0.0
        %v1843 = vmax.f32 %v1811, 0.0
        %v1844 = vmax.f32 %v1812, 0.0
        %v1845 = vmax.f32 %v1813, 0.0
        %v1846 = vmax.f32 %v1814, 0.0
        %v1847 = vmax.f32 %v1815, 0.0
        %v1848 = vmax.f32 %v1816, 0.0
        %v1849 = vmax.f32 %v1817, 0.0
        %v1850 = vmax.f32 %v1818, 0.0
        %v1851 = vmax.f32 %v1819, 0.0
        %v1852 = vmax.f32 %v1820, 0.0
        %v1853 = vmax.f32 %v1821, 0.0
        %v1854 = vmax.f32 %v1822, 0.0
        %v1855 = vadd.f32 %v1823, %v1824
        %v1856 = vadd.f32 %v1855, %v1825
        %v1857 = vadd.f32 %v1856, %v1826
        %1858 = vadd.xlane.f32.xlu0 %v1857
        %v1859 = vpop.xlane.xlu0 %1858
        %v1860 = vadd.f32 %v1827, %v1828
        %v1861 = vadd.f32 %v1860, %v1829
        %v1862 = vadd.f32 %v1861, %v1830
        %1863 = vadd.xlane.f32.xlu0 %v1862
        %v1864 = vpop.xlane.xlu0 %1863
        %v1865 = vadd.f32 %v1831, %v1832
        %v1866 = vadd.f32 %v1865, %v1833
        %v1867 = vadd.f32 %v1866, %v1834
        %1868 = vadd.xlane.f32.xlu0 %v1867
        %v1869 = vpop.xlane.xlu0 %1868
        %v1870 = vadd.f32 %v1835, %v1836
        %v1871 = vadd.f32 %v1870, %v1837
        %v1872 = vadd.f32 %v1871, %v1838
        %1873 = vadd.xlane.f32.xlu0 %v1872
        %v1874 = vpop.xlane.xlu0 %1873
        %v1875 = vadd.f32 %v1839, %v1840
        %v1876 = vadd.f32 %v1875, %v1841
        %v1877 = vadd.f32 %v1876, %v1842
        %1878 = vadd.xlane.f32.xlu0 %v1877
        %v1879 = vpop.xlane.xlu0 %1878
        %v1880 = vadd.f32 %v1843, %v1844
        %v1881 = vadd.f32 %v1880, %v1845
        %v1882 = vadd.f32 %v1881, %v1846
        %1883 = vadd.xlane.f32.xlu0 %v1882
        %v1884 = vpop.xlane.xlu0 %1883
        %v1885 = vadd.f32 %v1847, %v1848
        %v1886 = vadd.f32 %v1885, %v1849
        %v1887 = vadd.f32 %v1886, %v1850
        %1888 = vadd.xlane.f32.xlu0 %v1887
        %v1889 = vpop.xlane.xlu0 %1888
        %v1890 = vadd.f32 %v1851, %v1852
        %v1891 = vadd.f32 %v1890, %v1853
        %v1892 = vadd.f32 %v1891, %v1854
        %1893 = vadd.xlane.f32.xlu0 %v1892
        %v1894 = vpop.xlane.xlu0 %1893
        %s1895 = scalar_lea.vmem %s226, 64
        %v1896 = vld [vmem:[%s1895] sm:$0x77]
        %v1897 = vld [vmem:[%s1895 + $0x8] sm:$0x77]
        %v1900 = vlaneseq
        %v1901 = vshrl.u32 %v1900, 7
        %v1902 = vsub.s32 0, %v1901
        %v1903 = vrot.slane %v1896, %v1902
        %v1904 = vlaneseq
        %v1905 = vshrl.u32 %v1904, 7
        %v1906 = vsub.s32 4, %v1905
        %v1907 = vrot.slane %v1896, %v1906
        %v1908 = vlaneseq
        %v1909 = vshrl.u32 %v1908, 7
        %v1910 = vsub.s32 0, %v1909
        %v1911 = vrot.slane %v1897, %v1910
        %v1912 = vlaneseq
        %v1913 = vshrl.u32 %v1912, 7
        %v1914 = vsub.s32 4, %v1913
        %v1915 = vrot.slane %v1897, %v1914
        %v1920 = vlaneseq
        %v1921 = vshrl.u32 %v1920, 7
        %v1922 = vsub.s32 0, %v1921
        %v1923 = vrot.slane %v1903, %v1922
        %v1924 = vlaneseq
        %v1925 = vshrl.u32 %v1924, 7
        %v1926 = vsub.s32 0, %v1925
        %v1927 = vrot.slane %v1907, %v1926
        %v1928 = vlaneseq
        %v1929 = vshrl.u32 %v1928, 7
        %v1930 = vsub.s32 0, %v1929
        %v1931 = vrot.slane %v1911, %v1930
        %v1932 = vlaneseq
        %v1933 = vshrl.u32 %v1932, 7
        %v1934 = vsub.s32 0, %v1933
        %v1935 = vrot.slane %v1915, %v1934
        %v1936 = vmul.f32 %v249, %v1923
        %v1937 = vmul.f32 %v249, %v1927
        %v1938 = vmul.f32 %v249, %v1931
        %v1939 = vmul.f32 %v249, %v1935
        %v1940 = vmul.f32 %v254, %v1923
        %v1941 = vmul.f32 %v254, %v1927
        %v1942 = vmul.f32 %v254, %v1931
        %v1943 = vmul.f32 %v254, %v1935
        %v1944 = vmul.f32 %v259, %v1923
        %v1945 = vmul.f32 %v259, %v1927
        %v1946 = vmul.f32 %v259, %v1931
        %v1947 = vmul.f32 %v259, %v1935
        %v1948 = vmul.f32 %v264, %v1923
        %v1949 = vmul.f32 %v264, %v1927
        %v1950 = vmul.f32 %v264, %v1931
        %v1951 = vmul.f32 %v264, %v1935
        %v1952 = vmul.f32 %v269, %v1923
        %v1953 = vmul.f32 %v269, %v1927
        %v1954 = vmul.f32 %v269, %v1931
        %v1955 = vmul.f32 %v269, %v1935
        %v1956 = vmul.f32 %v274, %v1923
        %v1957 = vmul.f32 %v274, %v1927
        %v1958 = vmul.f32 %v274, %v1931
        %v1959 = vmul.f32 %v274, %v1935
        %v1960 = vmul.f32 %v279, %v1923
        %v1961 = vmul.f32 %v279, %v1927
        %v1962 = vmul.f32 %v279, %v1931
        %v1963 = vmul.f32 %v279, %v1935
        %v1964 = vmul.f32 %v284, %v1923
        %v1965 = vmul.f32 %v284, %v1927
        %v1966 = vmul.f32 %v284, %v1931
        %v1967 = vmul.f32 %v284, %v1935
        %v1968 = vlaneseq
        %v1969 = vshrl.u32 %v1968, 7
        %v1970 = vsub.s32 1, %v1969
        %v1971 = vrot.slane %v1896, %v1970
        %v1972 = vlaneseq
        %v1973 = vshrl.u32 %v1972, 7
        %v1974 = vsub.s32 5, %v1973
        %v1975 = vrot.slane %v1896, %v1974
        %v1976 = vlaneseq
        %v1977 = vshrl.u32 %v1976, 7
        %v1978 = vsub.s32 1, %v1977
        %v1979 = vrot.slane %v1897, %v1978
        %v1980 = vlaneseq
        %v1981 = vshrl.u32 %v1980, 7
        %v1982 = vsub.s32 5, %v1981
        %v1983 = vrot.slane %v1897, %v1982
        %v1988 = vlaneseq
        %v1989 = vshrl.u32 %v1988, 7
        %v1990 = vsub.s32 1, %v1989
        %v1991 = vrot.slane %v1971, %v1990
        %v1992 = vlaneseq
        %v1993 = vshrl.u32 %v1992, 7
        %v1994 = vsub.s32 1, %v1993
        %v1995 = vrot.slane %v1975, %v1994
        %v1996 = vlaneseq
        %v1997 = vshrl.u32 %v1996, 7
        %v1998 = vsub.s32 1, %v1997
        %v1999 = vrot.slane %v1979, %v1998
        %v2000 = vlaneseq
        %v2001 = vshrl.u32 %v2000, 7
        %v2002 = vsub.s32 1, %v2001
        %v2003 = vrot.slane %v1983, %v2002
        %v2004 = vmul.f32 %v358, %v1991
        %v2005 = vmul.f32 %v358, %v1995
        %v2006 = vmul.f32 %v358, %v1999
        %v2007 = vmul.f32 %v358, %v2003
        %v2008 = vmul.f32 %v362, %v1991
        %v2009 = vmul.f32 %v362, %v1995
        %v2010 = vmul.f32 %v362, %v1999
        %v2011 = vmul.f32 %v362, %v2003
        %v2012 = vmul.f32 %v366, %v1991
        %v2013 = vmul.f32 %v366, %v1995
        %v2014 = vmul.f32 %v366, %v1999
        %v2015 = vmul.f32 %v366, %v2003
        %v2016 = vmul.f32 %v370, %v1991
        %v2017 = vmul.f32 %v370, %v1995
        %v2018 = vmul.f32 %v370, %v1999
        %v2019 = vmul.f32 %v370, %v2003
        %v2020 = vmul.f32 %v374, %v1991
        %v2021 = vmul.f32 %v374, %v1995
        %v2022 = vmul.f32 %v374, %v1999
        %v2023 = vmul.f32 %v374, %v2003
        %v2024 = vmul.f32 %v378, %v1991
        %v2025 = vmul.f32 %v378, %v1995
        %v2026 = vmul.f32 %v378, %v1999
        %v2027 = vmul.f32 %v378, %v2003
        %v2028 = vmul.f32 %v382, %v1991
        %v2029 = vmul.f32 %v382, %v1995
        %v2030 = vmul.f32 %v382, %v1999
        %v2031 = vmul.f32 %v382, %v2003
        %v2032 = vmul.f32 %v386, %v1991
        %v2033 = vmul.f32 %v386, %v1995
        %v2034 = vmul.f32 %v386, %v1999
        %v2035 = vmul.f32 %v386, %v2003
        %v2036 = vadd.f32 %v1936, %v2004
        %v2037 = vadd.f32 %v1937, %v2005
        %v2038 = vadd.f32 %v1938, %v2006
        %v2039 = vadd.f32 %v1939, %v2007
        %v2040 = vadd.f32 %v1940, %v2008
        %v2041 = vadd.f32 %v1941, %v2009
        %v2042 = vadd.f32 %v1942, %v2010
        %v2043 = vadd.f32 %v1943, %v2011
        %v2044 = vadd.f32 %v1944, %v2012
        %v2045 = vadd.f32 %v1945, %v2013
        %v2046 = vadd.f32 %v1946, %v2014
        %v2047 = vadd.f32 %v1947, %v2015
        %v2048 = vadd.f32 %v1948, %v2016
        %v2049 = vadd.f32 %v1949, %v2017
        %v2050 = vadd.f32 %v1950, %v2018
        %v2051 = vadd.f32 %v1951, %v2019
        %v2052 = vadd.f32 %v1952, %v2020
        %v2053 = vadd.f32 %v1953, %v2021
        %v2054 = vadd.f32 %v1954, %v2022
        %v2055 = vadd.f32 %v1955, %v2023
        %v2056 = vadd.f32 %v1956, %v2024
        %v2057 = vadd.f32 %v1957, %v2025
        %v2058 = vadd.f32 %v1958, %v2026
        %v2059 = vadd.f32 %v1959, %v2027
        %v2060 = vadd.f32 %v1960, %v2028
        %v2061 = vadd.f32 %v1961, %v2029
        %v2062 = vadd.f32 %v1962, %v2030
        %v2063 = vadd.f32 %v1963, %v2031
        %v2064 = vadd.f32 %v1964, %v2032
        %v2065 = vadd.f32 %v1965, %v2033
        %v2066 = vadd.f32 %v1966, %v2034
        %v2067 = vadd.f32 %v1967, %v2035
        %v2068 = vlaneseq
        %v2069 = vshrl.u32 %v2068, 7
        %v2070 = vsub.s32 2, %v2069
        %v2071 = vrot.slane %v1896, %v2070
        %v2072 = vlaneseq
        %v2073 = vshrl.u32 %v2072, 7
        %v2074 = vsub.s32 6, %v2073
        %v2075 = vrot.slane %v1896, %v2074
        %v2076 = vlaneseq
        %v2077 = vshrl.u32 %v2076, 7
        %v2078 = vsub.s32 2, %v2077
        %v2079 = vrot.slane %v1897, %v2078
        %v2080 = vlaneseq
        %v2081 = vshrl.u32 %v2080, 7
        %v2082 = vsub.s32 6, %v2081
        %v2083 = vrot.slane %v1897, %v2082
        %v2088 = vlaneseq
        %v2089 = vshrl.u32 %v2088, 7
        %v2090 = vsub.s32 2, %v2089
        %v2091 = vrot.slane %v2071, %v2090
        %v2092 = vlaneseq
        %v2093 = vshrl.u32 %v2092, 7
        %v2094 = vsub.s32 2, %v2093
        %v2095 = vrot.slane %v2075, %v2094
        %v2096 = vlaneseq
        %v2097 = vshrl.u32 %v2096, 7
        %v2098 = vsub.s32 2, %v2097
        %v2099 = vrot.slane %v2079, %v2098
        %v2100 = vlaneseq
        %v2101 = vshrl.u32 %v2100, 7
        %v2102 = vsub.s32 2, %v2101
        %v2103 = vrot.slane %v2083, %v2102
        %v2104 = vmul.f32 %v490, %v2091
        %v2105 = vmul.f32 %v490, %v2095
        %v2106 = vmul.f32 %v490, %v2099
        %v2107 = vmul.f32 %v490, %v2103
        %v2108 = vmul.f32 %v494, %v2091
        %v2109 = vmul.f32 %v494, %v2095
        %v2110 = vmul.f32 %v494, %v2099
        %v2111 = vmul.f32 %v494, %v2103
        %v2112 = vmul.f32 %v498, %v2091
        %v2113 = vmul.f32 %v498, %v2095
        %v2114 = vmul.f32 %v498, %v2099
        %v2115 = vmul.f32 %v498, %v2103
        %v2116 = vmul.f32 %v502, %v2091
        %v2117 = vmul.f32 %v502, %v2095
        %v2118 = vmul.f32 %v502, %v2099
        %v2119 = vmul.f32 %v502, %v2103
        %v2120 = vmul.f32 %v506, %v2091
        %v2121 = vmul.f32 %v506, %v2095
        %v2122 = vmul.f32 %v506, %v2099
        %v2123 = vmul.f32 %v506, %v2103
        %v2124 = vmul.f32 %v510, %v2091
        %v2125 = vmul.f32 %v510, %v2095
        %v2126 = vmul.f32 %v510, %v2099
        %v2127 = vmul.f32 %v510, %v2103
        %v2128 = vmul.f32 %v514, %v2091
        %v2129 = vmul.f32 %v514, %v2095
        %v2130 = vmul.f32 %v514, %v2099
        %v2131 = vmul.f32 %v514, %v2103
        %v2132 = vmul.f32 %v518, %v2091
        %v2133 = vmul.f32 %v518, %v2095
        %v2134 = vmul.f32 %v518, %v2099
        %v2135 = vmul.f32 %v518, %v2103
        %v2136 = vadd.f32 %v2036, %v2104
        %v2137 = vadd.f32 %v2037, %v2105
        %v2138 = vadd.f32 %v2038, %v2106
        %v2139 = vadd.f32 %v2039, %v2107
        %v2140 = vadd.f32 %v2040, %v2108
        %v2141 = vadd.f32 %v2041, %v2109
        %v2142 = vadd.f32 %v2042, %v2110
        %v2143 = vadd.f32 %v2043, %v2111
        %v2144 = vadd.f32 %v2044, %v2112
        %v2145 = vadd.f32 %v2045, %v2113
        %v2146 = vadd.f32 %v2046, %v2114
        %v2147 = vadd.f32 %v2047, %v2115
        %v2148 = vadd.f32 %v2048, %v2116
        %v2149 = vadd.f32 %v2049, %v2117
        %v2150 = vadd.f32 %v2050, %v2118
        %v2151 = vadd.f32 %v2051, %v2119
        %v2152 = vadd.f32 %v2052, %v2120
        %v2153 = vadd.f32 %v2053, %v2121
        %v2154 = vadd.f32 %v2054, %v2122
        %v2155 = vadd.f32 %v2055, %v2123
        %v2156 = vadd.f32 %v2056, %v2124
        %v2157 = vadd.f32 %v2057, %v2125
        %v2158 = vadd.f32 %v2058, %v2126
        %v2159 = vadd.f32 %v2059, %v2127
        %v2160 = vadd.f32 %v2060, %v2128
        %v2161 = vadd.f32 %v2061, %v2129
        %v2162 = vadd.f32 %v2062, %v2130
        %v2163 = vadd.f32 %v2063, %v2131
        %v2164 = vadd.f32 %v2064, %v2132
        %v2165 = vadd.f32 %v2065, %v2133
        %v2166 = vadd.f32 %v2066, %v2134
        %v2167 = vadd.f32 %v2067, %v2135
        %v2168 = vadd.f32 %v2136, %v623
        %v2169 = vadd.f32 %v2137, %v623
        %v2170 = vadd.f32 %v2138, %v623
        %v2171 = vadd.f32 %v2139, %v623
        %v2172 = vadd.f32 %v2140, %v628
        %v2173 = vadd.f32 %v2141, %v628
        %v2174 = vadd.f32 %v2142, %v628
        %v2175 = vadd.f32 %v2143, %v628
        %v2176 = vadd.f32 %v2144, %v633
        %v2177 = vadd.f32 %v2145, %v633
        %v2178 = vadd.f32 %v2146, %v633
        %v2179 = vadd.f32 %v2147, %v633
        %v2180 = vadd.f32 %v2148, %v638
        %v2181 = vadd.f32 %v2149, %v638
        %v2182 = vadd.f32 %v2150, %v638
        %v2183 = vadd.f32 %v2151, %v638
        %v2184 = vadd.f32 %v2152, %v643
        %v2185 = vadd.f32 %v2153, %v643
        %v2186 = vadd.f32 %v2154, %v643
        %v2187 = vadd.f32 %v2155, %v643
        %v2188 = vadd.f32 %v2156, %v648
        %v2189 = vadd.f32 %v2157, %v648
        %v2190 = vadd.f32 %v2158, %v648
        %v2191 = vadd.f32 %v2159, %v648
        %v2192 = vadd.f32 %v2160, %v653
        %v2193 = vadd.f32 %v2161, %v653
        %v2194 = vadd.f32 %v2162, %v653
        %v2195 = vadd.f32 %v2163, %v653
        %v2196 = vadd.f32 %v2164, %v658
        %v2197 = vadd.f32 %v2165, %v658
        %v2198 = vadd.f32 %v2166, %v658
        %v2199 = vadd.f32 %v2167, %v658
        %v2200 = vmax.f32 %v2168, 0.0
        %v2201 = vmax.f32 %v2169, 0.0
        %v2202 = vmax.f32 %v2170, 0.0
        %v2203 = vmax.f32 %v2171, 0.0
        %v2204 = vmax.f32 %v2172, 0.0
        %v2205 = vmax.f32 %v2173, 0.0
        %v2206 = vmax.f32 %v2174, 0.0
        %v2207 = vmax.f32 %v2175, 0.0
        %v2208 = vmax.f32 %v2176, 0.0
        %v2209 = vmax.f32 %v2177, 0.0
        %v2210 = vmax.f32 %v2178, 0.0
        %v2211 = vmax.f32 %v2179, 0.0
        %v2212 = vmax.f32 %v2180, 0.0
        %v2213 = vmax.f32 %v2181, 0.0
        %v2214 = vmax.f32 %v2182, 0.0
        %v2215 = vmax.f32 %v2183, 0.0
        %v2216 = vmax.f32 %v2184, 0.0
        %v2217 = vmax.f32 %v2185, 0.0
        %v2218 = vmax.f32 %v2186, 0.0
        %v2219 = vmax.f32 %v2187, 0.0
        %v2220 = vmax.f32 %v2188, 0.0
        %v2221 = vmax.f32 %v2189, 0.0
        %v2222 = vmax.f32 %v2190, 0.0
        %v2223 = vmax.f32 %v2191, 0.0
        %v2224 = vmax.f32 %v2192, 0.0
        %v2225 = vmax.f32 %v2193, 0.0
        %v2226 = vmax.f32 %v2194, 0.0
        %v2227 = vmax.f32 %v2195, 0.0
        %v2228 = vmax.f32 %v2196, 0.0
        %v2229 = vmax.f32 %v2197, 0.0
        %v2230 = vmax.f32 %v2198, 0.0
        %v2231 = vmax.f32 %v2199, 0.0
        %v2232 = vadd.f32 %v2200, %v2201
        %v2233 = vadd.f32 %v2232, %v2202
        %v2234 = vadd.f32 %v2233, %v2203
        %2235 = vadd.xlane.f32.xlu0 %v2234
        %v2236 = vpop.xlane.xlu0 %2235
        %v2237 = vadd.f32 %v2204, %v2205
        %v2238 = vadd.f32 %v2237, %v2206
        %v2239 = vadd.f32 %v2238, %v2207
        %2240 = vadd.xlane.f32.xlu0 %v2239
        %v2241 = vpop.xlane.xlu0 %2240
        %v2242 = vadd.f32 %v2208, %v2209
        %v2243 = vadd.f32 %v2242, %v2210
        %v2244 = vadd.f32 %v2243, %v2211
        %2245 = vadd.xlane.f32.xlu0 %v2244
        %v2246 = vpop.xlane.xlu0 %2245
        %v2247 = vadd.f32 %v2212, %v2213
        %v2248 = vadd.f32 %v2247, %v2214
        %v2249 = vadd.f32 %v2248, %v2215
        %2250 = vadd.xlane.f32.xlu0 %v2249
        %v2251 = vpop.xlane.xlu0 %2250
        %v2252 = vadd.f32 %v2216, %v2217
        %v2253 = vadd.f32 %v2252, %v2218
        %v2254 = vadd.f32 %v2253, %v2219
        %2255 = vadd.xlane.f32.xlu0 %v2254
        %v2256 = vpop.xlane.xlu0 %2255
        %v2257 = vadd.f32 %v2220, %v2221
        %v2258 = vadd.f32 %v2257, %v2222
        %v2259 = vadd.f32 %v2258, %v2223
        %2260 = vadd.xlane.f32.xlu0 %v2259
        %v2261 = vpop.xlane.xlu0 %2260
        %v2262 = vadd.f32 %v2224, %v2225
        %v2263 = vadd.f32 %v2262, %v2226
        %v2264 = vadd.f32 %v2263, %v2227
        %2265 = vadd.xlane.f32.xlu0 %v2264
        %v2266 = vpop.xlane.xlu0 %2265
        %v2267 = vadd.f32 %v2228, %v2229
        %v2268 = vadd.f32 %v2267, %v2230
        %v2269 = vadd.f32 %v2268, %v2231
        %2270 = vadd.xlane.f32.xlu0 %v2269
        %v2271 = vpop.xlane.xlu0 %2270
        %s2272 = scalar_lea.vmem %s226, 80
        %v2273 = vld [vmem:[%s2272] sm:$0x77]
        %v2274 = vld [vmem:[%s2272 + $0x8] sm:$0x77]
        %v2277 = vlaneseq
        %v2278 = vshrl.u32 %v2277, 7
        %v2279 = vsub.s32 0, %v2278
        %v2280 = vrot.slane %v2273, %v2279
        %v2281 = vlaneseq
        %v2282 = vshrl.u32 %v2281, 7
        %v2283 = vsub.s32 4, %v2282
        %v2284 = vrot.slane %v2273, %v2283
        %v2285 = vlaneseq
        %v2286 = vshrl.u32 %v2285, 7
        %v2287 = vsub.s32 0, %v2286
        %v2288 = vrot.slane %v2274, %v2287
        %v2289 = vlaneseq
        %v2290 = vshrl.u32 %v2289, 7
        %v2291 = vsub.s32 4, %v2290
        %v2292 = vrot.slane %v2274, %v2291
        %v2297 = vlaneseq
        %v2298 = vshrl.u32 %v2297, 7
        %v2299 = vsub.s32 0, %v2298
        %v2300 = vrot.slane %v2280, %v2299
        %v2301 = vlaneseq
        %v2302 = vshrl.u32 %v2301, 7
        %v2303 = vsub.s32 0, %v2302
        %v2304 = vrot.slane %v2284, %v2303
        %v2305 = vlaneseq
        %v2306 = vshrl.u32 %v2305, 7
        %v2307 = vsub.s32 0, %v2306
        %v2308 = vrot.slane %v2288, %v2307
        %v2309 = vlaneseq
        %v2310 = vshrl.u32 %v2309, 7
        %v2311 = vsub.s32 0, %v2310
        %v2312 = vrot.slane %v2292, %v2311
        %v2313 = vmul.f32 %v249, %v2300
        %v2314 = vmul.f32 %v249, %v2304
        %v2315 = vmul.f32 %v249, %v2308
        %v2316 = vmul.f32 %v249, %v2312
        %v2317 = vmul.f32 %v254, %v2300
        %v2318 = vmul.f32 %v254, %v2304
        %v2319 = vmul.f32 %v254, %v2308
        %v2320 = vmul.f32 %v254, %v2312
        %v2321 = vmul.f32 %v259, %v2300
        %v2322 = vmul.f32 %v259, %v2304
        %v2323 = vmul.f32 %v259, %v2308
        %v2324 = vmul.f32 %v259, %v2312
        %v2325 = vmul.f32 %v264, %v2300
        %v2326 = vmul.f32 %v264, %v2304
        %v2327 = vmul.f32 %v264, %v2308
        %v2328 = vmul.f32 %v264, %v2312
        %v2329 = vmul.f32 %v269, %v2300
        %v2330 = vmul.f32 %v269, %v2304
        %v2331 = vmul.f32 %v269, %v2308
        %v2332 = vmul.f32 %v269, %v2312
        %v2333 = vmul.f32 %v274, %v2300
        %v2334 = vmul.f32 %v274, %v2304
        %v2335 = vmul.f32 %v274, %v2308
        %v2336 = vmul.f32 %v274, %v2312
        %v2337 = vmul.f32 %v279, %v2300
        %v2338 = vmul.f32 %v279, %v2304
        %v2339 = vmul.f32 %v279, %v2308
        %v2340 = vmul.f32 %v279, %v2312
        %v2341 = vmul.f32 %v284, %v2300
        %v2342 = vmul.f32 %v284, %v2304
        %v2343 = vmul.f32 %v284, %v2308
        %v2344 = vmul.f32 %v284, %v2312
        %v2345 = vlaneseq
        %v2346 = vshrl.u32 %v2345, 7
        %v2347 = vsub.s32 1, %v2346
        %v2348 = vrot.slane %v2273, %v2347
        %v2349 = vlaneseq
        %v2350 = vshrl.u32 %v2349, 7
        %v2351 = vsub.s32 5, %v2350
        %v2352 = vrot.slane %v2273, %v2351
        %v2353 = vlaneseq
        %v2354 = vshrl.u32 %v2353, 7
        %v2355 = vsub.s32 1, %v2354
        %v2356 = vrot.slane %v2274, %v2355
        %v2357 = vlaneseq
        %v2358 = vshrl.u32 %v2357, 7
        %v2359 = vsub.s32 5, %v2358
        %v2360 = vrot.slane %v2274, %v2359
        %v2365 = vlaneseq
        %v2366 = vshrl.u32 %v2365, 7
        %v2367 = vsub.s32 1, %v2366
        %v2368 = vrot.slane %v2348, %v2367
        %v2369 = vlaneseq
        %v2370 = vshrl.u32 %v2369, 7
        %v2371 = vsub.s32 1, %v2370
        %v2372 = vrot.slane %v2352, %v2371
        %v2373 = vlaneseq
        %v2374 = vshrl.u32 %v2373, 7
        %v2375 = vsub.s32 1, %v2374
        %v2376 = vrot.slane %v2356, %v2375
        %v2377 = vlaneseq
        %v2378 = vshrl.u32 %v2377, 7
        %v2379 = vsub.s32 1, %v2378
        %v2380 = vrot.slane %v2360, %v2379
        %v2381 = vmul.f32 %v358, %v2368
        %v2382 = vmul.f32 %v358, %v2372
        %v2383 = vmul.f32 %v358, %v2376
        %v2384 = vmul.f32 %v358, %v2380
        %v2385 = vmul.f32 %v362, %v2368
        %v2386 = vmul.f32 %v362, %v2372
        %v2387 = vmul.f32 %v362, %v2376
        %v2388 = vmul.f32 %v362, %v2380
        %v2389 = vmul.f32 %v366, %v2368
        %v2390 = vmul.f32 %v366, %v2372
        %v2391 = vmul.f32 %v366, %v2376
        %v2392 = vmul.f32 %v366, %v2380
        %v2393 = vmul.f32 %v370, %v2368
        %v2394 = vmul.f32 %v370, %v2372
        %v2395 = vmul.f32 %v370, %v2376
        %v2396 = vmul.f32 %v370, %v2380
        %v2397 = vmul.f32 %v374, %v2368
        %v2398 = vmul.f32 %v374, %v2372
        %v2399 = vmul.f32 %v374, %v2376
        %v2400 = vmul.f32 %v374, %v2380
        %v2401 = vmul.f32 %v378, %v2368
        %v2402 = vmul.f32 %v378, %v2372
        %v2403 = vmul.f32 %v378, %v2376
        %v2404 = vmul.f32 %v378, %v2380
        %v2405 = vmul.f32 %v382, %v2368
        %v2406 = vmul.f32 %v382, %v2372
        %v2407 = vmul.f32 %v382, %v2376
        %v2408 = vmul.f32 %v382, %v2380
        %v2409 = vmul.f32 %v386, %v2368
        %v2410 = vmul.f32 %v386, %v2372
        %v2411 = vmul.f32 %v386, %v2376
        %v2412 = vmul.f32 %v386, %v2380
        %v2413 = vadd.f32 %v2313, %v2381
        %v2414 = vadd.f32 %v2314, %v2382
        %v2415 = vadd.f32 %v2315, %v2383
        %v2416 = vadd.f32 %v2316, %v2384
        %v2417 = vadd.f32 %v2317, %v2385
        %v2418 = vadd.f32 %v2318, %v2386
        %v2419 = vadd.f32 %v2319, %v2387
        %v2420 = vadd.f32 %v2320, %v2388
        %v2421 = vadd.f32 %v2321, %v2389
        %v2422 = vadd.f32 %v2322, %v2390
        %v2423 = vadd.f32 %v2323, %v2391
        %v2424 = vadd.f32 %v2324, %v2392
        %v2425 = vadd.f32 %v2325, %v2393
        %v2426 = vadd.f32 %v2326, %v2394
        %v2427 = vadd.f32 %v2327, %v2395
        %v2428 = vadd.f32 %v2328, %v2396
        %v2429 = vadd.f32 %v2329, %v2397
        %v2430 = vadd.f32 %v2330, %v2398
        %v2431 = vadd.f32 %v2331, %v2399
        %v2432 = vadd.f32 %v2332, %v2400
        %v2433 = vadd.f32 %v2333, %v2401
        %v2434 = vadd.f32 %v2334, %v2402
        %v2435 = vadd.f32 %v2335, %v2403
        %v2436 = vadd.f32 %v2336, %v2404
        %v2437 = vadd.f32 %v2337, %v2405
        %v2438 = vadd.f32 %v2338, %v2406
        %v2439 = vadd.f32 %v2339, %v2407
        %v2440 = vadd.f32 %v2340, %v2408
        %v2441 = vadd.f32 %v2341, %v2409
        %v2442 = vadd.f32 %v2342, %v2410
        %v2443 = vadd.f32 %v2343, %v2411
        %v2444 = vadd.f32 %v2344, %v2412
        %v2445 = vlaneseq
        %v2446 = vshrl.u32 %v2445, 7
        %v2447 = vsub.s32 2, %v2446
        %v2448 = vrot.slane %v2273, %v2447
        %v2449 = vlaneseq
        %v2450 = vshrl.u32 %v2449, 7
        %v2451 = vsub.s32 6, %v2450
        %v2452 = vrot.slane %v2273, %v2451
        %v2453 = vlaneseq
        %v2454 = vshrl.u32 %v2453, 7
        %v2455 = vsub.s32 2, %v2454
        %v2456 = vrot.slane %v2274, %v2455
        %v2457 = vlaneseq
        %v2458 = vshrl.u32 %v2457, 7
        %v2459 = vsub.s32 6, %v2458
        %v2460 = vrot.slane %v2274, %v2459
        %v2465 = vlaneseq
        %v2466 = vshrl.u32 %v2465, 7
        %v2467 = vsub.s32 2, %v2466
        %v2468 = vrot.slane %v2448, %v2467
        %v2469 = vlaneseq
        %v2470 = vshrl.u32 %v2469, 7
        %v2471 = vsub.s32 2, %v2470
        %v2472 = vrot.slane %v2452, %v2471
        %v2473 = vlaneseq
        %v2474 = vshrl.u32 %v2473, 7
        %v2475 = vsub.s32 2, %v2474
        %v2476 = vrot.slane %v2456, %v2475
        %v2477 = vlaneseq
        %v2478 = vshrl.u32 %v2477, 7
        %v2479 = vsub.s32 2, %v2478
        %v2480 = vrot.slane %v2460, %v2479
        %v2481 = vmul.f32 %v490, %v2468
        %v2482 = vmul.f32 %v490, %v2472
        %v2483 = vmul.f32 %v490, %v2476
        %v2484 = vmul.f32 %v490, %v2480
        %v2485 = vmul.f32 %v494, %v2468
        %v2486 = vmul.f32 %v494, %v2472
        %v2487 = vmul.f32 %v494, %v2476
        %v2488 = vmul.f32 %v494, %v2480
        %v2489 = vmul.f32 %v498, %v2468
        %v2490 = vmul.f32 %v498, %v2472
        %v2491 = vmul.f32 %v498, %v2476
        %v2492 = vmul.f32 %v498, %v2480
        %v2493 = vmul.f32 %v502, %v2468
        %v2494 = vmul.f32 %v502, %v2472
        %v2495 = vmul.f32 %v502, %v2476
        %v2496 = vmul.f32 %v502, %v2480
        %v2497 = vmul.f32 %v506, %v2468
        %v2498 = vmul.f32 %v506, %v2472
        %v2499 = vmul.f32 %v506, %v2476
        %v2500 = vmul.f32 %v506, %v2480
        %v2501 = vmul.f32 %v510, %v2468
        %v2502 = vmul.f32 %v510, %v2472
        %v2503 = vmul.f32 %v510, %v2476
        %v2504 = vmul.f32 %v510, %v2480
        %v2505 = vmul.f32 %v514, %v2468
        %v2506 = vmul.f32 %v514, %v2472
        %v2507 = vmul.f32 %v514, %v2476
        %v2508 = vmul.f32 %v514, %v2480
        %v2509 = vmul.f32 %v518, %v2468
        %v2510 = vmul.f32 %v518, %v2472
        %v2511 = vmul.f32 %v518, %v2476
        %v2512 = vmul.f32 %v518, %v2480
        %v2513 = vadd.f32 %v2413, %v2481
        %v2514 = vadd.f32 %v2414, %v2482
        %v2515 = vadd.f32 %v2415, %v2483
        %v2516 = vadd.f32 %v2416, %v2484
        %v2517 = vadd.f32 %v2417, %v2485
        %v2518 = vadd.f32 %v2418, %v2486
        %v2519 = vadd.f32 %v2419, %v2487
        %v2520 = vadd.f32 %v2420, %v2488
        %v2521 = vadd.f32 %v2421, %v2489
        %v2522 = vadd.f32 %v2422, %v2490
        %v2523 = vadd.f32 %v2423, %v2491
        %v2524 = vadd.f32 %v2424, %v2492
        %v2525 = vadd.f32 %v2425, %v2493
        %v2526 = vadd.f32 %v2426, %v2494
        %v2527 = vadd.f32 %v2427, %v2495
        %v2528 = vadd.f32 %v2428, %v2496
        %v2529 = vadd.f32 %v2429, %v2497
        %v2530 = vadd.f32 %v2430, %v2498
        %v2531 = vadd.f32 %v2431, %v2499
        %v2532 = vadd.f32 %v2432, %v2500
        %v2533 = vadd.f32 %v2433, %v2501
        %v2534 = vadd.f32 %v2434, %v2502
        %v2535 = vadd.f32 %v2435, %v2503
        %v2536 = vadd.f32 %v2436, %v2504
        %v2537 = vadd.f32 %v2437, %v2505
        %v2538 = vadd.f32 %v2438, %v2506
        %v2539 = vadd.f32 %v2439, %v2507
        %v2540 = vadd.f32 %v2440, %v2508
        %v2541 = vadd.f32 %v2441, %v2509
        %v2542 = vadd.f32 %v2442, %v2510
        %v2543 = vadd.f32 %v2443, %v2511
        %v2544 = vadd.f32 %v2444, %v2512
        %v2545 = vadd.f32 %v2513, %v623
        %v2546 = vadd.f32 %v2514, %v623
        %v2547 = vadd.f32 %v2515, %v623
        %v2548 = vadd.f32 %v2516, %v623
        %v2549 = vadd.f32 %v2517, %v628
        %v2550 = vadd.f32 %v2518, %v628
        %v2551 = vadd.f32 %v2519, %v628
        %v2552 = vadd.f32 %v2520, %v628
        %v2553 = vadd.f32 %v2521, %v633
        %v2554 = vadd.f32 %v2522, %v633
        %v2555 = vadd.f32 %v2523, %v633
        %v2556 = vadd.f32 %v2524, %v633
        %v2557 = vadd.f32 %v2525, %v638
        %v2558 = vadd.f32 %v2526, %v638
        %v2559 = vadd.f32 %v2527, %v638
        %v2560 = vadd.f32 %v2528, %v638
        %v2561 = vadd.f32 %v2529, %v643
        %v2562 = vadd.f32 %v2530, %v643
        %v2563 = vadd.f32 %v2531, %v643
        %v2564 = vadd.f32 %v2532, %v643
        %v2565 = vadd.f32 %v2533, %v648
        %v2566 = vadd.f32 %v2534, %v648
        %v2567 = vadd.f32 %v2535, %v648
        %v2568 = vadd.f32 %v2536, %v648
        %v2569 = vadd.f32 %v2537, %v653
        %v2570 = vadd.f32 %v2538, %v653
        %v2571 = vadd.f32 %v2539, %v653
        %v2572 = vadd.f32 %v2540, %v653
        %v2573 = vadd.f32 %v2541, %v658
        %v2574 = vadd.f32 %v2542, %v658
        %v2575 = vadd.f32 %v2543, %v658
        %v2576 = vadd.f32 %v2544, %v658
        %v2577 = vmax.f32 %v2545, 0.0
        %v2578 = vmax.f32 %v2546, 0.0
        %v2579 = vmax.f32 %v2547, 0.0
        %v2580 = vmax.f32 %v2548, 0.0
        %v2581 = vmax.f32 %v2549, 0.0
        %v2582 = vmax.f32 %v2550, 0.0
        %v2583 = vmax.f32 %v2551, 0.0
        %v2584 = vmax.f32 %v2552, 0.0
        %v2585 = vmax.f32 %v2553, 0.0
        %v2586 = vmax.f32 %v2554, 0.0
        %v2587 = vmax.f32 %v2555, 0.0
        %v2588 = vmax.f32 %v2556, 0.0
        %v2589 = vmax.f32 %v2557, 0.0
        %v2590 = vmax.f32 %v2558, 0.0
        %v2591 = vmax.f32 %v2559, 0.0
        %v2592 = vmax.f32 %v2560, 0.0
        %v2593 = vmax.f32 %v2561, 0.0
        %v2594 = vmax.f32 %v2562, 0.0
        %v2595 = vmax.f32 %v2563, 0.0
        %v2596 = vmax.f32 %v2564, 0.0
        %v2597 = vmax.f32 %v2565, 0.0
        %v2598 = vmax.f32 %v2566, 0.0
        %v2599 = vmax.f32 %v2567, 0.0
        %v2600 = vmax.f32 %v2568, 0.0
        %v2601 = vmax.f32 %v2569, 0.0
        %v2602 = vmax.f32 %v2570, 0.0
        %v2603 = vmax.f32 %v2571, 0.0
        %v2604 = vmax.f32 %v2572, 0.0
        %v2605 = vmax.f32 %v2573, 0.0
        %v2606 = vmax.f32 %v2574, 0.0
        %v2607 = vmax.f32 %v2575, 0.0
        %v2608 = vmax.f32 %v2576, 0.0
        %v2609 = vadd.f32 %v2577, %v2578
        %v2610 = vadd.f32 %v2609, %v2579
        %v2611 = vadd.f32 %v2610, %v2580
        %2612 = vadd.xlane.f32.xlu0 %v2611
        %v2613 = vpop.xlane.xlu0 %2612
        %v2614 = vadd.f32 %v2581, %v2582
        %v2615 = vadd.f32 %v2614, %v2583
        %v2616 = vadd.f32 %v2615, %v2584
        %2617 = vadd.xlane.f32.xlu0 %v2616
        %v2618 = vpop.xlane.xlu0 %2617
        %v2619 = vadd.f32 %v2585, %v2586
        %v2620 = vadd.f32 %v2619, %v2587
        %v2621 = vadd.f32 %v2620, %v2588
        %2622 = vadd.xlane.f32.xlu0 %v2621
        %v2623 = vpop.xlane.xlu0 %2622
        %v2624 = vadd.f32 %v2589, %v2590
        %v2625 = vadd.f32 %v2624, %v2591
        %v2626 = vadd.f32 %v2625, %v2592
        %2627 = vadd.xlane.f32.xlu0 %v2626
        %v2628 = vpop.xlane.xlu0 %2627
        %v2629 = vadd.f32 %v2593, %v2594
        %v2630 = vadd.f32 %v2629, %v2595
        %v2631 = vadd.f32 %v2630, %v2596
        %2632 = vadd.xlane.f32.xlu0 %v2631
        %v2633 = vpop.xlane.xlu0 %2632
        %v2634 = vadd.f32 %v2597, %v2598
        %v2635 = vadd.f32 %v2634, %v2599
        %v2636 = vadd.f32 %v2635, %v2600
        %2637 = vadd.xlane.f32.xlu0 %v2636
        %v2638 = vpop.xlane.xlu0 %2637
        %v2639 = vadd.f32 %v2601, %v2602
        %v2640 = vadd.f32 %v2639, %v2603
        %v2641 = vadd.f32 %v2640, %v2604
        %2642 = vadd.xlane.f32.xlu0 %v2641
        %v2643 = vpop.xlane.xlu0 %2642
        %v2644 = vadd.f32 %v2605, %v2606
        %v2645 = vadd.f32 %v2644, %v2607
        %v2646 = vadd.f32 %v2645, %v2608
        %2647 = vadd.xlane.f32.xlu0 %v2646
        %v2648 = vpop.xlane.xlu0 %2647
        %s2649 = scalar_lea.vmem %s226, 96
        %v2650 = vld [vmem:[%s2649] sm:$0x77]
        %v2651 = vld [vmem:[%s2649 + $0x8] sm:$0x77]
        %v2654 = vlaneseq
        %v2655 = vshrl.u32 %v2654, 7
        %v2656 = vsub.s32 0, %v2655
        %v2657 = vrot.slane %v2650, %v2656
        %v2658 = vlaneseq
        %v2659 = vshrl.u32 %v2658, 7
        %v2660 = vsub.s32 4, %v2659
        %v2661 = vrot.slane %v2650, %v2660
        %v2662 = vlaneseq
        %v2663 = vshrl.u32 %v2662, 7
        %v2664 = vsub.s32 0, %v2663
        %v2665 = vrot.slane %v2651, %v2664
        %v2666 = vlaneseq
        %v2667 = vshrl.u32 %v2666, 7
        %v2668 = vsub.s32 4, %v2667
        %v2669 = vrot.slane %v2651, %v2668
        %v2674 = vlaneseq
        %v2675 = vshrl.u32 %v2674, 7
        %v2676 = vsub.s32 0, %v2675
        %v2677 = vrot.slane %v2657, %v2676
        %v2678 = vlaneseq
        %v2679 = vshrl.u32 %v2678, 7
        %v2680 = vsub.s32 0, %v2679
        %v2681 = vrot.slane %v2661, %v2680
        %v2682 = vlaneseq
        %v2683 = vshrl.u32 %v2682, 7
        %v2684 = vsub.s32 0, %v2683
        %v2685 = vrot.slane %v2665, %v2684
        %v2686 = vlaneseq
        %v2687 = vshrl.u32 %v2686, 7
        %v2688 = vsub.s32 0, %v2687
        %v2689 = vrot.slane %v2669, %v2688
        %v2690 = vmul.f32 %v249, %v2677
        %v2691 = vmul.f32 %v249, %v2681
        %v2692 = vmul.f32 %v249, %v2685
        %v2693 = vmul.f32 %v249, %v2689
        %v2694 = vmul.f32 %v254, %v2677
        %v2695 = vmul.f32 %v254, %v2681
        %v2696 = vmul.f32 %v254, %v2685
        %v2697 = vmul.f32 %v254, %v2689
        %v2698 = vmul.f32 %v259, %v2677
        %v2699 = vmul.f32 %v259, %v2681
        %v2700 = vmul.f32 %v259, %v2685
        %v2701 = vmul.f32 %v259, %v2689
        %v2702 = vmul.f32 %v264, %v2677
        %v2703 = vmul.f32 %v264, %v2681
        %v2704 = vmul.f32 %v264, %v2685
        %v2705 = vmul.f32 %v264, %v2689
        %v2706 = vmul.f32 %v269, %v2677
        %v2707 = vmul.f32 %v269, %v2681
        %v2708 = vmul.f32 %v269, %v2685
        %v2709 = vmul.f32 %v269, %v2689
        %v2710 = vmul.f32 %v274, %v2677
        %v2711 = vmul.f32 %v274, %v2681
        %v2712 = vmul.f32 %v274, %v2685
        %v2713 = vmul.f32 %v274, %v2689
        %v2714 = vmul.f32 %v279, %v2677
        %v2715 = vmul.f32 %v279, %v2681
        %v2716 = vmul.f32 %v279, %v2685
        %v2717 = vmul.f32 %v279, %v2689
        %v2718 = vmul.f32 %v284, %v2677
        %v2719 = vmul.f32 %v284, %v2681
        %v2720 = vmul.f32 %v284, %v2685
        %v2721 = vmul.f32 %v284, %v2689
        %v2722 = vlaneseq
        %v2723 = vshrl.u32 %v2722, 7
        %v2724 = vsub.s32 1, %v2723
        %v2725 = vrot.slane %v2650, %v2724
        %v2726 = vlaneseq
        %v2727 = vshrl.u32 %v2726, 7
        %v2728 = vsub.s32 5, %v2727
        %v2729 = vrot.slane %v2650, %v2728
        %v2730 = vlaneseq
        %v2731 = vshrl.u32 %v2730, 7
        %v2732 = vsub.s32 1, %v2731
        %v2733 = vrot.slane %v2651, %v2732
        %v2734 = vlaneseq
        %v2735 = vshrl.u32 %v2734, 7
        %v2736 = vsub.s32 5, %v2735
        %v2737 = vrot.slane %v2651, %v2736
        %v2742 = vlaneseq
        %v2743 = vshrl.u32 %v2742, 7
        %v2744 = vsub.s32 1, %v2743
        %v2745 = vrot.slane %v2725, %v2744
        %v2746 = vlaneseq
        %v2747 = vshrl.u32 %v2746, 7
        %v2748 = vsub.s32 1, %v2747
        %v2749 = vrot.slane %v2729, %v2748
        %v2750 = vlaneseq
        %v2751 = vshrl.u32 %v2750, 7
        %v2752 = vsub.s32 1, %v2751
        %v2753 = vrot.slane %v2733, %v2752
        %v2754 = vlaneseq
        %v2755 = vshrl.u32 %v2754, 7
        %v2756 = vsub.s32 1, %v2755
        %v2757 = vrot.slane %v2737, %v2756
        %v2758 = vmul.f32 %v358, %v2745
        %v2759 = vmul.f32 %v358, %v2749
        %v2760 = vmul.f32 %v358, %v2753
        %v2761 = vmul.f32 %v358, %v2757
        %v2762 = vmul.f32 %v362, %v2745
        %v2763 = vmul.f32 %v362, %v2749
        %v2764 = vmul.f32 %v362, %v2753
        %v2765 = vmul.f32 %v362, %v2757
        %v2766 = vmul.f32 %v366, %v2745
        %v2767 = vmul.f32 %v366, %v2749
        %v2768 = vmul.f32 %v366, %v2753
        %v2769 = vmul.f32 %v366, %v2757
        %v2770 = vmul.f32 %v370, %v2745
        %v2771 = vmul.f32 %v370, %v2749
        %v2772 = vmul.f32 %v370, %v2753
        %v2773 = vmul.f32 %v370, %v2757
        %v2774 = vmul.f32 %v374, %v2745
        %v2775 = vmul.f32 %v374, %v2749
        %v2776 = vmul.f32 %v374, %v2753
        %v2777 = vmul.f32 %v374, %v2757
        %v2778 = vmul.f32 %v378, %v2745
        %v2779 = vmul.f32 %v378, %v2749
        %v2780 = vmul.f32 %v378, %v2753
        %v2781 = vmul.f32 %v378, %v2757
        %v2782 = vmul.f32 %v382, %v2745
        %v2783 = vmul.f32 %v382, %v2749
        %v2784 = vmul.f32 %v382, %v2753
        %v2785 = vmul.f32 %v382, %v2757
        %v2786 = vmul.f32 %v386, %v2745
        %v2787 = vmul.f32 %v386, %v2749
        %v2788 = vmul.f32 %v386, %v2753
        %v2789 = vmul.f32 %v386, %v2757
        %v2790 = vadd.f32 %v2690, %v2758
        %v2791 = vadd.f32 %v2691, %v2759
        %v2792 = vadd.f32 %v2692, %v2760
        %v2793 = vadd.f32 %v2693, %v2761
        %v2794 = vadd.f32 %v2694, %v2762
        %v2795 = vadd.f32 %v2695, %v2763
        %v2796 = vadd.f32 %v2696, %v2764
        %v2797 = vadd.f32 %v2697, %v2765
        %v2798 = vadd.f32 %v2698, %v2766
        %v2799 = vadd.f32 %v2699, %v2767
        %v2800 = vadd.f32 %v2700, %v2768
        %v2801 = vadd.f32 %v2701, %v2769
        %v2802 = vadd.f32 %v2702, %v2770
        %v2803 = vadd.f32 %v2703, %v2771
        %v2804 = vadd.f32 %v2704, %v2772
        %v2805 = vadd.f32 %v2705, %v2773
        %v2806 = vadd.f32 %v2706, %v2774
        %v2807 = vadd.f32 %v2707, %v2775
        %v2808 = vadd.f32 %v2708, %v2776
        %v2809 = vadd.f32 %v2709, %v2777
        %v2810 = vadd.f32 %v2710, %v2778
        %v2811 = vadd.f32 %v2711, %v2779
        %v2812 = vadd.f32 %v2712, %v2780
        %v2813 = vadd.f32 %v2713, %v2781
        %v2814 = vadd.f32 %v2714, %v2782
        %v2815 = vadd.f32 %v2715, %v2783
        %v2816 = vadd.f32 %v2716, %v2784
        %v2817 = vadd.f32 %v2717, %v2785
        %v2818 = vadd.f32 %v2718, %v2786
        %v2819 = vadd.f32 %v2719, %v2787
        %v2820 = vadd.f32 %v2720, %v2788
        %v2821 = vadd.f32 %v2721, %v2789
        %v2822 = vlaneseq
        %v2823 = vshrl.u32 %v2822, 7
        %v2824 = vsub.s32 2, %v2823
        %v2825 = vrot.slane %v2650, %v2824
        %v2826 = vlaneseq
        %v2827 = vshrl.u32 %v2826, 7
        %v2828 = vsub.s32 6, %v2827
        %v2829 = vrot.slane %v2650, %v2828
        %v2830 = vlaneseq
        %v2831 = vshrl.u32 %v2830, 7
        %v2832 = vsub.s32 2, %v2831
        %v2833 = vrot.slane %v2651, %v2832
        %v2834 = vlaneseq
        %v2835 = vshrl.u32 %v2834, 7
        %v2836 = vsub.s32 6, %v2835
        %v2837 = vrot.slane %v2651, %v2836
        %v2842 = vlaneseq
        %v2843 = vshrl.u32 %v2842, 7
        %v2844 = vsub.s32 2, %v2843
        %v2845 = vrot.slane %v2825, %v2844
        %v2846 = vlaneseq
        %v2847 = vshrl.u32 %v2846, 7
        %v2848 = vsub.s32 2, %v2847
        %v2849 = vrot.slane %v2829, %v2848
        %v2850 = vlaneseq
        %v2851 = vshrl.u32 %v2850, 7
        %v2852 = vsub.s32 2, %v2851
        %v2853 = vrot.slane %v2833, %v2852
        %v2854 = vlaneseq
        %v2855 = vshrl.u32 %v2854, 7
        %v2856 = vsub.s32 2, %v2855
        %v2857 = vrot.slane %v2837, %v2856
        %v2858 = vmul.f32 %v490, %v2845
        %v2859 = vmul.f32 %v490, %v2849
        %v2860 = vmul.f32 %v490, %v2853
        %v2861 = vmul.f32 %v490, %v2857
        %v2862 = vmul.f32 %v494, %v2845
        %v2863 = vmul.f32 %v494, %v2849
        %v2864 = vmul.f32 %v494, %v2853
        %v2865 = vmul.f32 %v494, %v2857
        %v2866 = vmul.f32 %v498, %v2845
        %v2867 = vmul.f32 %v498, %v2849
        %v2868 = vmul.f32 %v498, %v2853
        %v2869 = vmul.f32 %v498, %v2857
        %v2870 = vmul.f32 %v502, %v2845
        %v2871 = vmul.f32 %v502, %v2849
        %v2872 = vmul.f32 %v502, %v2853
        %v2873 = vmul.f32 %v502, %v2857
        %v2874 = vmul.f32 %v506, %v2845
        %v2875 = vmul.f32 %v506, %v2849
        %v2876 = vmul.f32 %v506, %v2853
        %v2877 = vmul.f32 %v506, %v2857
        %v2878 = vmul.f32 %v510, %v2845
        %v2879 = vmul.f32 %v510, %v2849
        %v2880 = vmul.f32 %v510, %v2853
        %v2881 = vmul.f32 %v510, %v2857
        %v2882 = vmul.f32 %v514, %v2845
        %v2883 = vmul.f32 %v514, %v2849
        %v2884 = vmul.f32 %v514, %v2853
        %v2885 = vmul.f32 %v514, %v2857
        %v2886 = vmul.f32 %v518, %v2845
        %v2887 = vmul.f32 %v518, %v2849
        %v2888 = vmul.f32 %v518, %v2853
        %v2889 = vmul.f32 %v518, %v2857
        %v2890 = vadd.f32 %v2790, %v2858
        %v2891 = vadd.f32 %v2791, %v2859
        %v2892 = vadd.f32 %v2792, %v2860
        %v2893 = vadd.f32 %v2793, %v2861
        %v2894 = vadd.f32 %v2794, %v2862
        %v2895 = vadd.f32 %v2795, %v2863
        %v2896 = vadd.f32 %v2796, %v2864
        %v2897 = vadd.f32 %v2797, %v2865
        %v2898 = vadd.f32 %v2798, %v2866
        %v2899 = vadd.f32 %v2799, %v2867
        %v2900 = vadd.f32 %v2800, %v2868
        %v2901 = vadd.f32 %v2801, %v2869
        %v2902 = vadd.f32 %v2802, %v2870
        %v2903 = vadd.f32 %v2803, %v2871
        %v2904 = vadd.f32 %v2804, %v2872
        %v2905 = vadd.f32 %v2805, %v2873
        %v2906 = vadd.f32 %v2806, %v2874
        %v2907 = vadd.f32 %v2807, %v2875
        %v2908 = vadd.f32 %v2808, %v2876
        %v2909 = vadd.f32 %v2809, %v2877
        %v2910 = vadd.f32 %v2810, %v2878
        %v2911 = vadd.f32 %v2811, %v2879
        %v2912 = vadd.f32 %v2812, %v2880
        %v2913 = vadd.f32 %v2813, %v2881
        %v2914 = vadd.f32 %v2814, %v2882
        %v2915 = vadd.f32 %v2815, %v2883
        %v2916 = vadd.f32 %v2816, %v2884
        %v2917 = vadd.f32 %v2817, %v2885
        %v2918 = vadd.f32 %v2818, %v2886
        %v2919 = vadd.f32 %v2819, %v2887
        %v2920 = vadd.f32 %v2820, %v2888
        %v2921 = vadd.f32 %v2821, %v2889
        %v2922 = vadd.f32 %v2890, %v623
        %v2923 = vadd.f32 %v2891, %v623
        %v2924 = vadd.f32 %v2892, %v623
        %v2925 = vadd.f32 %v2893, %v623
        %v2926 = vadd.f32 %v2894, %v628
        %v2927 = vadd.f32 %v2895, %v628
        %v2928 = vadd.f32 %v2896, %v628
        %v2929 = vadd.f32 %v2897, %v628
        %v2930 = vadd.f32 %v2898, %v633
        %v2931 = vadd.f32 %v2899, %v633
        %v2932 = vadd.f32 %v2900, %v633
        %v2933 = vadd.f32 %v2901, %v633
        %v2934 = vadd.f32 %v2902, %v638
        %v2935 = vadd.f32 %v2903, %v638
        %v2936 = vadd.f32 %v2904, %v638
        %v2937 = vadd.f32 %v2905, %v638
        %v2938 = vadd.f32 %v2906, %v643
        %v2939 = vadd.f32 %v2907, %v643
        %v2940 = vadd.f32 %v2908, %v643
        %v2941 = vadd.f32 %v2909, %v643
        %v2942 = vadd.f32 %v2910, %v648
        %v2943 = vadd.f32 %v2911, %v648
        %v2944 = vadd.f32 %v2912, %v648
        %v2945 = vadd.f32 %v2913, %v648
        %v2946 = vadd.f32 %v2914, %v653
        %v2947 = vadd.f32 %v2915, %v653
        %v2948 = vadd.f32 %v2916, %v653
        %v2949 = vadd.f32 %v2917, %v653
        %v2950 = vadd.f32 %v2918, %v658
        %v2951 = vadd.f32 %v2919, %v658
        %v2952 = vadd.f32 %v2920, %v658
        %v2953 = vadd.f32 %v2921, %v658
        %v2954 = vmax.f32 %v2922, 0.0
        %v2955 = vmax.f32 %v2923, 0.0
        %v2956 = vmax.f32 %v2924, 0.0
        %v2957 = vmax.f32 %v2925, 0.0
        %v2958 = vmax.f32 %v2926, 0.0
        %v2959 = vmax.f32 %v2927, 0.0
        %v2960 = vmax.f32 %v2928, 0.0
        %v2961 = vmax.f32 %v2929, 0.0
        %v2962 = vmax.f32 %v2930, 0.0
        %v2963 = vmax.f32 %v2931, 0.0
        %v2964 = vmax.f32 %v2932, 0.0
        %v2965 = vmax.f32 %v2933, 0.0
        %v2966 = vmax.f32 %v2934, 0.0
        %v2967 = vmax.f32 %v2935, 0.0
        %v2968 = vmax.f32 %v2936, 0.0
        %v2969 = vmax.f32 %v2937, 0.0
        %v2970 = vmax.f32 %v2938, 0.0
        %v2971 = vmax.f32 %v2939, 0.0
        %v2972 = vmax.f32 %v2940, 0.0
        %v2973 = vmax.f32 %v2941, 0.0
        %v2974 = vmax.f32 %v2942, 0.0
        %v2975 = vmax.f32 %v2943, 0.0
        %v2976 = vmax.f32 %v2944, 0.0
        %v2977 = vmax.f32 %v2945, 0.0
        %v2978 = vmax.f32 %v2946, 0.0
        %v2979 = vmax.f32 %v2947, 0.0
        %v2980 = vmax.f32 %v2948, 0.0
        %v2981 = vmax.f32 %v2949, 0.0
        %v2982 = vmax.f32 %v2950, 0.0
        %v2983 = vmax.f32 %v2951, 0.0
        %v2984 = vmax.f32 %v2952, 0.0
        %v2985 = vmax.f32 %v2953, 0.0
        %v2986 = vadd.f32 %v2954, %v2955
        %v2987 = vadd.f32 %v2986, %v2956
        %v2988 = vadd.f32 %v2987, %v2957
        %2989 = vadd.xlane.f32.xlu0 %v2988
        %v2990 = vpop.xlane.xlu0 %2989
        %v2991 = vadd.f32 %v2958, %v2959
        %v2992 = vadd.f32 %v2991, %v2960
        %v2993 = vadd.f32 %v2992, %v2961
        %2994 = vadd.xlane.f32.xlu0 %v2993
        %v2995 = vpop.xlane.xlu0 %2994
        %v2996 = vadd.f32 %v2962, %v2963
        %v2997 = vadd.f32 %v2996, %v2964
        %v2998 = vadd.f32 %v2997, %v2965
        %2999 = vadd.xlane.f32.xlu0 %v2998
        %v3000 = vpop.xlane.xlu0 %2999
        %v3001 = vadd.f32 %v2966, %v2967
        %v3002 = vadd.f32 %v3001, %v2968
        %v3003 = vadd.f32 %v3002, %v2969
        %3004 = vadd.xlane.f32.xlu0 %v3003
        %v3005 = vpop.xlane.xlu0 %3004
        %v3006 = vadd.f32 %v2970, %v2971
        %v3007 = vadd.f32 %v3006, %v2972
        %v3008 = vadd.f32 %v3007, %v2973
        %3009 = vadd.xlane.f32.xlu0 %v3008
        %v3010 = vpop.xlane.xlu0 %3009
        %v3011 = vadd.f32 %v2974, %v2975
        %v3012 = vadd.f32 %v3011, %v2976
        %v3013 = vadd.f32 %v3012, %v2977
        %3014 = vadd.xlane.f32.xlu0 %v3013
        %v3015 = vpop.xlane.xlu0 %3014
        %v3016 = vadd.f32 %v2978, %v2979
        %v3017 = vadd.f32 %v3016, %v2980
        %v3018 = vadd.f32 %v3017, %v2981
        %3019 = vadd.xlane.f32.xlu0 %v3018
        %v3020 = vpop.xlane.xlu0 %3019
        %v3021 = vadd.f32 %v2982, %v2983
        %v3022 = vadd.f32 %v3021, %v2984
        %v3023 = vadd.f32 %v3022, %v2985
        %3024 = vadd.xlane.f32.xlu0 %v3023
        %v3025 = vpop.xlane.xlu0 %3024
        %s3026 = scalar_lea.vmem %s226, 112
        %v3027 = vld [vmem:[%s3026] sm:$0x77]
        %v3028 = vld [vmem:[%s3026 + $0x8] sm:$0x77]
        %v3031 = vlaneseq
        %v3032 = vshrl.u32 %v3031, 7
        %v3033 = vsub.s32 0, %v3032
        %v3034 = vrot.slane %v3027, %v3033
        %v3035 = vlaneseq
        %v3036 = vshrl.u32 %v3035, 7
        %v3037 = vsub.s32 4, %v3036
        %v3038 = vrot.slane %v3027, %v3037
        %v3039 = vlaneseq
        %v3040 = vshrl.u32 %v3039, 7
        %v3041 = vsub.s32 0, %v3040
        %v3042 = vrot.slane %v3028, %v3041
        %v3043 = vlaneseq
        %v3044 = vshrl.u32 %v3043, 7
        %v3045 = vsub.s32 4, %v3044
        %v3046 = vrot.slane %v3028, %v3045
        %v3051 = vlaneseq
        %v3052 = vshrl.u32 %v3051, 7
        %v3053 = vsub.s32 0, %v3052
        %v3054 = vrot.slane %v3034, %v3053
        %v3055 = vlaneseq
        %v3056 = vshrl.u32 %v3055, 7
        %v3057 = vsub.s32 0, %v3056
        %v3058 = vrot.slane %v3038, %v3057
        %v3059 = vlaneseq
        %v3060 = vshrl.u32 %v3059, 7
        %v3061 = vsub.s32 0, %v3060
        %v3062 = vrot.slane %v3042, %v3061
        %v3063 = vlaneseq
        %v3064 = vshrl.u32 %v3063, 7
        %v3065 = vsub.s32 0, %v3064
        %v3066 = vrot.slane %v3046, %v3065
        %v3067 = vmul.f32 %v249, %v3054
        %v3068 = vmul.f32 %v249, %v3058
        %v3069 = vmul.f32 %v249, %v3062
        %v3070 = vmul.f32 %v249, %v3066
        %v3071 = vmul.f32 %v254, %v3054
        %v3072 = vmul.f32 %v254, %v3058
        %v3073 = vmul.f32 %v254, %v3062
        %v3074 = vmul.f32 %v254, %v3066
        %v3075 = vmul.f32 %v259, %v3054
        %v3076 = vmul.f32 %v259, %v3058
        %v3077 = vmul.f32 %v259, %v3062
        %v3078 = vmul.f32 %v259, %v3066
        %v3079 = vmul.f32 %v264, %v3054
        %v3080 = vmul.f32 %v264, %v3058
        %v3081 = vmul.f32 %v264, %v3062
        %v3082 = vmul.f32 %v264, %v3066
        %v3083 = vmul.f32 %v269, %v3054
        %v3084 = vmul.f32 %v269, %v3058
        %v3085 = vmul.f32 %v269, %v3062
        %v3086 = vmul.f32 %v269, %v3066
        %v3087 = vmul.f32 %v274, %v3054
        %v3088 = vmul.f32 %v274, %v3058
        %v3089 = vmul.f32 %v274, %v3062
        %v3090 = vmul.f32 %v274, %v3066
        %v3091 = vmul.f32 %v279, %v3054
        %v3092 = vmul.f32 %v279, %v3058
        %v3093 = vmul.f32 %v279, %v3062
        %v3094 = vmul.f32 %v279, %v3066
        %v3095 = vmul.f32 %v284, %v3054
        %v3096 = vmul.f32 %v284, %v3058
        %v3097 = vmul.f32 %v284, %v3062
        %v3098 = vmul.f32 %v284, %v3066
        %v3099 = vlaneseq
        %v3100 = vshrl.u32 %v3099, 7
        %v3101 = vsub.s32 1, %v3100
        %v3102 = vrot.slane %v3027, %v3101
        %v3103 = vlaneseq
        %v3104 = vshrl.u32 %v3103, 7
        %v3105 = vsub.s32 5, %v3104
        %v3106 = vrot.slane %v3027, %v3105
        %v3107 = vlaneseq
        %v3108 = vshrl.u32 %v3107, 7
        %v3109 = vsub.s32 1, %v3108
        %v3110 = vrot.slane %v3028, %v3109
        %v3111 = vlaneseq
        %v3112 = vshrl.u32 %v3111, 7
        %v3113 = vsub.s32 5, %v3112
        %v3114 = vrot.slane %v3028, %v3113
        %v3119 = vlaneseq
        %v3120 = vshrl.u32 %v3119, 7
        %v3121 = vsub.s32 1, %v3120
        %v3122 = vrot.slane %v3102, %v3121
        %v3123 = vlaneseq
        %v3124 = vshrl.u32 %v3123, 7
        %v3125 = vsub.s32 1, %v3124
        %v3126 = vrot.slane %v3106, %v3125
        %v3127 = vlaneseq
        %v3128 = vshrl.u32 %v3127, 7
        %v3129 = vsub.s32 1, %v3128
        %v3130 = vrot.slane %v3110, %v3129
        %v3131 = vlaneseq
        %v3132 = vshrl.u32 %v3131, 7
        %v3133 = vsub.s32 1, %v3132
        %v3134 = vrot.slane %v3114, %v3133
        %v3135 = vmul.f32 %v358, %v3122
        %v3136 = vmul.f32 %v358, %v3126
        %v3137 = vmul.f32 %v358, %v3130
        %v3138 = vmul.f32 %v358, %v3134
        %v3139 = vmul.f32 %v362, %v3122
        %v3140 = vmul.f32 %v362, %v3126
        %v3141 = vmul.f32 %v362, %v3130
        %v3142 = vmul.f32 %v362, %v3134
        %v3143 = vmul.f32 %v366, %v3122
        %v3144 = vmul.f32 %v366, %v3126
        %v3145 = vmul.f32 %v366, %v3130
        %v3146 = vmul.f32 %v366, %v3134
        %v3147 = vmul.f32 %v370, %v3122
        %v3148 = vmul.f32 %v370, %v3126
        %v3149 = vmul.f32 %v370, %v3130
        %v3150 = vmul.f32 %v370, %v3134
        %v3151 = vmul.f32 %v374, %v3122
        %v3152 = vmul.f32 %v374, %v3126
        %v3153 = vmul.f32 %v374, %v3130
        %v3154 = vmul.f32 %v374, %v3134
        %v3155 = vmul.f32 %v378, %v3122
        %v3156 = vmul.f32 %v378, %v3126
        %v3157 = vmul.f32 %v378, %v3130
        %v3158 = vmul.f32 %v378, %v3134
        %v3159 = vmul.f32 %v382, %v3122
        %v3160 = vmul.f32 %v382, %v3126
        %v3161 = vmul.f32 %v382, %v3130
        %v3162 = vmul.f32 %v382, %v3134
        %v3163 = vmul.f32 %v386, %v3122
        %v3164 = vmul.f32 %v386, %v3126
        %v3165 = vmul.f32 %v386, %v3130
        %v3166 = vmul.f32 %v386, %v3134
        %v3167 = vadd.f32 %v3067, %v3135
        %v3168 = vadd.f32 %v3068, %v3136
        %v3169 = vadd.f32 %v3069, %v3137
        %v3170 = vadd.f32 %v3070, %v3138
        %v3171 = vadd.f32 %v3071, %v3139
        %v3172 = vadd.f32 %v3072, %v3140
        %v3173 = vadd.f32 %v3073, %v3141
        %v3174 = vadd.f32 %v3074, %v3142
        %v3175 = vadd.f32 %v3075, %v3143
        %v3176 = vadd.f32 %v3076, %v3144
        %v3177 = vadd.f32 %v3077, %v3145
        %v3178 = vadd.f32 %v3078, %v3146
        %v3179 = vadd.f32 %v3079, %v3147
        %v3180 = vadd.f32 %v3080, %v3148
        %v3181 = vadd.f32 %v3081, %v3149
        %v3182 = vadd.f32 %v3082, %v3150
        %v3183 = vadd.f32 %v3083, %v3151
        %v3184 = vadd.f32 %v3084, %v3152
        %v3185 = vadd.f32 %v3085, %v3153
        %v3186 = vadd.f32 %v3086, %v3154
        %v3187 = vadd.f32 %v3087, %v3155
        %v3188 = vadd.f32 %v3088, %v3156
        %v3189 = vadd.f32 %v3089, %v3157
        %v3190 = vadd.f32 %v3090, %v3158
        %v3191 = vadd.f32 %v3091, %v3159
        %v3192 = vadd.f32 %v3092, %v3160
        %v3193 = vadd.f32 %v3093, %v3161
        %v3194 = vadd.f32 %v3094, %v3162
        %v3195 = vadd.f32 %v3095, %v3163
        %v3196 = vadd.f32 %v3096, %v3164
        %v3197 = vadd.f32 %v3097, %v3165
        %v3198 = vadd.f32 %v3098, %v3166
        %v3199 = vlaneseq
        %v3200 = vshrl.u32 %v3199, 7
        %v3201 = vsub.s32 2, %v3200
        %v3202 = vrot.slane %v3027, %v3201
        %v3203 = vlaneseq
        %v3204 = vshrl.u32 %v3203, 7
        %v3205 = vsub.s32 6, %v3204
        %v3206 = vrot.slane %v3027, %v3205
        %v3207 = vlaneseq
        %v3208 = vshrl.u32 %v3207, 7
        %v3209 = vsub.s32 2, %v3208
        %v3210 = vrot.slane %v3028, %v3209
        %v3211 = vlaneseq
        %v3212 = vshrl.u32 %v3211, 7
        %v3213 = vsub.s32 6, %v3212
        %v3214 = vrot.slane %v3028, %v3213
        %v3219 = vlaneseq
        %v3220 = vshrl.u32 %v3219, 7
        %v3221 = vsub.s32 2, %v3220
        %v3222 = vrot.slane %v3202, %v3221
        %v3223 = vlaneseq
        %v3224 = vshrl.u32 %v3223, 7
        %v3225 = vsub.s32 2, %v3224
        %v3226 = vrot.slane %v3206, %v3225
        %v3227 = vlaneseq
        %v3228 = vshrl.u32 %v3227, 7
        %v3229 = vsub.s32 2, %v3228
        %v3230 = vrot.slane %v3210, %v3229
        %v3231 = vlaneseq
        %v3232 = vshrl.u32 %v3231, 7
        %v3233 = vsub.s32 2, %v3232
        %v3234 = vrot.slane %v3214, %v3233
        %v3235 = vmul.f32 %v490, %v3222
        %v3236 = vmul.f32 %v490, %v3226
        %v3237 = vmul.f32 %v490, %v3230
        %v3238 = vmul.f32 %v490, %v3234
        %v3239 = vmul.f32 %v494, %v3222
        %v3240 = vmul.f32 %v494, %v3226
        %v3241 = vmul.f32 %v494, %v3230
        %v3242 = vmul.f32 %v494, %v3234
        %v3243 = vmul.f32 %v498, %v3222
        %v3244 = vmul.f32 %v498, %v3226
        %v3245 = vmul.f32 %v498, %v3230
        %v3246 = vmul.f32 %v498, %v3234
        %v3247 = vmul.f32 %v502, %v3222
        %v3248 = vmul.f32 %v502, %v3226
        %v3249 = vmul.f32 %v502, %v3230
        %v3250 = vmul.f32 %v502, %v3234
        %v3251 = vmul.f32 %v506, %v3222
        %v3252 = vmul.f32 %v506, %v3226
        %v3253 = vmul.f32 %v506, %v3230
        %v3254 = vmul.f32 %v506, %v3234
        %v3255 = vmul.f32 %v510, %v3222
        %v3256 = vmul.f32 %v510, %v3226
        %v3257 = vmul.f32 %v510, %v3230
        %v3258 = vmul.f32 %v510, %v3234
        %v3259 = vmul.f32 %v514, %v3222
        %v3260 = vmul.f32 %v514, %v3226
        %v3261 = vmul.f32 %v514, %v3230
        %v3262 = vmul.f32 %v514, %v3234
        %v3263 = vmul.f32 %v518, %v3222
        %v3264 = vmul.f32 %v518, %v3226
        %v3265 = vmul.f32 %v518, %v3230
        %v3266 = vmul.f32 %v518, %v3234
        %v3267 = vadd.f32 %v3167, %v3235
        %v3268 = vadd.f32 %v3168, %v3236
        %v3269 = vadd.f32 %v3169, %v3237
        %v3270 = vadd.f32 %v3170, %v3238
        %v3271 = vadd.f32 %v3171, %v3239
        %v3272 = vadd.f32 %v3172, %v3240
        %v3273 = vadd.f32 %v3173, %v3241
        %v3274 = vadd.f32 %v3174, %v3242
        %v3275 = vadd.f32 %v3175, %v3243
        %v3276 = vadd.f32 %v3176, %v3244
        %v3277 = vadd.f32 %v3177, %v3245
        %v3278 = vadd.f32 %v3178, %v3246
        %v3279 = vadd.f32 %v3179, %v3247
        %v3280 = vadd.f32 %v3180, %v3248
        %v3281 = vadd.f32 %v3181, %v3249
        %v3282 = vadd.f32 %v3182, %v3250
        %v3283 = vadd.f32 %v3183, %v3251
        %v3284 = vadd.f32 %v3184, %v3252
        %v3285 = vadd.f32 %v3185, %v3253
        %v3286 = vadd.f32 %v3186, %v3254
        %v3287 = vadd.f32 %v3187, %v3255
        %v3288 = vadd.f32 %v3188, %v3256
        %v3289 = vadd.f32 %v3189, %v3257
        %v3290 = vadd.f32 %v3190, %v3258
        %v3291 = vadd.f32 %v3191, %v3259
        %v3292 = vadd.f32 %v3192, %v3260
        %v3293 = vadd.f32 %v3193, %v3261
        %v3294 = vadd.f32 %v3194, %v3262
        %v3295 = vadd.f32 %v3195, %v3263
        %v3296 = vadd.f32 %v3196, %v3264
        %v3297 = vadd.f32 %v3197, %v3265
        %v3298 = vadd.f32 %v3198, %v3266
        %v3299 = vadd.f32 %v3267, %v623
        %v3300 = vadd.f32 %v3268, %v623
        %v3301 = vadd.f32 %v3269, %v623
        %v3302 = vadd.f32 %v3270, %v623
        %v3303 = vadd.f32 %v3271, %v628
        %v3304 = vadd.f32 %v3272, %v628
        %v3305 = vadd.f32 %v3273, %v628
        %v3306 = vadd.f32 %v3274, %v628
        %v3307 = vadd.f32 %v3275, %v633
        %v3308 = vadd.f32 %v3276, %v633
        %v3309 = vadd.f32 %v3277, %v633
        %v3310 = vadd.f32 %v3278, %v633
        %v3311 = vadd.f32 %v3279, %v638
        %v3312 = vadd.f32 %v3280, %v638
        %v3313 = vadd.f32 %v3281, %v638
        %v3314 = vadd.f32 %v3282, %v638
        %v3315 = vadd.f32 %v3283, %v643
        %v3316 = vadd.f32 %v3284, %v643
        %v3317 = vadd.f32 %v3285, %v643
        %v3318 = vadd.f32 %v3286, %v643
        %v3319 = vadd.f32 %v3287, %v648
        %v3320 = vadd.f32 %v3288, %v648
        %v3321 = vadd.f32 %v3289, %v648
        %v3322 = vadd.f32 %v3290, %v648
        %v3323 = vadd.f32 %v3291, %v653
        %v3324 = vadd.f32 %v3292, %v653
        %v3325 = vadd.f32 %v3293, %v653
        %v3326 = vadd.f32 %v3294, %v653
        %v3327 = vadd.f32 %v3295, %v658
        %v3328 = vadd.f32 %v3296, %v658
        %v3329 = vadd.f32 %v3297, %v658
        %v3330 = vadd.f32 %v3298, %v658
        %v3331 = vmax.f32 %v3299, 0.0
        %v3332 = vmax.f32 %v3300, 0.0
        %v3333 = vmax.f32 %v3301, 0.0
        %v3334 = vmax.f32 %v3302, 0.0
        %v3335 = vmax.f32 %v3303, 0.0
        %v3336 = vmax.f32 %v3304, 0.0
        %v3337 = vmax.f32 %v3305, 0.0
        %v3338 = vmax.f32 %v3306, 0.0
        %v3339 = vmax.f32 %v3307, 0.0
        %v3340 = vmax.f32 %v3308, 0.0
        %v3341 = vmax.f32 %v3309, 0.0
        %v3342 = vmax.f32 %v3310, 0.0
        %v3343 = vmax.f32 %v3311, 0.0
        %v3344 = vmax.f32 %v3312, 0.0
        %v3345 = vmax.f32 %v3313, 0.0
        %v3346 = vmax.f32 %v3314, 0.0
        %v3347 = vmax.f32 %v3315, 0.0
        %v3348 = vmax.f32 %v3316, 0.0
        %v3349 = vmax.f32 %v3317, 0.0
        %v3350 = vmax.f32 %v3318, 0.0
        %v3351 = vmax.f32 %v3319, 0.0
        %v3352 = vmax.f32 %v3320, 0.0
        %v3353 = vmax.f32 %v3321, 0.0
        %v3354 = vmax.f32 %v3322, 0.0
        %v3355 = vmax.f32 %v3323, 0.0
        %v3356 = vmax.f32 %v3324, 0.0
        %v3357 = vmax.f32 %v3325, 0.0
        %v3358 = vmax.f32 %v3326, 0.0
        %v3359 = vmax.f32 %v3327, 0.0
        %v3360 = vmax.f32 %v3328, 0.0
        %v3361 = vmax.f32 %v3329, 0.0
        %v3362 = vmax.f32 %v3330, 0.0
        %v3363 = vadd.f32 %v3331, %v3332
        %v3364 = vadd.f32 %v3363, %v3333
        %v3365 = vadd.f32 %v3364, %v3334
        %3366 = vadd.xlane.f32.xlu0 %v3365
        %v3367 = vpop.xlane.xlu0 %3366
        %v3368 = vadd.f32 %v3335, %v3336
        %v3369 = vadd.f32 %v3368, %v3337
        %v3370 = vadd.f32 %v3369, %v3338
        %3371 = vadd.xlane.f32.xlu0 %v3370
        %v3372 = vpop.xlane.xlu0 %3371
        %v3373 = vadd.f32 %v3339, %v3340
        %v3374 = vadd.f32 %v3373, %v3341
        %v3375 = vadd.f32 %v3374, %v3342
        %3376 = vadd.xlane.f32.xlu0 %v3375
        %v3377 = vpop.xlane.xlu0 %3376
        %v3378 = vadd.f32 %v3343, %v3344
        %v3379 = vadd.f32 %v3378, %v3345
        %v3380 = vadd.f32 %v3379, %v3346
        %3381 = vadd.xlane.f32.xlu0 %v3380
        %v3382 = vpop.xlane.xlu0 %3381
        %v3383 = vadd.f32 %v3347, %v3348
        %v3384 = vadd.f32 %v3383, %v3349
        %v3385 = vadd.f32 %v3384, %v3350
        %3386 = vadd.xlane.f32.xlu0 %v3385
        %v3387 = vpop.xlane.xlu0 %3386
        %v3388 = vadd.f32 %v3351, %v3352
        %v3389 = vadd.f32 %v3388, %v3353
        %v3390 = vadd.f32 %v3389, %v3354
        %3391 = vadd.xlane.f32.xlu0 %v3390
        %v3392 = vpop.xlane.xlu0 %3391
        %v3393 = vadd.f32 %v3355, %v3356
        %v3394 = vadd.f32 %v3393, %v3357
        %v3395 = vadd.f32 %v3394, %v3358
        %3396 = vadd.xlane.f32.xlu0 %v3395
        %v3397 = vpop.xlane.xlu0 %3396
        %v3398 = vadd.f32 %v3359, %v3360
        %v3399 = vadd.f32 %v3398, %v3361
        %v3400 = vadd.f32 %v3399, %v3362
        %3401 = vadd.xlane.f32.xlu0 %v3400
        %v3402 = vpop.xlane.xlu0 %3401
        %vm3403 = vcmask 7168
        %v3404 = vsel %vm3403, %v728, %v1105
        %v3405 = vsel %vm3403, %v733, %v1110
        %v3406 = vsel %vm3403, %v738, %v1115
        %v3407 = vsel %vm3403, %v743, %v1120
        %v3408 = vsel %vm3403, %v748, %v1125
        %v3409 = vsel %vm3403, %v753, %v1130
        %v3410 = vsel %vm3403, %v758, %v1135
        %v3411 = vsel %vm3403, %v763, %v1140
        %vm3412 = vcmask 15360
        %v3413 = vsel %vm3412, %v3404, %v1482
        %v3414 = vsel %vm3412, %v3405, %v1487
        %v3415 = vsel %vm3412, %v3406, %v1492
        %v3416 = vsel %vm3412, %v3407, %v1497
        %v3417 = vsel %vm3412, %v3408, %v1502
        %v3418 = vsel %vm3412, %v3409, %v1507
        %v3419 = vsel %vm3412, %v3410, %v1512
        %v3420 = vsel %vm3412, %v3411, %v1517
        %vm3421 = vcmask 23552
        %v3422 = vsel %vm3421, %v3413, %v1859
        %v3423 = vsel %vm3421, %v3414, %v1864
        %v3424 = vsel %vm3421, %v3415, %v1869
        %v3425 = vsel %vm3421, %v3416, %v1874
        %v3426 = vsel %vm3421, %v3417, %v1879
        %v3427 = vsel %vm3421, %v3418, %v1884
        %v3428 = vsel %vm3421, %v3419, %v1889
        %v3429 = vsel %vm3421, %v3420, %v1894
        %vm3430 = vcmask 31744
        %v3431 = vsel %vm3430, %v3422, %v2236
        %v3432 = vsel %vm3430, %v3423, %v2241
        %v3433 = vsel %vm3430, %v3424, %v2246
        %v3434 = vsel %vm3430, %v3425, %v2251
        %v3435 = vsel %vm3430, %v3426, %v2256
        %v3436 = vsel %vm3430, %v3427, %v2261
        %v3437 = vsel %vm3430, %v3428, %v2266
        %v3438 = vsel %vm3430, %v3429, %v2271
        %vm3439 = vcmask 39936
        %v3440 = vsel %vm3439, %v3431, %v2613
        %v3441 = vsel %vm3439, %v3432, %v2618
        %v3442 = vsel %vm3439, %v3433, %v2623
        %v3443 = vsel %vm3439, %v3434, %v2628
        %v3444 = vsel %vm3439, %v3435, %v2633
        %v3445 = vsel %vm3439, %v3436, %v2638
        %v3446 = vsel %vm3439, %v3437, %v2643
        %v3447 = vsel %vm3439, %v3438, %v2648
        %vm3448 = vcmask 48128
        %v3449 = vsel %vm3448, %v3440, %v2990
        %v3450 = vsel %vm3448, %v3441, %v2995
        %v3451 = vsel %vm3448, %v3442, %v3000
        %v3452 = vsel %vm3448, %v3443, %v3005
        %v3453 = vsel %vm3448, %v3444, %v3010
        %v3454 = vsel %vm3448, %v3445, %v3015
        %v3455 = vsel %vm3448, %v3446, %v3020
        %v3456 = vsel %vm3448, %v3447, %v3025
        %vm3457 = vcmask 56320
        %v3458 = vsel %vm3457, %v3449, %v3367
        %v3459 = vsel %vm3457, %v3450, %v3372
        %v3460 = vsel %vm3457, %v3451, %v3377
        %v3461 = vsel %vm3457, %v3452, %v3382
        %v3462 = vsel %vm3457, %v3453, %v3387
        %v3463 = vsel %vm3457, %v3454, %v3392
        %v3464 = vsel %vm3457, %v3455, %v3397
        %v3465 = vsel %vm3457, %v3456, %v3402
        %v3466 = vld [vmem:[%s3] sm:$0xff]
        %v3467 = vld [vmem:[%s3 + $0x8] sm:$0xff]
        %v3468 = vld [vmem:[%s3 + $0x10] sm:$0xff]
        %v3469 = vld [vmem:[%s3 + $0x18] sm:$0xff]
        %v3470 = vld [vmem:[%s3 + $0x20] sm:$0xff]
        %v3471 = vld [vmem:[%s3 + $0x28] sm:$0xff]
        %v3472 = vld [vmem:[%s3 + $0x30] sm:$0xff]
        %v3473 = vld [vmem:[%s3 + $0x38] sm:$0xff]
        %v3474 = vld [vmem:[%s4] sm:$0x1]
        %v3476 = vlaneseq
        %v3477 = vshrl.u32 %v3476, 7
        %v3478 = vsub.s32 0, %v3477
        %v3479 = vrot.slane %v3474, %v3478
        %3481 = vxpose.xlu0.b32.start [1/16] %v3458, 128
        %3482 = vxpose.xlu0.b32.cont [2/16] %v3459, 128
        %3483 = vxpose.xlu0.b32.cont [3/16] %v3460, 128
        %3484 = vxpose.xlu0.b32.cont [4/16] %v3461, 128
        %3485 = vxpose.xlu0.b32.cont [5/16] %v3462, 128
        %3486 = vxpose.xlu0.b32.cont [6/16] %v3463, 128
        %3487 = vxpose.xlu0.b32.cont [7/16] %v3464, 128
        %3488 = vxpose.xlu0.b32.cont [8/16] %v3465, 128
        %3489 = vxpose.xlu0.b32.cont [9/16] 0.0, 128
        %3490 = vxpose.xlu0.b32.cont [10/16] 0.0, 128
        %3491 = vxpose.xlu0.b32.cont [11/16] 0.0, 128
        %3492 = vxpose.xlu0.b32.cont [12/16] 0.0, 128
        %3493 = vxpose.xlu0.b32.cont [13/16] 0.0, 128
        %3494 = vxpose.xlu0.b32.cont [14/16] 0.0, 128
        %3495 = vxpose.xlu0.b32.cont [15/16] 0.0, 128
        %3496 = vxpose.xlu0.b32.end [16/16] 0.0, 128
        %v3497 = vpop.trf.xlu0
        %v3498 = vpop.trf.xlu0
        %v3499 = vpop.trf.xlu0
        %v3500 = vpop.trf.xlu0
        %v3501 = vpop.trf.xlu0
        %v3502 = vpop.trf.xlu0
        %v3503 = vpop.trf.xlu0
        %v3504 = vpop.trf.xlu0
        %v3505 = vpop.trf.xlu0
        %v3506 = vpop.trf.xlu0
        %v3507 = vpop.trf.xlu0
        %v3508 = vpop.trf.xlu0
        %v3509 = vpop.trf.xlu0
        %v3510 = vpop.trf.xlu0
        %v3511 = vpop.trf.xlu0
        %v3512 = vpop.trf.xlu0
        %vm3513 = vcmask 523264
        %v3515 = vsel %vm3513, %v3497, 0
        %3517 = vmatprep.subr.mxu0 0.0
        %3518 = vmatpush1.msra.mxu0 0.0
        %3519 = vmatprep.subr.mxu0 0.0
        %3520 = vmatpush1.msra.mxu0 0.0
        %3521 = vmatprep.subr.mxu0 0.0
        %3522 = vmatpush1.msra.mxu0 0.0
        %3523 = vmatprep.subr.mxu0 0.0
        %3524 = vmatpush1.msra.mxu0 0.0
        %3525 = vmatprep.subr.mxu0 0.0
        %3526 = vmatpush1.msra.mxu0 0.0
        %3527 = vmatprep.subr.mxu0 0.0
        %3528 = vmatpush1.msra.mxu0 0.0
        %3529 = vmatprep.subr.mxu0 0.0
        %3530 = vmatpush1.msra.mxu0 0.0
        %3531 = vmatprep.subr.mxu0 0.0
        %3532 = vmatpush1.msra.mxu0 0.0
        %3533 = vmatprep.subr.mxu0 0.0
        %3534 = vmatpush1.msra.mxu0 %v3473
        %3535 = vmatprep.subr.mxu0 0.0
        %3536 = vmatpush1.msra.mxu0 %v3472
        %3537 = vmatprep.subr.mxu0 0.0
        %3538 = vmatpush1.msra.mxu0 %v3471
        %3539 = vmatprep.subr.mxu0 0.0
        %3540 = vmatpush1.msra.mxu0 %v3470
        %3541 = vmatprep.subr.mxu0 0.0
        %3542 = vmatpush1.msra.mxu0 %v3469
        %3543 = vmatprep.subr.mxu0 0.0
        %3544 = vmatpush1.msra.mxu0 %v3468
        %3545 = vmatprep.subr.mxu0 0.0
        %3546 = vmatpush1.msra.mxu0 %v3467
        %3547 = vmatprep.subr.mxu0 0.0
        %3548 = vmatpush1.msra.mxu0 %v3466
        %3549 = vmatprep.subr.mxu0 0.0
        %3550 = vmatpush2.msra.mxu0 0.0
        %3551 = vmatprep.subr.mxu0 0.0
        %3552 = vmatpush2.msra.mxu0 0.0
        %3553 = vmatprep.subr.mxu0 0.0
        %3554 = vmatpush2.msra.mxu0 0.0
        %3555 = vmatprep.subr.mxu0 0.0
        %3556 = vmatpush2.msra.mxu0 0.0
        %3557 = vmatprep.subr.mxu0 0.0
        %3558 = vmatpush2.msra.mxu0 0.0
        %3559 = vmatprep.subr.mxu0 0.0
        %3560 = vmatpush2.msra.mxu0 0.0
        %3561 = vmatprep.subr.mxu0 0.0
        %3562 = vmatpush2.msra.mxu0 0.0
        %3563 = vmatprep.subr.mxu0 0.0
        %3564 = vmatpush2.msra.mxu0 0.0
        %3565 = vmatprep.subr.mxu0 0.0
        %3566 = vmatpush2.msra.mxu0 0.0
        %3567 = vmatprep.subr.mxu0 0.0
        %3568 = vmatpush2.msra.mxu0 0.0
        %3569 = vmatprep.subr.mxu0 0.0
        %3570 = vmatpush2.msra.mxu0 0.0
        %3571 = vmatprep.subr.mxu0 0.0
        %3572 = vmatpush2.msra.mxu0 0.0
        %3573 = vmatprep.subr.mxu0 0.0
        %3574 = vmatpush2.msra.mxu0 0.0
        %3575 = vmatprep.subr.mxu0 0.0
        %3576 = vmatpush2.msra.mxu0 0.0
        %3577 = vmatprep.subr.mxu0 0.0
        %3578 = vmatpush2.msra.mxu0 0.0
        %3579 = vmatprep.subr.mxu0 0.0
        %3580 = vmatpush2.msra.mxu0 0.0
        %3581 = vmatprep.mubr.f32.mxu0 0.0
        %3582 = vmatmul.mubr.f32.gmra.mxu0 %v3515
        %v3583 = vpop.f32.mrf.mxu0
        %v3584 = vadd.f32 %v3479, %v3583
        %v3585 = vpop.f32.mrf.mxu0
        %3586 = vdwg.mxu0
        %3587 = vst [vmem:[%s220] sm:$0xff] %v3584
        %s3588 = sand.u32 %s137, 1
        %s3589 = scalar_lea.sflag [#allocation3], %s3588
        %s3590 = sand.u32 %s137, 1
        %s3591 = smul.addr %s3590, 8
        %s3592 = scalar_lea.vmem [#allocation2], %s3591
        // Predicated region
        $region41: #{tpu_custom_call.1} parent=39 // pred_check
          %p3593 = pneg %p147
        $region42: #{tpu_custom_call.1} parent=39 // pred_check_branch
          %3595 = sbr.rel (%p3593) target = $region44
        $region43: #{tpu_custom_call.1} parent=39 // pred_region
          %s3597 = ssub.s32 128, 128
          %3598 = vsyncadd %s3589, %s3597
          %s3599 = smul.addr %s19, 128
          %s3600 = scalar_lea.hbm %s5, %s3599
          %s3602 = sshll.u32 %s3592, 4
          %s3603 = int_to_ptr.vmem [resolvable:$true] %s3602
          %3605 = dma.vmem_to_hbm [thread:$0]  %s3603, 128, %s3600, %s3589
        $region44: #{tpu_custom_call.1} parent=39 // pred_fallthru
          _
      $region40: #{tpu_custom_call.1} parent=5 // pred_fallthru
        _
      %p3606 = scmp.le.s32.totalorder 2, %s14
      // Predicated region
      $region45: #{tpu_custom_call.1} parent=5 // pred_check
        %p3607 = pneg %p3606
      $region46: #{tpu_custom_call.1} parent=5 // pred_check_branch
        %3609 = sbr.rel (%p3607) target = $region48
      $region47: #{tpu_custom_call.1} parent=5 // pred_region
        %s3610 = ssub.s32 %s14, 2
        // Predicated region
        $region49: #{tpu_custom_call.1} parent=47 // pred_check
          %p3611 = pneg %p153
        $region50: #{tpu_custom_call.1} parent=47 // pred_check_branch
          %3613 = sbr.rel (%p3611) target = $region52
        $region51: #{tpu_custom_call.1} parent=47 // pred_region
          %s3614 = sand.u32 %s138, 1
          %s3615 = scalar_lea.sflag [#allocation3], %s3614
          %s3616 = sand.u32 %s138, 1
          %s3617 = smul.addr %s3616, 8
          %s3618 = scalar_lea.vmem [#allocation2], %s3617
          %3619 = dma.done %s3615, 128
        $region52: #{tpu_custom_call.1} parent=47 // pred_fallthru
          _
      $region48: #{tpu_custom_call.1} parent=5 // pred_fallthru
        _
    $region6: #{tpu_custom_call.1} parent=1 // loop_footer
      %s18 = sadd.s32 1, %s14
    $region7: #{tpu_custom_call.1} parent=1 // loop_footer_branch
      %13 = sbr.rel target = $region3
    $region8: #{tpu_custom_call.1} parent=1 // loop_exit
      _
    %3620 = vsyncpa [#allocation3], 1
    %s3621 = scalar_lea.sflag [#allocation3], 1
    %3622 = vsyncpa %s3621, 1

</llo_original>
